<compile_context>
chip_gen: v7x
topology: tpu7x:2x2x1
jax: 0.10.0
libtpu: 0.0.40
codegen_flags: <defaults>
</compile_context>

<pallas_src>
import math

import jax
import jax.numpy as jnp
from jax.experimental import pallas as pl
from jax.experimental.pallas import tpu as pltpu


def _env_pred_kernel(x_ref, w1_ref, b1_ref, w2_ref, b2_ref,
                     w3_ref, b3_ref, w4_ref, b4_ref, o_ref):
    """Fused q_mlp -> ravel -> q_b -> tanh for one context.

    x:  (L, pad_len) bf16  = context_enc[:pad_len, 0, :].T
    w1: (pad_len, 900) bf16 (zero rows of `padded` dropped host-side)
    w2: (900, 50) bf16, w3: (L, 50, 256) bf16, w4: (256, nz) bf16
    biases: (1, N) f32.  Output o: (1, nz) f32.
    """
    # ---- q_mlp: Linear(4500->900)+ReLU, Linear(900->50)+ReLU ----------------
    h1 = jnp.dot(x_ref[...], w1_ref[...], preferred_element_type=jnp.float32)
    h1 = jnp.maximum(h1 + b1_ref[...], 0.0)                        # (L, 900) f32
    h2 = jnp.dot(h1.astype(w2_ref.dtype), w2_ref[...],
                 preferred_element_type=jnp.float32)
    h2 = jnp.maximum(h2 + b2_ref[...], 0.0)                        # (L, 50) f32

    # ---- ravel + q_b Linear(L*50 -> 256) ------------------------------------
    # ravel(h2) @ W3  ==  sum_l  h2[l, :] @ W3[l]   (W3 passed as (L, 50, 256)).
    # L INDEPENDENT (1,50)x(50,256) MXU matmuls (no serial accumulator chain),
    # then a log2(L)-deep VPU add tree -- no XLU relayout, no MXU latency chain.
    L = h2.shape[0]
    parts = [
        jnp.dot(h2[l:l + 1, :].astype(w3_ref.dtype), w3_ref[l],
                preferred_element_type=jnp.float32)
        for l in range(L)
    ]                                                              # L x (1, 256)
    while len(parts) > 1:
        nxt = [parts[i] + parts[i + 1] for i in range(0, len(parts) - 1, 2)]
        if len(parts) % 2:
            nxt.append(parts[-1])
        parts = nxt
    h3 = jnp.maximum(parts[0] + b3_ref[...], 0.0)                  # (1, 256) f32

    # ---- q_b Linear(256 -> nz) + tanh ----------------------------------------
    qb = jnp.dot(h3.astype(w4_ref.dtype), w4_ref[...],
                 preferred_element_type=jnp.float32) + b4_ref[...]
    o_ref[...] = jnp.tanh(qb)                                      # (1, nz)


def _xavier_uniform_T(key, fan_in, fan_out):
    # torch xavier_uniform_ on a (out, in) weight; returned transposed -> (in, out)
    limit = math.sqrt(6.0 / (fan_in + fan_out))
    w = jax.random.uniform(key, (fan_out, fan_in), jnp.float32, -limit, limit)
    return jnp.asarray(w.T)


def init_env_pred_params(key, pred_model_dim, nz):
    k1, k2, k3, k4 = jax.random.split(key, 4)
    return {
        # q_mlp
        "w1": _xavier_uniform_T(k1, 4500, 900),
        "b1": jnp.full((1, 900), 0.01, jnp.float32),
        "w2": _xavier_uniform_T(k2, 900, 50),
        "b2": jnp.full((1, 50), 0.01, jnp.float32),
        # q_b
        "w3": _xavier_uniform_T(k3, pred_model_dim * 50, 256),
        "b3": jnp.full((1, 256), 0.01, jnp.float32),
        "w4": _xavier_uniform_T(k4, 256, nz),
        "b4": jnp.full((1, nz), 0.01, jnp.float32),
    }


def prepare_env_pred_weights(params, pad_len, compute_dtype=jnp.bfloat16):
    """One-time, hoisted preprocessing: W1[:pad_len] slice, bf16 casts, W3 reshape."""
    L50, n_hidden = params["w3"].shape
    if L50 % 50 != 0:
        raise ValueError(f"q_b fan-in {L50} is not a multiple of 50")
    L = L50 // 50
    return {
        "w1": params["w1"][:pad_len, :].astype(compute_dtype),        # (pad_len, 900)
        "b1": params["b1"].astype(jnp.float32),
        "w2": params["w2"].astype(compute_dtype),                     # (900, 50)
        "b2": params["b2"].astype(jnp.float32),
        "w3": params["w3"].reshape(L, 50, n_hidden).astype(compute_dtype),
        "b3": params["b3"].astype(jnp.float32),
        "w4": params["w4"].astype(compute_dtype),                     # (256, nz)
        "b4": params["b4"].astype(jnp.float32),
    }


def env_pred_forward_batched(context_encs, weights):
    """Batched EnvPred head: (B, T, 1, L) -> (B, 1, nz).

    Weights stay VMEM-resident across the whole batch (constant-index BlockSpecs);
    the batch grid axis is "parallel" so v7x's two TensorCores split it.
    """
    context_encs = context_encs.astype(jnp.float32)
    B, T, _, L = context_encs.shape
    pad_len = weights["w1"].shape[0]
    nz = weights["w4"].shape[1]

    if L != weights["w3"].shape[0]:
        raise ValueError(
            f"context_enc last dim L={L} incompatible with q_b fan-in "
            f"{weights['w3'].shape[0] * 50} (expected L*50).")
    if pad_len != min(T, 4500):
        raise ValueError(
            f"weights were prepared for pad_len={pad_len}, but min(T,4500)="
            f"{min(T, 4500)}; re-run prepare_env_pred_weights.")

    # (B, L, pad_len): tiny host-side transpose of the already-sliced activation slab.
    x = jnp.transpose(context_encs[:, :pad_len, 0, :], (0, 2, 1)).astype(
        weights["w1"].dtype)

    def const_spec(arr):
        nd = arr.ndim
        return pl.BlockSpec(arr.shape, lambda b, _nd=nd: (0,) * _nd)

    grid_spec = pltpu.PrefetchScalarGridSpec(
        num_scalar_prefetch=0,
        grid=(B,),
        in_specs=[
            pl.BlockSpec((None, L, pad_len), lambda b: (b, 0, 0)),    # per-context x
            const_spec(weights["w1"]), const_spec(weights["b1"]),
            const_spec(weights["w2"]), const_spec(weights["b2"]),
            const_spec(weights["w3"]), const_spec(weights["b3"]),
            const_spec(weights["w4"]), const_spec(weights["b4"]),
        ],
        out_specs=pl.BlockSpec((None, 1, nz), lambda b: (b, 0, 0)),
    )

    return pl.pallas_call(
        _env_pred_kernel,
        out_shape=jax.ShapeDtypeStruct((B, 1, nz), jnp.float32),
        grid_spec=grid_spec,
        compiler_params=pltpu.CompilerParams(
            dimension_semantics=("parallel",),       # v7x: split batch over 2 TCs
            vmem_limit_bytes=16 << 20,               # real footprint ~3 MB
        ),
    )(x, weights["w1"], weights["b1"], weights["w2"], weights["b2"],
      weights["w3"], weights["b3"], weights["w4"], weights["b4"])


def env_pred_forward(context_enc, weights):
    """EnvPred.main() semantics for one context: (T, 1, L) -> (1, nz)."""
    return env_pred_forward_batched(context_enc[None], weights)[0]


def env_pred_reference(context_enc, params, nz):
    """Plain-JAX f32 reference mirroring the torch forward exactly (with padding)."""
    context_enc = context_enc.astype(jnp.float32)
    L = context_enc.shape[-1]
    pad_len = min(context_enc.shape[0], 4500)
    padded = jnp.zeros((L, 4500), jnp.float32)
    padded = padded.at[:, :pad_len].set(context_enc[:pad_len, 0, :].T)
    h = jnp.maximum(padded @ params["w1"] + params["b1"], 0.0)
    h = jnp.maximum(h @ params["w2"] + params["b2"], 0.0)
    flat = h.reshape(1, L * 50)
    h = jnp.maximum(flat @ params["w3"] + params["b3"], 0.0)
    qb = h @ params["w4"] + params["b4"]
    return jnp.tanh(qb).reshape(-1, nz)


if __name__ == "__main__":
    # Small config consistent with the module: cfg.nz = 8, pred_cfg.tf_model_dim = 32,
    # context_enc of shape (seq=8, batch=1, tf_model_dim=32); batch 4 contexts.
    nz = 8
    pred_model_dim = 32
    seq_len = 8
    batch = 4

    key = jax.random.PRNGKey(0)
    k_params, k_data = jax.random.split(key)
    params = init_env_pred_params(k_params, pred_model_dim, nz)
    weights = prepare_env_pred_weights(params, pad_len=min(seq_len, 4500))

    context_encs = jax.random.normal(
        k_data, (batch, seq_len, 1, pred_model_dim), jnp.float32)

    # Single-context path (matches torch EnvPred.forward semantics).
    out1 = jax.block_until_ready(env_pred_forward(context_encs[0], weights))
    ref1 = env_pred_reference(context_encs[0], params, nz)
    assert out1.shape == (1, nz), out1.shape
    assert jnp.allclose(out1, ref1, atol=2e-2, rtol=2e-2), (out1, ref1)

    # Batched path: one pallas_call, weights resident in VMEM across the grid.
    outB = jax.block_until_ready(env_pred_forward_batched(context_encs, weights))
    refB = jnp.stack([env_pred_reference(context_encs[b], params, nz)
                      for b in range(batch)])
    assert outB.shape == (batch, 1, nz), outB.shape
    assert jnp.allclose(outB, refB, atol=2e-2, rtol=2e-2), (outB, refB)

    print("KERNEL_OK")
</pallas_src>

<mosaic_0001>
module attributes {stable_mosaic.version = 11 : i64} {
  func.func @_env_pred_kernel(%arg0: i32, %arg1: memref<1x32x8xbf16, #tpu.memory_space<vmem>>, %arg2: memref<8x900xbf16, #tpu.memory_space<vmem>>, %arg3: memref<1x900xf32, #tpu.memory_space<vmem>>, %arg4: memref<900x50xbf16, #tpu.memory_space<vmem>>, %arg5: memref<1x50xf32, #tpu.memory_space<vmem>>, %arg6: memref<32x50x256xbf16, #tpu.memory_space<vmem>>, %arg7: memref<1x256xf32, #tpu.memory_space<vmem>>, %arg8: memref<256x8xbf16, #tpu.memory_space<vmem>>, %arg9: memref<1x8xf32, #tpu.memory_space<vmem>>, %arg10: memref<1x1x8xf32, #tpu.memory_space<vmem>>) attributes {dimension_semantics = [#tpu.dimension_semantics<parallel>], iteration_bounds = array<i64: 1>, scalar_prefetch = 0 : i64, scratch_operands = 0 : i64, tpu.core_type = #tpu.core_type<tc>, window_params = [{transform_indices = @transform_0, window_bounds = array<i64: 1, 32, 8>}, {pipeline_mode = #tpu.pipeline_mode<synchronous>, transform_indices = @transform_1, window_bounds = array<i64: 8, 900>}, {pipeline_mode = #tpu.pipeline_mode<synchronous>, transform_indices = @transform_2, window_bounds = array<i64: 1, 900>}, {pipeline_mode = #tpu.pipeline_mode<synchronous>, transform_indices = @transform_3, window_bounds = array<i64: 900, 50>}, {pipeline_mode = #tpu.pipeline_mode<synchronous>, transform_indices = @transform_4, window_bounds = array<i64: 1, 50>}, {pipeline_mode = #tpu.pipeline_mode<synchronous>, transform_indices = @transform_5, window_bounds = array<i64: 32, 50, 256>}, {pipeline_mode = #tpu.pipeline_mode<synchronous>, transform_indices = @transform_6, window_bounds = array<i64: 1, 256>}, {pipeline_mode = #tpu.pipeline_mode<synchronous>, transform_indices = @transform_7, window_bounds = array<i64: 256, 8>}, {pipeline_mode = #tpu.pipeline_mode<synchronous>, transform_indices = @transform_8, window_bounds = array<i64: 1, 8>}, {transform_indices = @transform_9, window_bounds = array<i64: 1, 1, 8>}]} {
    %c0 = arith.constant 0 : index
    %c0_0 = arith.constant 0 : index
    %c0_1 = arith.constant 0 : index
    %0 = vector.load %arg1[%c0, %c0_0, %c0_1] : memref<1x32x8xbf16, #tpu.memory_space<vmem>>, vector<1x32x8xbf16>
    %1 = vector.shape_cast %0 : vector<1x32x8xbf16> to vector<32x8xbf16>
    %c0_2 = arith.constant 0 : index
    %c0_3 = arith.constant 0 : index
    %2 = vector.load %arg2[%c0_2, %c0_3] : memref<8x900xbf16, #tpu.memory_space<vmem>>, vector<8x900xbf16>
    %cst = arith.constant dense<0.000000e+00> : vector<32x900xf32>
    %3 = tpu.matmul %1, %2, %cst {dimension_numbers = #tpu.dot_dimension_numbers<[1], [0], [0], [1], [0, 0, 1, 1], [], []>} : vector<32x8xbf16>, vector<8x900xbf16>, vector<32x900xf32> -> vector<32x900xf32>
    %c0_4 = arith.constant 0 : index
    %c0_5 = arith.constant 0 : index
    %4 = vector.load %arg3[%c0_4, %c0_5] : memref<1x900xf32, #tpu.memory_space<vmem>>, vector<1x900xf32>
    %5 = vector.broadcast %4 : vector<1x900xf32> to vector<32x900xf32>
    %6 = arith.addf %3, %5 : vector<32x900xf32>
    %cst_6 = arith.constant 0.000000e+00 : f32
    %7 = vector.broadcast %cst_6 : f32 to vector<32x900xf32>
    %8 = arith.maximumf %6, %7 : vector<32x900xf32>
    %9 = arith.truncf %8 : vector<32x900xf32> to vector<32x900xbf16>
    %c0_7 = arith.constant 0 : index
    %c0_8 = arith.constant 0 : index
    %10 = vector.load %arg4[%c0_7, %c0_8] : memref<900x50xbf16, #tpu.memory_space<vmem>>, vector<900x50xbf16>
    %cst_9 = arith.constant dense<0.000000e+00> : vector<32x50xf32>
    %11 = tpu.matmul %9, %10, %cst_9 {dimension_numbers = #tpu.dot_dimension_numbers<[1], [0], [0], [1], [0, 0, 1, 1], [], []>} : vector<32x900xbf16>, vector<900x50xbf16>, vector<32x50xf32> -> vector<32x50xf32>
    %c0_10 = arith.constant 0 : index
    %c0_11 = arith.constant 0 : index
    %12 = vector.load %arg5[%c0_10, %c0_11] : memref<1x50xf32, #tpu.memory_space<vmem>>, vector<1x50xf32>
    %13 = vector.broadcast %12 : vector<1x50xf32> to vector<32x50xf32>
    %14 = arith.addf %11, %13 : vector<32x50xf32>
    %cst_12 = arith.constant 0.000000e+00 : f32
    %15 = vector.broadcast %cst_12 : f32 to vector<32x50xf32>
    %16 = arith.maximumf %14, %15 : vector<32x50xf32>
    %17 = vector.extract_strided_slice %16 {offsets = [0, 0], sizes = [1, 50], strides = [1, 1]} : vector<32x50xf32> to vector<1x50xf32>
    %18 = arith.truncf %17 : vector<1x50xf32> to vector<1x50xbf16>
    %c0_13 = arith.constant 0 : index
    %c0_14 = arith.constant 0 : index
    %c0_15 = arith.constant 0 : index
    %19 = vector.load %arg6[%c0_13, %c0_14, %c0_15] : memref<32x50x256xbf16, #tpu.memory_space<vmem>>, vector<1x50x256xbf16>
    %20 = vector.shape_cast %19 : vector<1x50x256xbf16> to vector<50x256xbf16>
    %cst_16 = arith.constant dense<0.000000e+00> : vector<1x256xf32>
    %21 = tpu.matmul %18, %20, %cst_16 {dimension_numbers = #tpu.dot_dimension_numbers<[1], [0], [0], [1], [0, 0, 1, 1], [], []>} : vector<1x50xbf16>, vector<50x256xbf16>, vector<1x256xf32> -> vector<1x256xf32>
    %22 = vector.extract_strided_slice %16 {offsets = [1, 0], sizes = [1, 50], strides = [1, 1]} : vector<32x50xf32> to vector<1x50xf32>
    %23 = arith.truncf %22 : vector<1x50xf32> to vector<1x50xbf16>
    %c1 = arith.constant 1 : index
    %c0_17 = arith.constant 0 : index
    %c0_18 = arith.constant 0 : index
    %24 = vector.load %arg6[%c1, %c0_17, %c0_18] : memref<32x50x256xbf16, #tpu.memory_space<vmem>>, vector<1x50x256xbf16>
    %25 = vector.shape_cast %24 : vector<1x50x256xbf16> to vector<50x256xbf16>
    %cst_19 = arith.constant dense<0.000000e+00> : vector<1x256xf32>
    %26 = tpu.matmul %23, %25, %cst_19 {dimension_numbers = #tpu.dot_dimension_numbers<[1], [0], [0], [1], [0, 0, 1, 1], [], []>} : vector<1x50xbf16>, vector<50x256xbf16>, vector<1x256xf32> -> vector<1x256xf32>
    %27 = vector.extract_strided_slice %16 {offsets = [2, 0], sizes = [1, 50], strides = [1, 1]} : vector<32x50xf32> to vector<1x50xf32>
    %28 = arith.truncf %27 : vector<1x50xf32> to vector<1x50xbf16>
    %c2 = arith.constant 2 : index
    %c0_20 = arith.constant 0 : index
    %c0_21 = arith.constant 0 : index
    %29 = vector.load %arg6[%c2, %c0_20, %c0_21] : memref<32x50x256xbf16, #tpu.memory_space<vmem>>, vector<1x50x256xbf16>
    %30 = vector.shape_cast %29 : vector<1x50x256xbf16> to vector<50x256xbf16>
    %cst_22 = arith.constant dense<0.000000e+00> : vector<1x256xf32>
    %31 = tpu.matmul %28, %30, %cst_22 {dimension_numbers = #tpu.dot_dimension_numbers<[1], [0], [0], [1], [0, 0, 1, 1], [], []>} : vector<1x50xbf16>, vector<50x256xbf16>, vector<1x256xf32> -> vector<1x256xf32>
    %32 = vector.extract_strided_slice %16 {offsets = [3, 0], sizes = [1, 50], strides = [1, 1]} : vector<32x50xf32> to vector<1x50xf32>
    %33 = arith.truncf %32 : vector<1x50xf32> to vector<1x50xbf16>
    %c3 = arith.constant 3 : index
    %c0_23 = arith.constant 0 : index
    %c0_24 = arith.constant 0 : index
    %34 = vector.load %arg6[%c3, %c0_23, %c0_24] : memref<32x50x256xbf16, #tpu.memory_space<vmem>>, vector<1x50x256xbf16>
    %35 = vector.shape_cast %34 : vector<1x50x256xbf16> to vector<50x256xbf16>
    %cst_25 = arith.constant dense<0.000000e+00> : vector<1x256xf32>
    %36 = tpu.matmul %33, %35, %cst_25 {dimension_numbers = #tpu.dot_dimension_numbers<[1], [0], [0], [1], [0, 0, 1, 1], [], []>} : vector<1x50xbf16>, vector<50x256xbf16>, vector<1x256xf32> -> vector<1x256xf32>
    %37 = vector.extract_strided_slice %16 {offsets = [4, 0], sizes = [1, 50], strides = [1, 1]} : vector<32x50xf32> to vector<1x50xf32>
    %38 = arith.truncf %37 : vector<1x50xf32> to vector<1x50xbf16>
    %c4 = arith.constant 4 : index
    %c0_26 = arith.constant 0 : index
    %c0_27 = arith.constant 0 : index
    %39 = vector.load %arg6[%c4, %c0_26, %c0_27] : memref<32x50x256xbf16, #tpu.memory_space<vmem>>, vector<1x50x256xbf16>
    %40 = vector.shape_cast %39 : vector<1x50x256xbf16> to vector<50x256xbf16>
    %cst_28 = arith.constant dense<0.000000e+00> : vector<1x256xf32>
    %41 = tpu.matmul %38, %40, %cst_28 {dimension_numbers = #tpu.dot_dimension_numbers<[1], [0], [0], [1], [0, 0, 1, 1], [], []>} : vector<1x50xbf16>, vector<50x256xbf16>, vector<1x256xf32> -> vector<1x256xf32>
    %42 = vector.extract_strided_slice %16 {offsets = [5, 0], sizes = [1, 50], strides = [1, 1]} : vector<32x50xf32> to vector<1x50xf32>
    %43 = arith.truncf %42 : vector<1x50xf32> to vector<1x50xbf16>
    %c5 = arith.constant 5 : index
    %c0_29 = arith.constant 0 : index
    %c0_30 = arith.constant 0 : index
    %44 = vector.load %arg6[%c5, %c0_29, %c0_30] : memref<32x50x256xbf16, #tpu.memory_space<vmem>>, vector<1x50x256xbf16>
    %45 = vector.shape_cast %44 : vector<1x50x256xbf16> to vector<50x256xbf16>
    %cst_31 = arith.constant dense<0.000000e+00> : vector<1x256xf32>
    %46 = tpu.matmul %43, %45, %cst_31 {dimension_numbers = #tpu.dot_dimension_numbers<[1], [0], [0], [1], [0, 0, 1, 1], [], []>} : vector<1x50xbf16>, vector<50x256xbf16>, vector<1x256xf32> -> vector<1x256xf32>
    %47 = vector.extract_strided_slice %16 {offsets = [6, 0], sizes = [1, 50], strides = [1, 1]} : vector<32x50xf32> to vector<1x50xf32>
    %48 = arith.truncf %47 : vector<1x50xf32> to vector<1x50xbf16>
    %c6 = arith.constant 6 : index
    %c0_32 = arith.constant 0 : index
    %c0_33 = arith.constant 0 : index
    %49 = vector.load %arg6[%c6, %c0_32, %c0_33] : memref<32x50x256xbf16, #tpu.memory_space<vmem>>, vector<1x50x256xbf16>
    %50 = vector.shape_cast %49 : vector<1x50x256xbf16> to vector<50x256xbf16>
    %cst_34 = arith.constant dense<0.000000e+00> : vector<1x256xf32>
    %51 = tpu.matmul %48, %50, %cst_34 {dimension_numbers = #tpu.dot_dimension_numbers<[1], [0], [0], [1], [0, 0, 1, 1], [], []>} : vector<1x50xbf16>, vector<50x256xbf16>, vector<1x256xf32> -> vector<1x256xf32>
    %52 = vector.extract_strided_slice %16 {offsets = [7, 0], sizes = [1, 50], strides = [1, 1]} : vector<32x50xf32> to vector<1x50xf32>
    %53 = arith.truncf %52 : vector<1x50xf32> to vector<1x50xbf16>
    %c7 = arith.constant 7 : index
    %c0_35 = arith.constant 0 : index
    %c0_36 = arith.constant 0 : index
    %54 = vector.load %arg6[%c7, %c0_35, %c0_36] : memref<32x50x256xbf16, #tpu.memory_space<vmem>>, vector<1x50x256xbf16>
    %55 = vector.shape_cast %54 : vector<1x50x256xbf16> to vector<50x256xbf16>
    %cst_37 = arith.constant dense<0.000000e+00> : vector<1x256xf32>
    %56 = tpu.matmul %53, %55, %cst_37 {dimension_numbers = #tpu.dot_dimension_numbers<[1], [0], [0], [1], [0, 0, 1, 1], [], []>} : vector<1x50xbf16>, vector<50x256xbf16>, vector<1x256xf32> -> vector<1x256xf32>
    %57 = vector.extract_strided_slice %16 {offsets = [8, 0], sizes = [1, 50], strides = [1, 1]} : vector<32x50xf32> to vector<1x50xf32>
    %58 = arith.truncf %57 : vector<1x50xf32> to vector<1x50xbf16>
    %c8 = arith.constant 8 : index
    %c0_38 = arith.constant 0 : index
    %c0_39 = arith.constant 0 : index
    %59 = vector.load %arg6[%c8, %c0_38, %c0_39] : memref<32x50x256xbf16, #tpu.memory_space<vmem>>, vector<1x50x256xbf16>
    %60 = vector.shape_cast %59 : vector<1x50x256xbf16> to vector<50x256xbf16>
    %cst_40 = arith.constant dense<0.000000e+00> : vector<1x256xf32>
    %61 = tpu.matmul %58, %60, %cst_40 {dimension_numbers = #tpu.dot_dimension_numbers<[1], [0], [0], [1], [0, 0, 1, 1], [], []>} : vector<1x50xbf16>, vector<50x256xbf16>, vector<1x256xf32> -> vector<1x256xf32>
    %62 = vector.extract_strided_slice %16 {offsets = [9, 0], sizes = [1, 50], strides = [1, 1]} : vector<32x50xf32> to vector<1x50xf32>
    %63 = arith.truncf %62 : vector<1x50xf32> to vector<1x50xbf16>
    %c9 = arith.constant 9 : index
    %c0_41 = arith.constant 0 : index
    %c0_42 = arith.constant 0 : index
    %64 = vector.load %arg6[%c9, %c0_41, %c0_42] : memref<32x50x256xbf16, #tpu.memory_space<vmem>>, vector<1x50x256xbf16>
    %65 = vector.shape_cast %64 : vector<1x50x256xbf16> to vector<50x256xbf16>
    %cst_43 = arith.constant dense<0.000000e+00> : vector<1x256xf32>
    %66 = tpu.matmul %63, %65, %cst_43 {dimension_numbers = #tpu.dot_dimension_numbers<[1], [0], [0], [1], [0, 0, 1, 1], [], []>} : vector<1x50xbf16>, vector<50x256xbf16>, vector<1x256xf32> -> vector<1x256xf32>
    %67 = vector.extract_strided_slice %16 {offsets = [10, 0], sizes = [1, 50], strides = [1, 1]} : vector<32x50xf32> to vector<1x50xf32>
    %68 = arith.truncf %67 : vector<1x50xf32> to vector<1x50xbf16>
    %c10 = arith.constant 10 : index
    %c0_44 = arith.constant 0 : index
    %c0_45 = arith.constant 0 : index
    %69 = vector.load %arg6[%c10, %c0_44, %c0_45] : memref<32x50x256xbf16, #tpu.memory_space<vmem>>, vector<1x50x256xbf16>
    %70 = vector.shape_cast %69 : vector<1x50x256xbf16> to vector<50x256xbf16>
    %cst_46 = arith.constant dense<0.000000e+00> : vector<1x256xf32>
    %71 = tpu.matmul %68, %70, %cst_46 {dimension_numbers = #tpu.dot_dimension_numbers<[1], [0], [0], [1], [0, 0, 1, 1], [], []>} : vector<1x50xbf16>, vector<50x256xbf16>, vector<1x256xf32> -> vector<1x256xf32>
    %72 = vector.extract_strided_slice %16 {offsets = [11, 0], sizes = [1, 50], strides = [1, 1]} : vector<32x50xf32> to vector<1x50xf32>
    %73 = arith.truncf %72 : vector<1x50xf32> to vector<1x50xbf16>
    %c11 = arith.constant 11 : index
    %c0_47 = arith.constant 0 : index
    %c0_48 = arith.constant 0 : index
    %74 = vector.load %arg6[%c11, %c0_47, %c0_48] : memref<32x50x256xbf16, #tpu.memory_space<vmem>>, vector<1x50x256xbf16>
    %75 = vector.shape_cast %74 : vector<1x50x256xbf16> to vector<50x256xbf16>
    %cst_49 = arith.constant dense<0.000000e+00> : vector<1x256xf32>
    %76 = tpu.matmul %73, %75, %cst_49 {dimension_numbers = #tpu.dot_dimension_numbers<[1], [0], [0], [1], [0, 0, 1, 1], [], []>} : vector<1x50xbf16>, vector<50x256xbf16>, vector<1x256xf32> -> vector<1x256xf32>
    %77 = vector.extract_strided_slice %16 {offsets = [12, 0], sizes = [1, 50], strides = [1, 1]} : vector<32x50xf32> to vector<1x50xf32>
    %78 = arith.truncf %77 : vector<1x50xf32> to vector<1x50xbf16>
    %c12 = arith.constant 12 : index
    %c0_50 = arith.constant 0 : index
    %c0_51 = arith.constant 0 : index
    %79 = vector.load %arg6[%c12, %c0_50, %c0_51] : memref<32x50x256xbf16, #tpu.memory_space<vmem>>, vector<1x50x256xbf16>
    %80 = vector.shape_cast %79 : vector<1x50x256xbf16> to vector<50x256xbf16>
    %cst_52 = arith.constant dense<0.000000e+00> : vector<1x256xf32>
    %81 = tpu.matmul %78, %80, %cst_52 {dimension_numbers = #tpu.dot_dimension_numbers<[1], [0], [0], [1], [0, 0, 1, 1], [], []>} : vector<1x50xbf16>, vector<50x256xbf16>, vector<1x256xf32> -> vector<1x256xf32>
    %82 = vector.extract_strided_slice %16 {offsets = [13, 0], sizes = [1, 50], strides = [1, 1]} : vector<32x50xf32> to vector<1x50xf32>
    %83 = arith.truncf %82 : vector<1x50xf32> to vector<1x50xbf16>
    %c13 = arith.constant 13 : index
    %c0_53 = arith.constant 0 : index
    %c0_54 = arith.constant 0 : index
    %84 = vector.load %arg6[%c13, %c0_53, %c0_54] : memref<32x50x256xbf16, #tpu.memory_space<vmem>>, vector<1x50x256xbf16>
    %85 = vector.shape_cast %84 : vector<1x50x256xbf16> to vector<50x256xbf16>
    %cst_55 = arith.constant dense<0.000000e+00> : vector<1x256xf32>
    %86 = tpu.matmul %83, %85, %cst_55 {dimension_numbers = #tpu.dot_dimension_numbers<[1], [0], [0], [1], [0, 0, 1, 1], [], []>} : vector<1x50xbf16>, vector<50x256xbf16>, vector<1x256xf32> -> vector<1x256xf32>
    %87 = vector.extract_strided_slice %16 {offsets = [14, 0], sizes = [1, 50], strides = [1, 1]} : vector<32x50xf32> to vector<1x50xf32>
    %88 = arith.truncf %87 : vector<1x50xf32> to vector<1x50xbf16>
    %c14 = arith.constant 14 : index
    %c0_56 = arith.constant 0 : index
    %c0_57 = arith.constant 0 : index
    %89 = vector.load %arg6[%c14, %c0_56, %c0_57] : memref<32x50x256xbf16, #tpu.memory_space<vmem>>, vector<1x50x256xbf16>
    %90 = vector.shape_cast %89 : vector<1x50x256xbf16> to vector<50x256xbf16>
    %cst_58 = arith.constant dense<0.000000e+00> : vector<1x256xf32>
    %91 = tpu.matmul %88, %90, %cst_58 {dimension_numbers = #tpu.dot_dimension_numbers<[1], [0], [0], [1], [0, 0, 1, 1], [], []>} : vector<1x50xbf16>, vector<50x256xbf16>, vector<1x256xf32> -> vector<1x256xf32>
    %92 = vector.extract_strided_slice %16 {offsets = [15, 0], sizes = [1, 50], strides = [1, 1]} : vector<32x50xf32> to vector<1x50xf32>
    %93 = arith.truncf %92 : vector<1x50xf32> to vector<1x50xbf16>
    %c15 = arith.constant 15 : index
    %c0_59 = arith.constant 0 : index
    %c0_60 = arith.constant 0 : index
    %94 = vector.load %arg6[%c15, %c0_59, %c0_60] : memref<32x50x256xbf16, #tpu.memory_space<vmem>>, vector<1x50x256xbf16>
    %95 = vector.shape_cast %94 : vector<1x50x256xbf16> to vector<50x256xbf16>
    %cst_61 = arith.constant dense<0.000000e+00> : vector<1x256xf32>
    %96 = tpu.matmul %93, %95, %cst_61 {dimension_numbers = #tpu.dot_dimension_numbers<[1], [0], [0], [1], [0, 0, 1, 1], [], []>} : vector<1x50xbf16>, vector<50x256xbf16>, vector<1x256xf32> -> vector<1x256xf32>
    %97 = vector.extract_strided_slice %16 {offsets = [16, 0], sizes = [1, 50], strides = [1, 1]} : vector<32x50xf32> to vector<1x50xf32>
    %98 = arith.truncf %97 : vector<1x50xf32> to vector<1x50xbf16>
    %c16 = arith.constant 16 : index
    %c0_62 = arith.constant 0 : index
    %c0_63 = arith.constant 0 : index
    %99 = vector.load %arg6[%c16, %c0_62, %c0_63] : memref<32x50x256xbf16, #tpu.memory_space<vmem>>, vector<1x50x256xbf16>
    %100 = vector.shape_cast %99 : vector<1x50x256xbf16> to vector<50x256xbf16>
    %cst_64 = arith.constant dense<0.000000e+00> : vector<1x256xf32>
    %101 = tpu.matmul %98, %100, %cst_64 {dimension_numbers = #tpu.dot_dimension_numbers<[1], [0], [0], [1], [0, 0, 1, 1], [], []>} : vector<1x50xbf16>, vector<50x256xbf16>, vector<1x256xf32> -> vector<1x256xf32>
    %102 = vector.extract_strided_slice %16 {offsets = [17, 0], sizes = [1, 50], strides = [1, 1]} : vector<32x50xf32> to vector<1x50xf32>
    %103 = arith.truncf %102 : vector<1x50xf32> to vector<1x50xbf16>
    %c17 = arith.constant 17 : index
    %c0_65 = arith.constant 0 : index
    %c0_66 = arith.constant 0 : index
    %104 = vector.load %arg6[%c17, %c0_65, %c0_66] : memref<32x50x256xbf16, #tpu.memory_space<vmem>>, vector<1x50x256xbf16>
    %105 = vector.shape_cast %104 : vector<1x50x256xbf16> to vector<50x256xbf16>
    %cst_67 = arith.constant dense<0.000000e+00> : vector<1x256xf32>
    %106 = tpu.matmul %103, %105, %cst_67 {dimension_numbers = #tpu.dot_dimension_numbers<[1], [0], [0], [1], [0, 0, 1, 1], [], []>} : vector<1x50xbf16>, vector<50x256xbf16>, vector<1x256xf32> -> vector<1x256xf32>
    %107 = vector.extract_strided_slice %16 {offsets = [18, 0], sizes = [1, 50], strides = [1, 1]} : vector<32x50xf32> to vector<1x50xf32>
    %108 = arith.truncf %107 : vector<1x50xf32> to vector<1x50xbf16>
    %c18 = arith.constant 18 : index
    %c0_68 = arith.constant 0 : index
    %c0_69 = arith.constant 0 : index
    %109 = vector.load %arg6[%c18, %c0_68, %c0_69] : memref<32x50x256xbf16, #tpu.memory_space<vmem>>, vector<1x50x256xbf16>
    %110 = vector.shape_cast %109 : vector<1x50x256xbf16> to vector<50x256xbf16>
    %cst_70 = arith.constant dense<0.000000e+00> : vector<1x256xf32>
    %111 = tpu.matmul %108, %110, %cst_70 {dimension_numbers = #tpu.dot_dimension_numbers<[1], [0], [0], [1], [0, 0, 1, 1], [], []>} : vector<1x50xbf16>, vector<50x256xbf16>, vector<1x256xf32> -> vector<1x256xf32>
    %112 = vector.extract_strided_slice %16 {offsets = [19, 0], sizes = [1, 50], strides = [1, 1]} : vector<32x50xf32> to vector<1x50xf32>
    %113 = arith.truncf %112 : vector<1x50xf32> to vector<1x50xbf16>
    %c19 = arith.constant 19 : index
    %c0_71 = arith.constant 0 : index
    %c0_72 = arith.constant 0 : index
    %114 = vector.load %arg6[%c19, %c0_71, %c0_72] : memref<32x50x256xbf16, #tpu.memory_space<vmem>>, vector<1x50x256xbf16>
    %115 = vector.shape_cast %114 : vector<1x50x256xbf16> to vector<50x256xbf16>
    %cst_73 = arith.constant dense<0.000000e+00> : vector<1x256xf32>
    %116 = tpu.matmul %113, %115, %cst_73 {dimension_numbers = #tpu.dot_dimension_numbers<[1], [0], [0], [1], [0, 0, 1, 1], [], []>} : vector<1x50xbf16>, vector<50x256xbf16>, vector<1x256xf32> -> vector<1x256xf32>
    %117 = vector.extract_strided_slice %16 {offsets = [20, 0], sizes = [1, 50], strides = [1, 1]} : vector<32x50xf32> to vector<1x50xf32>
    %118 = arith.truncf %117 : vector<1x50xf32> to vector<1x50xbf16>
    %c20 = arith.constant 20 : index
    %c0_74 = arith.constant 0 : index
    %c0_75 = arith.constant 0 : index
    %119 = vector.load %arg6[%c20, %c0_74, %c0_75] : memref<32x50x256xbf16, #tpu.memory_space<vmem>>, vector<1x50x256xbf16>
    %120 = vector.shape_cast %119 : vector<1x50x256xbf16> to vector<50x256xbf16>
    %cst_76 = arith.constant dense<0.000000e+00> : vector<1x256xf32>
    %121 = tpu.matmul %118, %120, %cst_76 {dimension_numbers = #tpu.dot_dimension_numbers<[1], [0], [0], [1], [0, 0, 1, 1], [], []>} : vector<1x50xbf16>, vector<50x256xbf16>, vector<1x256xf32> -> vector<1x256xf32>
    %122 = vector.extract_strided_slice %16 {offsets = [21, 0], sizes = [1, 50], strides = [1, 1]} : vector<32x50xf32> to vector<1x50xf32>
    %123 = arith.truncf %122 : vector<1x50xf32> to vector<1x50xbf16>
    %c21 = arith.constant 21 : index
    %c0_77 = arith.constant 0 : index
    %c0_78 = arith.constant 0 : index
    %124 = vector.load %arg6[%c21, %c0_77, %c0_78] : memref<32x50x256xbf16, #tpu.memory_space<vmem>>, vector<1x50x256xbf16>
    %125 = vector.shape_cast %124 : vector<1x50x256xbf16> to vector<50x256xbf16>
    %cst_79 = arith.constant dense<0.000000e+00> : vector<1x256xf32>
    %126 = tpu.matmul %123, %125, %cst_79 {dimension_numbers = #tpu.dot_dimension_numbers<[1], [0], [0], [1], [0, 0, 1, 1], [], []>} : vector<1x50xbf16>, vector<50x256xbf16>, vector<1x256xf32> -> vector<1x256xf32>
    %127 = vector.extract_strided_slice %16 {offsets = [22, 0], sizes = [1, 50], strides = [1, 1]} : vector<32x50xf32> to vector<1x50xf32>
    %128 = arith.truncf %127 : vector<1x50xf32> to vector<1x50xbf16>
    %c22 = arith.constant 22 : index
    %c0_80 = arith.constant 0 : index
    %c0_81 = arith.constant 0 : index
    %129 = vector.load %arg6[%c22, %c0_80, %c0_81] : memref<32x50x256xbf16, #tpu.memory_space<vmem>>, vector<1x50x256xbf16>
    %130 = vector.shape_cast %129 : vector<1x50x256xbf16> to vector<50x256xbf16>
    %cst_82 = arith.constant dense<0.000000e+00> : vector<1x256xf32>
    %131 = tpu.matmul %128, %130, %cst_82 {dimension_numbers = #tpu.dot_dimension_numbers<[1], [0], [0], [1], [0, 0, 1, 1], [], []>} : vector<1x50xbf16>, vector<50x256xbf16>, vector<1x256xf32> -> vector<1x256xf32>
    %132 = vector.extract_strided_slice %16 {offsets = [23, 0], sizes = [1, 50], strides = [1, 1]} : vector<32x50xf32> to vector<1x50xf32>
    %133 = arith.truncf %132 : vector<1x50xf32> to vector<1x50xbf16>
    %c23 = arith.constant 23 : index
    %c0_83 = arith.constant 0 : index
    %c0_84 = arith.constant 0 : index
    %134 = vector.load %arg6[%c23, %c0_83, %c0_84] : memref<32x50x256xbf16, #tpu.memory_space<vmem>>, vector<1x50x256xbf16>
    %135 = vector.shape_cast %134 : vector<1x50x256xbf16> to vector<50x256xbf16>
    %cst_85 = arith.constant dense<0.000000e+00> : vector<1x256xf32>
    %136 = tpu.matmul %133, %135, %cst_85 {dimension_numbers = #tpu.dot_dimension_numbers<[1], [0], [0], [1], [0, 0, 1, 1], [], []>} : vector<1x50xbf16>, vector<50x256xbf16>, vector<1x256xf32> -> vector<1x256xf32>
    %137 = vector.extract_strided_slice %16 {offsets = [24, 0], sizes = [1, 50], strides = [1, 1]} : vector<32x50xf32> to vector<1x50xf32>
    %138 = arith.truncf %137 : vector<1x50xf32> to vector<1x50xbf16>
    %c24 = arith.constant 24 : index
    %c0_86 = arith.constant 0 : index
    %c0_87 = arith.constant 0 : index
    %139 = vector.load %arg6[%c24, %c0_86, %c0_87] : memref<32x50x256xbf16, #tpu.memory_space<vmem>>, vector<1x50x256xbf16>
    %140 = vector.shape_cast %139 : vector<1x50x256xbf16> to vector<50x256xbf16>
    %cst_88 = arith.constant dense<0.000000e+00> : vector<1x256xf32>
    %141 = tpu.matmul %138, %140, %cst_88 {dimension_numbers = #tpu.dot_dimension_numbers<[1], [0], [0], [1], [0, 0, 1, 1], [], []>} : vector<1x50xbf16>, vector<50x256xbf16>, vector<1x256xf32> -> vector<1x256xf32>
    %142 = vector.extract_strided_slice %16 {offsets = [25, 0], sizes = [1, 50], strides = [1, 1]} : vector<32x50xf32> to vector<1x50xf32>
    %143 = arith.truncf %142 : vector<1x50xf32> to vector<1x50xbf16>
    %c25 = arith.constant 25 : index
    %c0_89 = arith.constant 0 : index
    %c0_90 = arith.constant 0 : index
    %144 = vector.load %arg6[%c25, %c0_89, %c0_90] : memref<32x50x256xbf16, #tpu.memory_space<vmem>>, vector<1x50x256xbf16>
    %145 = vector.shape_cast %144 : vector<1x50x256xbf16> to vector<50x256xbf16>
    %cst_91 = arith.constant dense<0.000000e+00> : vector<1x256xf32>
    %146 = tpu.matmul %143, %145, %cst_91 {dimension_numbers = #tpu.dot_dimension_numbers<[1], [0], [0], [1], [0, 0, 1, 1], [], []>} : vector<1x50xbf16>, vector<50x256xbf16>, vector<1x256xf32> -> vector<1x256xf32>
    %147 = vector.extract_strided_slice %16 {offsets = [26, 0], sizes = [1, 50], strides = [1, 1]} : vector<32x50xf32> to vector<1x50xf32>
    %148 = arith.truncf %147 : vector<1x50xf32> to vector<1x50xbf16>
    %c26 = arith.constant 26 : index
    %c0_92 = arith.constant 0 : index
    %c0_93 = arith.constant 0 : index
    %149 = vector.load %arg6[%c26, %c0_92, %c0_93] : memref<32x50x256xbf16, #tpu.memory_space<vmem>>, vector<1x50x256xbf16>
    %150 = vector.shape_cast %149 : vector<1x50x256xbf16> to vector<50x256xbf16>
    %cst_94 = arith.constant dense<0.000000e+00> : vector<1x256xf32>
    %151 = tpu.matmul %148, %150, %cst_94 {dimension_numbers = #tpu.dot_dimension_numbers<[1], [0], [0], [1], [0, 0, 1, 1], [], []>} : vector<1x50xbf16>, vector<50x256xbf16>, vector<1x256xf32> -> vector<1x256xf32>
    %152 = vector.extract_strided_slice %16 {offsets = [27, 0], sizes = [1, 50], strides = [1, 1]} : vector<32x50xf32> to vector<1x50xf32>
    %153 = arith.truncf %152 : vector<1x50xf32> to vector<1x50xbf16>
    %c27 = arith.constant 27 : index
    %c0_95 = arith.constant 0 : index
    %c0_96 = arith.constant 0 : index
    %154 = vector.load %arg6[%c27, %c0_95, %c0_96] : memref<32x50x256xbf16, #tpu.memory_space<vmem>>, vector<1x50x256xbf16>
    %155 = vector.shape_cast %154 : vector<1x50x256xbf16> to vector<50x256xbf16>
    %cst_97 = arith.constant dense<0.000000e+00> : vector<1x256xf32>
    %156 = tpu.matmul %153, %155, %cst_97 {dimension_numbers = #tpu.dot_dimension_numbers<[1], [0], [0], [1], [0, 0, 1, 1], [], []>} : vector<1x50xbf16>, vector<50x256xbf16>, vector<1x256xf32> -> vector<1x256xf32>
    %157 = vector.extract_strided_slice %16 {offsets = [28, 0], sizes = [1, 50], strides = [1, 1]} : vector<32x50xf32> to vector<1x50xf32>
    %158 = arith.truncf %157 : vector<1x50xf32> to vector<1x50xbf16>
    %c28 = arith.constant 28 : index
    %c0_98 = arith.constant 0 : index
    %c0_99 = arith.constant 0 : index
    %159 = vector.load %arg6[%c28, %c0_98, %c0_99] : memref<32x50x256xbf16, #tpu.memory_space<vmem>>, vector<1x50x256xbf16>
    %160 = vector.shape_cast %159 : vector<1x50x256xbf16> to vector<50x256xbf16>
    %cst_100 = arith.constant dense<0.000000e+00> : vector<1x256xf32>
    %161 = tpu.matmul %158, %160, %cst_100 {dimension_numbers = #tpu.dot_dimension_numbers<[1], [0], [0], [1], [0, 0, 1, 1], [], []>} : vector<1x50xbf16>, vector<50x256xbf16>, vector<1x256xf32> -> vector<1x256xf32>
    %162 = vector.extract_strided_slice %16 {offsets = [29, 0], sizes = [1, 50], strides = [1, 1]} : vector<32x50xf32> to vector<1x50xf32>
    %163 = arith.truncf %162 : vector<1x50xf32> to vector<1x50xbf16>
    %c29 = arith.constant 29 : index
    %c0_101 = arith.constant 0 : index
    %c0_102 = arith.constant 0 : index
    %164 = vector.load %arg6[%c29, %c0_101, %c0_102] : memref<32x50x256xbf16, #tpu.memory_space<vmem>>, vector<1x50x256xbf16>
    %165 = vector.shape_cast %164 : vector<1x50x256xbf16> to vector<50x256xbf16>
    %cst_103 = arith.constant dense<0.000000e+00> : vector<1x256xf32>
    %166 = tpu.matmul %163, %165, %cst_103 {dimension_numbers = #tpu.dot_dimension_numbers<[1], [0], [0], [1], [0, 0, 1, 1], [], []>} : vector<1x50xbf16>, vector<50x256xbf16>, vector<1x256xf32> -> vector<1x256xf32>
    %167 = vector.extract_strided_slice %16 {offsets = [30, 0], sizes = [1, 50], strides = [1, 1]} : vector<32x50xf32> to vector<1x50xf32>
    %168 = arith.truncf %167 : vector<1x50xf32> to vector<1x50xbf16>
    %c30 = arith.constant 30 : index
    %c0_104 = arith.constant 0 : index
    %c0_105 = arith.constant 0 : index
    %169 = vector.load %arg6[%c30, %c0_104, %c0_105] : memref<32x50x256xbf16, #tpu.memory_space<vmem>>, vector<1x50x256xbf16>
    %170 = vector.shape_cast %169 : vector<1x50x256xbf16> to vector<50x256xbf16>
    %cst_106 = arith.constant dense<0.000000e+00> : vector<1x256xf32>
    %171 = tpu.matmul %168, %170, %cst_106 {dimension_numbers = #tpu.dot_dimension_numbers<[1], [0], [0], [1], [0, 0, 1, 1], [], []>} : vector<1x50xbf16>, vector<50x256xbf16>, vector<1x256xf32> -> vector<1x256xf32>
    %172 = vector.extract_strided_slice %16 {offsets = [31, 0], sizes = [1, 50], strides = [1, 1]} : vector<32x50xf32> to vector<1x50xf32>
    %173 = arith.truncf %172 : vector<1x50xf32> to vector<1x50xbf16>
    %c31 = arith.constant 31 : index
    %c0_107 = arith.constant 0 : index
    %c0_108 = arith.constant 0 : index
    %174 = vector.load %arg6[%c31, %c0_107, %c0_108] : memref<32x50x256xbf16, #tpu.memory_space<vmem>>, vector<1x50x256xbf16>
    %175 = vector.shape_cast %174 : vector<1x50x256xbf16> to vector<50x256xbf16>
    %cst_109 = arith.constant dense<0.000000e+00> : vector<1x256xf32>
    %176 = tpu.matmul %173, %175, %cst_109 {dimension_numbers = #tpu.dot_dimension_numbers<[1], [0], [0], [1], [0, 0, 1, 1], [], []>} : vector<1x50xbf16>, vector<50x256xbf16>, vector<1x256xf32> -> vector<1x256xf32>
    %177 = arith.addf %21, %26 : vector<1x256xf32>
    %178 = arith.addf %31, %36 : vector<1x256xf32>
    %179 = arith.addf %41, %46 : vector<1x256xf32>
    %180 = arith.addf %51, %56 : vector<1x256xf32>
    %181 = arith.addf %61, %66 : vector<1x256xf32>
    %182 = arith.addf %71, %76 : vector<1x256xf32>
    %183 = arith.addf %81, %86 : vector<1x256xf32>
    %184 = arith.addf %91, %96 : vector<1x256xf32>
    %185 = arith.addf %101, %106 : vector<1x256xf32>
    %186 = arith.addf %111, %116 : vector<1x256xf32>
    %187 = arith.addf %121, %126 : vector<1x256xf32>
    %188 = arith.addf %131, %136 : vector<1x256xf32>
    %189 = arith.addf %141, %146 : vector<1x256xf32>
    %190 = arith.addf %151, %156 : vector<1x256xf32>
    %191 = arith.addf %161, %166 : vector<1x256xf32>
    %192 = arith.addf %171, %176 : vector<1x256xf32>
    %193 = arith.addf %177, %178 : vector<1x256xf32>
    %194 = arith.addf %179, %180 : vector<1x256xf32>
    %195 = arith.addf %181, %182 : vector<1x256xf32>
    %196 = arith.addf %183, %184 : vector<1x256xf32>
    %197 = arith.addf %185, %186 : vector<1x256xf32>
    %198 = arith.addf %187, %188 : vector<1x256xf32>
    %199 = arith.addf %189, %190 : vector<1x256xf32>
    %200 = arith.addf %191, %192 : vector<1x256xf32>
    %201 = arith.addf %193, %194 : vector<1x256xf32>
    %202 = arith.addf %195, %196 : vector<1x256xf32>
    %203 = arith.addf %197, %198 : vector<1x256xf32>
    %204 = arith.addf %199, %200 : vector<1x256xf32>
    %205 = arith.addf %201, %202 : vector<1x256xf32>
    %206 = arith.addf %203, %204 : vector<1x256xf32>
    %207 = arith.addf %205, %206 : vector<1x256xf32>
    %c0_110 = arith.constant 0 : index
    %c0_111 = arith.constant 0 : index
    %208 = vector.load %arg7[%c0_110, %c0_111] : memref<1x256xf32, #tpu.memory_space<vmem>>, vector<1x256xf32>
    %209 = arith.addf %207, %208 : vector<1x256xf32>
    %cst_112 = arith.constant 0.000000e+00 : f32
    %210 = vector.broadcast %cst_112 : f32 to vector<1x256xf32>
    %211 = arith.maximumf %209, %210 : vector<1x256xf32>
    %212 = arith.truncf %211 : vector<1x256xf32> to vector<1x256xbf16>
    %c0_113 = arith.constant 0 : index
    %c0_114 = arith.constant 0 : index
    %213 = vector.load %arg8[%c0_113, %c0_114] : memref<256x8xbf16, #tpu.memory_space<vmem>>, vector<256x8xbf16>
    %cst_115 = arith.constant dense<0.000000e+00> : vector<1x8xf32>
    %214 = tpu.matmul %212, %213, %cst_115 {dimension_numbers = #tpu.dot_dimension_numbers<[1], [0], [0], [1], [0, 0, 1, 1], [], []>} : vector<1x256xbf16>, vector<256x8xbf16>, vector<1x8xf32> -> vector<1x8xf32>
    %c0_116 = arith.constant 0 : index
    %c0_117 = arith.constant 0 : index
    %215 = vector.load %arg9[%c0_116, %c0_117] : memref<1x8xf32, #tpu.memory_space<vmem>>, vector<1x8xf32>
    %216 = arith.addf %214, %215 : vector<1x8xf32>
    %217 = math.tanh %216 : vector<1x8xf32>
    %c0_118 = arith.constant 0 : index
    %c0_119 = arith.constant 0 : index
    %c0_120 = arith.constant 0 : index
    %218 = vector.load %arg10[%c0_118, %c0_119, %c0_120] : memref<1x1x8xf32, #tpu.memory_space<vmem>>, vector<1x1x8xf32>
    %219 = vector.shape_cast %218 : vector<1x1x8xf32> to vector<1x8xf32>
    %220 = vector.shape_cast %217 : vector<1x8xf32> to vector<1x1x8xf32>
    tpu.vector_store %arg10[%c0_118, %c0_119, %c0_120], %220 {strides = array<i32>} : memref<1x1x8xf32, #tpu.memory_space<vmem>>, vector<1x1x8xf32>,
    return
  }
  func.func @transform_0(%arg0: i32) -> (i32, i32, i32) {
    %c0_i32 = arith.constant 0 : i32
    %c0_i32_0 = arith.constant 0 : i32
    %c0_i32_1 = arith.constant 0 : i32
    return %arg0, %c0_i32, %c0_i32_0 : i32, i32, i32
  }
  func.func @transform_1(%arg0: i32) -> (i32, i32) {
    %c0_i32 = arith.constant 0 : i32
    %c0_i32_0 = arith.constant 0 : i32
    %c0_i32_1 = arith.constant 0 : i32
    return %c0_i32, %c0_i32_0 : i32, i32
  }
  func.func @transform_2(%arg0: i32) -> (i32, i32) {
    %c0_i32 = arith.constant 0 : i32
    %c0_i32_0 = arith.constant 0 : i32
    %c0_i32_1 = arith.constant 0 : i32
    return %c0_i32, %c0_i32_0 : i32, i32
  }
  func.func @transform_3(%arg0: i32) -> (i32, i32) {
    %c0_i32 = arith.constant 0 : i32
    %c0_i32_0 = arith.constant 0 : i32
    %c0_i32_1 = arith.constant 0 : i32
    return %c0_i32, %c0_i32_0 : i32, i32
  }
  func.func @transform_4(%arg0: i32) -> (i32, i32) {
    %c0_i32 = arith.constant 0 : i32
    %c0_i32_0 = arith.constant 0 : i32
    %c0_i32_1 = arith.constant 0 : i32
    return %c0_i32, %c0_i32_0 : i32, i32
  }
  func.func @transform_5(%arg0: i32) -> (i32, i32, i32) {
    %c0_i32 = arith.constant 0 : i32
    %c0_i32_0 = arith.constant 0 : i32
    %c0_i32_1 = arith.constant 0 : i32
    %c0_i32_2 = arith.constant 0 : i32
    return %c0_i32, %c0_i32_0, %c0_i32_1 : i32, i32, i32
  }
  func.func @transform_6(%arg0: i32) -> (i32, i32) {
    %c0_i32 = arith.constant 0 : i32
    %c0_i32_0 = arith.constant 0 : i32
    %c0_i32_1 = arith.constant 0 : i32
    return %c0_i32, %c0_i32_0 : i32, i32
  }
  func.func @transform_7(%arg0: i32) -> (i32, i32) {
    %c0_i32 = arith.constant 0 : i32
    %c0_i32_0 = arith.constant 0 : i32
    %c0_i32_1 = arith.constant 0 : i32
    return %c0_i32, %c0_i32_0 : i32, i32
  }
  func.func @transform_8(%arg0: i32) -> (i32, i32) {
    %c0_i32 = arith.constant 0 : i32
    %c0_i32_0 = arith.constant 0 : i32
    %c0_i32_1 = arith.constant 0 : i32
    return %c0_i32, %c0_i32_0 : i32, i32
  }
  func.func @transform_9(%arg0: i32) -> (i32, i32, i32) {
    %c0_i32 = arith.constant 0 : i32
    %c0_i32_0 = arith.constant 0 : i32
    %c0_i32_1 = arith.constant 0 : i32
    return %arg0, %c0_i32, %c0_i32_0 : i32, i32, i32
  }
}

</mosaic_0001>

<llo_original>
// kernel: tpu_custom_call.1
$region0: #{tpu_custom_call.1}
  #allocation0 [shape = 'u32[]', space=smem, size = 0x4, offset = 0x4, fixed_abs, tag = 'smem constant byte address 0x4 - core index']
  #allocation1 [shape = 'u32[144,128]{1,0:T(1,128)}', space=vmem, size = 0x12000, scoped, tag = 'internal scratch']
  %s0 = inlined_call_operand.vmem [shape: bf16[1,32,8], index: 0, kind: input, shape index: {}]
  %s1 = inlined_call_operand.vmem [shape: bf16[8,900], index: 1, kind: input, shape index: {}]
  %s2 = inlined_call_operand.vmem [shape: f32[1,900], index: 2, kind: input, shape index: {}]
  %s3 = inlined_call_operand.vmem [shape: bf16[900,50], index: 3, kind: input, shape index: {}]
  %s4 = inlined_call_operand.vmem [shape: f32[1,50], index: 4, kind: input, shape index: {}]
  %s5 = inlined_call_operand.vmem [shape: bf16[32,50,256], index: 5, kind: input, shape index: {}]
  %s6 = inlined_call_operand.vmem [shape: f32[1,256], index: 6, kind: input, shape index: {}]
  %s7 = inlined_call_operand.vmem [shape: bf16[256,8], index: 7, kind: input, shape index: {}]
  %s8 = inlined_call_operand.vmem [shape: f32[1,8], index: 8, kind: input, shape index: {}]
  %s9 = inlined_call_operand.hbm [shape: f32[1,1,8], index: 9, kind: output, shape index: {}]
  %s10 = sld [smem:[#allocation0]]
  $region46: #{tpu_custom_call.1} parent=0
    _
  %s12 = ssub.s32 1, %s10
  %s13 = scalar_select 0, %s12, %s10
  $region1: #{tpu_custom_call.1} parent=0
    #allocation2 [shape = 'u8[512]{0}', space=vmem, size = 0x400, scoped, tag = 'output window, operand 0, single buffered']
    #allocation3 [shape = 's32[1]{0}', space=sflag, size = 0x4, scoped, tag = 'scoped memory for tpu_custom_call.1']
    %14 = vsyncpa [#allocation3], 0
    // Predicated region
    $region2: #{tpu_custom_call.1} parent=1 // pred_check
      _
    $region3: #{tpu_custom_call.1} parent=1 // pred_check_branch
      %16 = sbr.rel (0) target = $region5
    $region4: #{tpu_custom_call.1} parent=1 // pred_region
      _
    $region5: #{tpu_custom_call.1} parent=1 // pred_fallthru
      _
    // Predicated region
    $region6: #{tpu_custom_call.1} parent=1 // pred_check
      _
    $region7: #{tpu_custom_call.1} parent=1 // pred_check_branch
      %18 = sbr.rel (0) target = $region9
    $region8: #{tpu_custom_call.1} parent=1 // pred_region
      _
    $region9: #{tpu_custom_call.1} parent=1 // pred_fallthru
      _
    // Predicated region
    $region10: #{tpu_custom_call.1} parent=1 // pred_check
      _
    $region11: #{tpu_custom_call.1} parent=1 // pred_check_branch
      %20 = sbr.rel (0) target = $region13
    $region12: #{tpu_custom_call.1} parent=1 // pred_region
      _
    $region13: #{tpu_custom_call.1} parent=1 // pred_fallthru
      _
    // Predicated region
    $region14: #{tpu_custom_call.1} parent=1 // pred_check
      _
    $region15: #{tpu_custom_call.1} parent=1 // pred_check_branch
      %22 = sbr.rel (0) target = $region17
    $region16: #{tpu_custom_call.1} parent=1 // pred_region
      _
    $region17: #{tpu_custom_call.1} parent=1 // pred_fallthru
      _
    // Predicated region
    $region18: #{tpu_custom_call.1} parent=1 // pred_check
      _
    $region19: #{tpu_custom_call.1} parent=1 // pred_check_branch
      %24 = sbr.rel (0) target = $region21
    $region20: #{tpu_custom_call.1} parent=1 // pred_region
      _
    $region21: #{tpu_custom_call.1} parent=1 // pred_fallthru
      _
    // Predicated region
    $region22: #{tpu_custom_call.1} parent=1 // pred_check
      _
    $region23: #{tpu_custom_call.1} parent=1 // pred_check_branch
      %26 = sbr.rel (0) target = $region25
    $region24: #{tpu_custom_call.1} parent=1 // pred_region
      _
    $region25: #{tpu_custom_call.1} parent=1 // pred_fallthru
      _
    // Predicated region
    $region26: #{tpu_custom_call.1} parent=1 // pred_check
      _
    $region27: #{tpu_custom_call.1} parent=1 // pred_check_branch
      %28 = sbr.rel (0) target = $region29
    $region28: #{tpu_custom_call.1} parent=1 // pred_region
      _
    $region29: #{tpu_custom_call.1} parent=1 // pred_fallthru
      _
    // Predicated region
    $region30: #{tpu_custom_call.1} parent=1 // pred_check
      _
    $region31: #{tpu_custom_call.1} parent=1 // pred_check_branch
      %30 = sbr.rel (0) target = $region33
    $region32: #{tpu_custom_call.1} parent=1 // pred_region
      _
    $region33: #{tpu_custom_call.1} parent=1 // pred_fallthru
      _
    // Predicated region
    $region34: #{tpu_custom_call.1} parent=1 // pred_check
      _
    $region35: #{tpu_custom_call.1} parent=1 // pred_check_branch
      %32 = sbr.rel (0) target = $region37
    $region36: #{tpu_custom_call.1} parent=1 // pred_region
      _
    $region37: #{tpu_custom_call.1} parent=1 // pred_fallthru
      _
    %v34 = vld [vmem:[%s0] sm:$0xf]
    %v35 = vld [vmem:[%s0 + $0x4] sm:$0xf]
    %v36 = vld [vmem:[%s0 + $0x8] sm:$0xf]
    %v37 = vld [vmem:[%s0 + $0xc] sm:$0xf]
    %v38 = vld [vmem:[%s1] sm:$0xff]
    %v39 = vld [vmem:[%s1 + $0x8] sm:$0xff]
    %v40 = vld [vmem:[%s1 + $0x10] sm:$0xff]
    %v41 = vld [vmem:[%s1 + $0x18] sm:$0xff]
    %v42 = vld [vmem:[%s2] sm:$0xff]
    %v44 = vlaneseq
    %v45 = vshrl.u32 %v44, 7
    %v46 = vsub.s32 0, %v45
    %v47 = vrot.slane %v42, %v46
    %v48 = vlaneseq
    %v49 = vshrl.u32 %v48, 7
    %v50 = vsub.s32 1, %v49
    %v51 = vrot.slane %v42, %v50
    %v52 = vlaneseq
    %v53 = vshrl.u32 %v52, 7
    %v54 = vsub.s32 2, %v53
    %v55 = vrot.slane %v42, %v54
    %v56 = vlaneseq
    %v57 = vshrl.u32 %v56, 7
    %v58 = vsub.s32 3, %v57
    %v59 = vrot.slane %v42, %v58
    %v60 = vlaneseq
    %v61 = vshrl.u32 %v60, 7
    %v62 = vsub.s32 4, %v61
    %v63 = vrot.slane %v42, %v62
    %v64 = vlaneseq
    %v65 = vshrl.u32 %v64, 7
    %v66 = vsub.s32 5, %v65
    %v67 = vrot.slane %v42, %v66
    %v68 = vlaneseq
    %v69 = vshrl.u32 %v68, 7
    %v70 = vsub.s32 6, %v69
    %v71 = vrot.slane %v42, %v70
    %v72 = vlaneseq
    %v73 = vshrl.u32 %v72, 7
    %v74 = vsub.s32 7, %v73
    %v75 = vrot.slane %v42, %v74
    %v88 = vunpack.c.l.b16 %v34
    %v89 = vunpack.c.l.b16 %v35
    %v90 = vunpack.c.l.b16 %v36
    %v91 = vunpack.c.l.b16 %v37
    %v92 = vpack.c.b16 %v89, %v88
    %v93 = vpack.c.b16 %v91, %v90
    %v98 = vunpack.c.l.b16 %v38
    %v99 = vunpack.c.h.b16 %v38
    %v100 = vunpack.c.l.b16 %v39
    %v101 = vunpack.c.h.b16 %v39
    %v102 = vunpack.c.l.b16 %v40
    %v103 = vunpack.c.h.b16 %v40
    %v104 = vunpack.c.l.b16 %v41
    %v105 = vunpack.c.h.b16 %v41
    %v106 = vpack.c.b16 %v98, %v98
    %v107 = vpack.c.b16 %v99, %v99
    %v108 = vpack.c.b16 %v100, %v100
    %v109 = vpack.c.b16 %v101, %v101
    %v110 = vpack.c.b16 %v102, %v102
    %v111 = vpack.c.b16 %v103, %v103
    %v112 = vpack.c.b16 %v104, %v104
    %v113 = vpack.c.b16 %v105, %v105
    %vm114 = vcmask 64512
    %v116 = vsel %vm114, %v92, 0
    %v119 = vsel %vm114, %v93, 0
    %vm121 = vcmask 1043456
    %v123 = vsel %vm121, %v106, 0
    %v126 = vsel %vm121, %v107, 0
    %v129 = vsel %vm121, %v108, 0
    %v132 = vsel %vm121, %v109, 0
    %v135 = vsel %vm121, %v110, 0
    %v138 = vsel %vm121, %v111, 0
    %v141 = vsel %vm121, %v112, 0
    %v144 = vsel %vm121, %v113, 0
    %146 = vmatprep.subr.bf16.mxu0 %v126
    %147 = vmatpush1.bf16.msra.mxu0 %v123
    %148 = vmatprep.subr.bf16.mxu0 0
    %149 = vmatpush1.bf16.msra.mxu0 0
    %150 = vmatprep.subr.bf16.mxu0 0
    %151 = vmatpush1.bf16.msra.mxu0 0
    %152 = vmatprep.subr.bf16.mxu0 0
    %153 = vmatpush1.bf16.msra.mxu0 0
    %154 = vmatprep.subr.bf16.mxu0 0
    %155 = vmatpush1.bf16.msra.mxu0 0
    %156 = vmatprep.subr.bf16.mxu0 0
    %157 = vmatpush1.bf16.msra.mxu0 0
    %158 = vmatprep.subr.bf16.mxu0 0
    %159 = vmatpush1.bf16.msra.mxu0 0
    %160 = vmatprep.subr.bf16.mxu0 0
    %161 = vmatpush1.bf16.msra.mxu0 0
    %162 = vmatprep.subr.bf16.mxu0 0
    %163 = vmatpush1.bf16.msra.mxu0 0
    %164 = vmatprep.subr.bf16.mxu0 0
    %165 = vmatpush1.bf16.msra.mxu0 0
    %166 = vmatprep.subr.bf16.mxu0 0
    %167 = vmatpush1.bf16.msra.mxu0 0
    %168 = vmatprep.subr.bf16.mxu0 0
    %169 = vmatpush1.bf16.msra.mxu0 0
    %170 = vmatprep.subr.bf16.mxu0 0
    %171 = vmatpush1.bf16.msra.mxu0 0
    %172 = vmatprep.subr.bf16.mxu0 0
    %173 = vmatpush1.bf16.msra.mxu0 0
    %174 = vmatprep.subr.bf16.mxu0 0
    %175 = vmatpush1.bf16.msra.mxu0 0
    %176 = vmatprep.subr.bf16.mxu0 0
    %177 = vmatpush1.bf16.msra.mxu0 0
    %178 = vmatprep.mubr.bf16.mxu0 0
    %179 = vmatmul.mubr.bf16.gmra.mrb[0].mxu0 %v116
    %v180 = vpop.f32.mrb[0].mxu0
    %v181 = vadd.f32 %v47, %v180
    %v182 = vpop.f32.mrb[0].mxu0
    %v183 = vadd.f32 %v51, %v182
    %v184 = vpop.f32.mrb[0].mxu0
    %v185 = vadd.f32 %v47, %v184
    %v186 = vpop.f32.mrb[0].mxu0
    %v187 = vadd.f32 %v51, %v186
    %188 = vmatprep.mubr.bf16.mxu0 0
    %189 = vmatmul.mubr.bf16.gmra.mrb[0].mxu0 %v119
    %v190 = vpop.f32.mrb[0].mxu0
    %v191 = vadd.f32 %v47, %v190
    %v192 = vpop.f32.mrb[0].mxu0
    %v193 = vadd.f32 %v51, %v192
    %v194 = vpop.f32.mrb[0].mxu0
    %v195 = vadd.f32 %v47, %v194
    %v196 = vpop.f32.mrb[0].mxu0
    %v197 = vadd.f32 %v51, %v196
    %198 = vdwg.mxu0
    %199 = vmatprep.subr.bf16.mxu0 %v132
    %200 = vmatpush1.bf16.msra.mxu0 %v129
    %201 = vmatprep.subr.bf16.mxu0 0
    %202 = vmatpush1.bf16.msra.mxu0 0
    %203 = vmatprep.subr.bf16.mxu0 0
    %204 = vmatpush1.bf16.msra.mxu0 0
    %205 = vmatprep.subr.bf16.mxu0 0
    %206 = vmatpush1.bf16.msra.mxu0 0
    %207 = vmatprep.subr.bf16.mxu0 0
    %208 = vmatpush1.bf16.msra.mxu0 0
    %209 = vmatprep.subr.bf16.mxu0 0
    %210 = vmatpush1.bf16.msra.mxu0 0
    %211 = vmatprep.subr.bf16.mxu0 0
    %212 = vmatpush1.bf16.msra.mxu0 0
    %213 = vmatprep.subr.bf16.mxu0 0
    %214 = vmatpush1.bf16.msra.mxu0 0
    %215 = vmatprep.subr.bf16.mxu0 0
    %216 = vmatpush1.bf16.msra.mxu0 0
    %217 = vmatprep.subr.bf16.mxu0 0
    %218 = vmatpush1.bf16.msra.mxu0 0
    %219 = vmatprep.subr.bf16.mxu0 0
    %220 = vmatpush1.bf16.msra.mxu0 0
    %221 = vmatprep.subr.bf16.mxu0 0
    %222 = vmatpush1.bf16.msra.mxu0 0
    %223 = vmatprep.subr.bf16.mxu0 0
    %224 = vmatpush1.bf16.msra.mxu0 0
    %225 = vmatprep.subr.bf16.mxu0 0
    %226 = vmatpush1.bf16.msra.mxu0 0
    %227 = vmatprep.subr.bf16.mxu0 0
    %228 = vmatpush1.bf16.msra.mxu0 0
    %229 = vmatprep.subr.bf16.mxu0 0
    %230 = vmatpush1.bf16.msra.mxu0 0
    %231 = vmatprep.mubr.bf16.mxu0 0
    %232 = vmatmul.mubr.bf16.gmra.mrb[0].mxu0 %v116
    %v233 = vpop.f32.mrb[0].mxu0
    %v234 = vadd.f32 %v55, %v233
    %v235 = vpop.f32.mrb[0].mxu0
    %v236 = vadd.f32 %v59, %v235
    %v237 = vpop.f32.mrb[0].mxu0
    %v238 = vadd.f32 %v55, %v237
    %v239 = vpop.f32.mrb[0].mxu0
    %v240 = vadd.f32 %v59, %v239
    %241 = vmatprep.mubr.bf16.mxu0 0
    %242 = vmatmul.mubr.bf16.gmra.mrb[0].mxu0 %v119
    %v243 = vpop.f32.mrb[0].mxu0
    %v244 = vadd.f32 %v55, %v243
    %v245 = vpop.f32.mrb[0].mxu0
    %v246 = vadd.f32 %v59, %v245
    %v247 = vpop.f32.mrb[0].mxu0
    %v248 = vadd.f32 %v55, %v247
    %v249 = vpop.f32.mrb[0].mxu0
    %v250 = vadd.f32 %v59, %v249
    %251 = vdwg.mxu0
    %252 = vmatprep.subr.bf16.mxu0 %v138
    %253 = vmatpush1.bf16.msra.mxu0 %v135
    %254 = vmatprep.subr.bf16.mxu0 0
    %255 = vmatpush1.bf16.msra.mxu0 0
    %256 = vmatprep.subr.bf16.mxu0 0
    %257 = vmatpush1.bf16.msra.mxu0 0
    %258 = vmatprep.subr.bf16.mxu0 0
    %259 = vmatpush1.bf16.msra.mxu0 0
    %260 = vmatprep.subr.bf16.mxu0 0
    %261 = vmatpush1.bf16.msra.mxu0 0
    %262 = vmatprep.subr.bf16.mxu0 0
    %263 = vmatpush1.bf16.msra.mxu0 0
    %264 = vmatprep.subr.bf16.mxu0 0
    %265 = vmatpush1.bf16.msra.mxu0 0
    %266 = vmatprep.subr.bf16.mxu0 0
    %267 = vmatpush1.bf16.msra.mxu0 0
    %268 = vmatprep.subr.bf16.mxu0 0
    %269 = vmatpush1.bf16.msra.mxu0 0
    %270 = vmatprep.subr.bf16.mxu0 0
    %271 = vmatpush1.bf16.msra.mxu0 0
    %272 = vmatprep.subr.bf16.mxu0 0
    %273 = vmatpush1.bf16.msra.mxu0 0
    %274 = vmatprep.subr.bf16.mxu0 0
    %275 = vmatpush1.bf16.msra.mxu0 0
    %276 = vmatprep.subr.bf16.mxu0 0
    %277 = vmatpush1.bf16.msra.mxu0 0
    %278 = vmatprep.subr.bf16.mxu0 0
    %279 = vmatpush1.bf16.msra.mxu0 0
    %280 = vmatprep.subr.bf16.mxu0 0
    %281 = vmatpush1.bf16.msra.mxu0 0
    %282 = vmatprep.subr.bf16.mxu0 0
    %283 = vmatpush1.bf16.msra.mxu0 0
    %284 = vmatprep.mubr.bf16.mxu0 0
    %285 = vmatmul.mubr.bf16.gmra.mrb[0].mxu0 %v116
    %v286 = vpop.f32.mrb[0].mxu0
    %v287 = vadd.f32 %v63, %v286
    %v288 = vpop.f32.mrb[0].mxu0
    %v289 = vadd.f32 %v67, %v288
    %v290 = vpop.f32.mrb[0].mxu0
    %v291 = vadd.f32 %v63, %v290
    %v292 = vpop.f32.mrb[0].mxu0
    %v293 = vadd.f32 %v67, %v292
    %294 = vmatprep.mubr.bf16.mxu0 0
    %295 = vmatmul.mubr.bf16.gmra.mrb[0].mxu0 %v119
    %v296 = vpop.f32.mrb[0].mxu0
    %v297 = vadd.f32 %v63, %v296
    %v298 = vpop.f32.mrb[0].mxu0
    %v299 = vadd.f32 %v67, %v298
    %v300 = vpop.f32.mrb[0].mxu0
    %v301 = vadd.f32 %v63, %v300
    %v302 = vpop.f32.mrb[0].mxu0
    %v303 = vadd.f32 %v67, %v302
    %304 = vdwg.mxu0
    %305 = vmatprep.subr.bf16.mxu0 %v144
    %306 = vmatpush1.bf16.msra.mxu0 %v141
    %307 = vmatprep.subr.bf16.mxu0 0
    %308 = vmatpush1.bf16.msra.mxu0 0
    %309 = vmatprep.subr.bf16.mxu0 0
    %310 = vmatpush1.bf16.msra.mxu0 0
    %311 = vmatprep.subr.bf16.mxu0 0
    %312 = vmatpush1.bf16.msra.mxu0 0
    %313 = vmatprep.subr.bf16.mxu0 0
    %314 = vmatpush1.bf16.msra.mxu0 0
    %315 = vmatprep.subr.bf16.mxu0 0
    %316 = vmatpush1.bf16.msra.mxu0 0
    %317 = vmatprep.subr.bf16.mxu0 0
    %318 = vmatpush1.bf16.msra.mxu0 0
    %319 = vmatprep.subr.bf16.mxu0 0
    %320 = vmatpush1.bf16.msra.mxu0 0
    %321 = vmatprep.subr.bf16.mxu0 0
    %322 = vmatpush1.bf16.msra.mxu0 0
    %323 = vmatprep.subr.bf16.mxu0 0
    %324 = vmatpush1.bf16.msra.mxu0 0
    %325 = vmatprep.subr.bf16.mxu0 0
    %326 = vmatpush1.bf16.msra.mxu0 0
    %327 = vmatprep.subr.bf16.mxu0 0
    %328 = vmatpush1.bf16.msra.mxu0 0
    %329 = vmatprep.subr.bf16.mxu0 0
    %330 = vmatpush1.bf16.msra.mxu0 0
    %331 = vmatprep.subr.bf16.mxu0 0
    %332 = vmatpush1.bf16.msra.mxu0 0
    %333 = vmatprep.subr.bf16.mxu0 0
    %334 = vmatpush1.bf16.msra.mxu0 0
    %335 = vmatprep.subr.bf16.mxu0 0
    %336 = vmatpush1.bf16.msra.mxu0 0
    %337 = vmatprep.mubr.bf16.mxu0 0
    %338 = vmatmul.mubr.bf16.gmra.mrb[0].mxu0 %v116
    %v339 = vpop.f32.mrb[0].mxu0
    %v340 = vadd.f32 %v71, %v339
    %v341 = vpop.f32.mrb[0].mxu0
    %v342 = vadd.f32 %v75, %v341
    %v343 = vpop.f32.mrb[0].mxu0
    %v344 = vadd.f32 %v71, %v343
    %v345 = vpop.f32.mrb[0].mxu0
    %v346 = vadd.f32 %v75, %v345
    %347 = vmatprep.mubr.bf16.mxu0 0
    %348 = vmatmul.mubr.bf16.gmra.mrb[0].mxu0 %v119
    %v349 = vpop.f32.mrb[0].mxu0
    %v350 = vadd.f32 %v71, %v349
    %v351 = vpop.f32.mrb[0].mxu0
    %v352 = vadd.f32 %v75, %v351
    %v353 = vpop.f32.mrb[0].mxu0
    %v354 = vadd.f32 %v71, %v353
    %v355 = vpop.f32.mrb[0].mxu0
    %v356 = vadd.f32 %v75, %v355
    %357 = vdwg.mxu0
    %v358 = vmax.f32 %v181, 0.0
    %v359 = vmax.f32 %v183, 0.0
    %v360 = vmax.f32 %v234, 0.0
    %v361 = vmax.f32 %v236, 0.0
    %v362 = vmax.f32 %v287, 0.0
    %v363 = vmax.f32 %v289, 0.0
    %v364 = vmax.f32 %v340, 0.0
    %v365 = vmax.f32 %v342, 0.0
    %v366 = vmax.f32 %v185, 0.0
    %v367 = vmax.f32 %v187, 0.0
    %v368 = vmax.f32 %v238, 0.0
    %v369 = vmax.f32 %v240, 0.0
    %v370 = vmax.f32 %v291, 0.0
    %v371 = vmax.f32 %v293, 0.0
    %v372 = vmax.f32 %v344, 0.0
    %v373 = vmax.f32 %v346, 0.0
    %v374 = vmax.f32 %v191, 0.0
    %v375 = vmax.f32 %v193, 0.0
    %v376 = vmax.f32 %v244, 0.0
    %v377 = vmax.f32 %v246, 0.0
    %v378 = vmax.f32 %v297, 0.0
    %v379 = vmax.f32 %v299, 0.0
    %v380 = vmax.f32 %v350, 0.0
    %v381 = vmax.f32 %v352, 0.0
    %v382 = vmax.f32 %v195, 0.0
    %v383 = vmax.f32 %v197, 0.0
    %v384 = vmax.f32 %v248, 0.0
    %v385 = vmax.f32 %v250, 0.0
    %v386 = vmax.f32 %v301, 0.0
    %v387 = vmax.f32 %v303, 0.0
    %v388 = vmax.f32 %v354, 0.0
    %v389 = vmax.f32 %v356, 0.0
    %v390 = vpack.c.bf16 %v366, %v358
    %v391 = vpack.c.bf16 %v367, %v359
    %v392 = vpack.c.bf16 %v368, %v360
    %v393 = vpack.c.bf16 %v369, %v361
    %v394 = vpack.c.bf16 %v370, %v362
    %v395 = vpack.c.bf16 %v371, %v363
    %v396 = vpack.c.bf16 %v372, %v364
    %v397 = vpack.c.bf16 %v373, %v365
    %v398 = vpack.c.bf16 %v382, %v374
    %v399 = vpack.c.bf16 %v383, %v375
    %v400 = vpack.c.bf16 %v384, %v376
    %v401 = vpack.c.bf16 %v385, %v377
    %v402 = vpack.c.bf16 %v386, %v378
    %v403 = vpack.c.bf16 %v387, %v379
    %v404 = vpack.c.bf16 %v388, %v380
    %v405 = vpack.c.bf16 %v389, %v381
    %v406 = vld [vmem:[%s3] sm:$0xf]
    %v407 = vld [vmem:[%s3 + $0x4] sm:$0xf]
    %v408 = vld [vmem:[%s3 + $0x8] sm:$0xf]
    %v409 = vld [vmem:[%s3 + $0xc] sm:$0xf]
    %v410 = vld [vmem:[%s3 + $0x10] sm:$0xf]
    %v411 = vld [vmem:[%s3 + $0x14] sm:$0xf]
    %v412 = vld [vmem:[%s3 + $0x18] sm:$0xf]
    %v413 = vld [vmem:[%s3 + $0x1c] sm:$0xf]
    %v414 = vld [vmem:[%s3 + $0x20] sm:$0xf]
    %v415 = vld [vmem:[%s3 + $0x24] sm:$0xf]
    %v416 = vld [vmem:[%s3 + $0x28] sm:$0xf]
    %v417 = vld [vmem:[%s3 + $0x2c] sm:$0xf]
    %v418 = vld [vmem:[%s3 + $0x30] sm:$0xf]
    %v419 = vld [vmem:[%s3 + $0x34] sm:$0xf]
    %v420 = vld [vmem:[%s3 + $0x38] sm:$0xf]
    %v421 = vld [vmem:[%s3 + $0x3c] sm:$0xf]
    %v422 = vld [vmem:[%s3 + $0x40] sm:$0xf]
    %v423 = vld [vmem:[%s3 + $0x44] sm:$0xf]
    %v424 = vld [vmem:[%s3 + $0x48] sm:$0xf]
    %v425 = vld [vmem:[%s3 + $0x4c] sm:$0xf]
    %v426 = vld [vmem:[%s3 + $0x50] sm:$0xf]
    %v427 = vld [vmem:[%s3 + $0x54] sm:$0xf]
    %v428 = vld [vmem:[%s3 + $0x58] sm:$0xf]
    %v429 = vld [vmem:[%s3 + $0x5c] sm:$0xf]
    %v430 = vld [vmem:[%s3 + $0x60] sm:$0xf]
    %v431 = vld [vmem:[%s3 + $0x64] sm:$0xf]
    %v432 = vld [vmem:[%s3 + $0x68] sm:$0xf]
    %v433 = vld [vmem:[%s3 + $0x6c] sm:$0xf]
    %v434 = vld [vmem:[%s3 + $0x70] sm:$0xf]
    %v435 = vld [vmem:[%s3 + $0x74] sm:$0xf]
    %v436 = vld [vmem:[%s3 + $0x78] sm:$0xf]
    %v437 = vld [vmem:[%s3 + $0x7c] sm:$0xf]
    %v438 = vld [vmem:[%s3 + $0x80] sm:$0xf]
    %v439 = vld [vmem:[%s3 + $0x84] sm:$0xf]
    %v440 = vld [vmem:[%s3 + $0x88] sm:$0xf]
    %v441 = vld [vmem:[%s3 + $0x8c] sm:$0xf]
    %v442 = vld [vmem:[%s3 + $0x90] sm:$0xf]
    %v443 = vld [vmem:[%s3 + $0x94] sm:$0xf]
    %v444 = vld [vmem:[%s3 + $0x98] sm:$0xf]
    %v445 = vld [vmem:[%s3 + $0x9c] sm:$0xf]
    %v446 = vld [vmem:[%s3 + $0xa0] sm:$0xf]
    %v447 = vld [vmem:[%s3 + $0xa4] sm:$0xf]
    %v448 = vld [vmem:[%s3 + $0xa8] sm:$0xf]
    %v449 = vld [vmem:[%s3 + $0xac] sm:$0xf]
    %v450 = vld [vmem:[%s3 + $0xb0] sm:$0xf]
    %v451 = vld [vmem:[%s3 + $0xb4] sm:$0xf]
    %v452 = vld [vmem:[%s3 + $0xb8] sm:$0xf]
    %v453 = vld [vmem:[%s3 + $0xbc] sm:$0xf]
    %v454 = vld [vmem:[%s3 + $0xc0] sm:$0xf]
    %v455 = vld [vmem:[%s3 + $0xc4] sm:$0xf]
    %v456 = vld [vmem:[%s3 + $0xc8] sm:$0xf]
    %v457 = vld [vmem:[%s3 + $0xcc] sm:$0xf]
    %v458 = vld [vmem:[%s3 + $0xd0] sm:$0xf]
    %v459 = vld [vmem:[%s3 + $0xd4] sm:$0xf]
    %v460 = vld [vmem:[%s3 + $0xd8] sm:$0xf]
    %v461 = vld [vmem:[%s3 + $0xdc] sm:$0xf]
    %v462 = vld [vmem:[%s3 + $0xe0] sm:$0xf]
    %v463 = vld [vmem:[%s3 + $0xe4] sm:$0xf]
    %v464 = vld [vmem:[%s3 + $0xe8] sm:$0xf]
    %v465 = vld [vmem:[%s3 + $0xec] sm:$0xf]
    %v466 = vld [vmem:[%s3 + $0xf0] sm:$0xf]
    %v467 = vld [vmem:[%s3 + $0xf4] sm:$0xf]
    %v468 = vld [vmem:[%s3 + $0xf8] sm:$0xf]
    %v469 = vld [vmem:[%s3 + $0xfc] sm:$0xf]
    %v470 = vld [vmem:[%s3 + $0x100] sm:$0xf]
    %v471 = vld [vmem:[%s3 + $0x104] sm:$0xf]
    %v472 = vld [vmem:[%s3 + $0x108] sm:$0xf]
    %v473 = vld [vmem:[%s3 + $0x10c] sm:$0xf]
    %v474 = vld [vmem:[%s3 + $0x110] sm:$0xf]
    %v475 = vld [vmem:[%s3 + $0x114] sm:$0xf]
    %v476 = vld [vmem:[%s3 + $0x118] sm:$0xf]
    %v477 = vld [vmem:[%s3 + $0x11c] sm:$0xf]
    %v478 = vld [vmem:[%s3 + $0x120] sm:$0xf]
    %v479 = vld [vmem:[%s3 + $0x124] sm:$0xf]
    %v480 = vld [vmem:[%s3 + $0x128] sm:$0xf]
    %v481 = vld [vmem:[%s3 + $0x12c] sm:$0xf]
    %v482 = vld [vmem:[%s3 + $0x130] sm:$0xf]
    %v483 = vld [vmem:[%s3 + $0x134] sm:$0xf]
    %v484 = vld [vmem:[%s3 + $0x138] sm:$0xf]
    %v485 = vld [vmem:[%s3 + $0x13c] sm:$0xf]
    %v486 = vld [vmem:[%s3 + $0x140] sm:$0xf]
    %v487 = vld [vmem:[%s3 + $0x144] sm:$0xf]
    %v488 = vld [vmem:[%s3 + $0x148] sm:$0xf]
    %v489 = vld [vmem:[%s3 + $0x14c] sm:$0xf]
    %v490 = vld [vmem:[%s3 + $0x150] sm:$0xf]
    %v491 = vld [vmem:[%s3 + $0x154] sm:$0xf]
    %v492 = vld [vmem:[%s3 + $0x158] sm:$0xf]
    %v493 = vld [vmem:[%s3 + $0x15c] sm:$0xf]
    %v494 = vld [vmem:[%s3 + $0x160] sm:$0xf]
    %v495 = vld [vmem:[%s3 + $0x164] sm:$0xf]
    %v496 = vld [vmem:[%s3 + $0x168] sm:$0xf]
    %v497 = vld [vmem:[%s3 + $0x16c] sm:$0xf]
    %v498 = vld [vmem:[%s3 + $0x170] sm:$0xf]
    %v499 = vld [vmem:[%s3 + $0x174] sm:$0xf]
    %v500 = vld [vmem:[%s3 + $0x178] sm:$0xf]
    %v501 = vld [vmem:[%s3 + $0x17c] sm:$0xf]
    %v502 = vld [vmem:[%s3 + $0x180] sm:$0xf]
    %v503 = vld [vmem:[%s3 + $0x184] sm:$0xf]
    %v504 = vld [vmem:[%s3 + $0x188] sm:$0xf]
    %v505 = vld [vmem:[%s3 + $0x18c] sm:$0xf]
    %v506 = vld [vmem:[%s3 + $0x190] sm:$0xf]
    %v507 = vld [vmem:[%s3 + $0x194] sm:$0xf]
    %v508 = vld [vmem:[%s3 + $0x198] sm:$0xf]
    %v509 = vld [vmem:[%s3 + $0x19c] sm:$0xf]
    %v510 = vld [vmem:[%s3 + $0x1a0] sm:$0xf]
    %v511 = vld [vmem:[%s3 + $0x1a4] sm:$0xf]
    %v512 = vld [vmem:[%s3 + $0x1a8] sm:$0xf]
    %v513 = vld [vmem:[%s3 + $0x1ac] sm:$0xf]
    %v514 = vld [vmem:[%s3 + $0x1b0] sm:$0xf]
    %v515 = vld [vmem:[%s3 + $0x1b4] sm:$0xf]
    %v516 = vld [vmem:[%s3 + $0x1b8] sm:$0xf]
    %v517 = vld [vmem:[%s3 + $0x1bc] sm:$0xf]
    %v518 = vld [vmem:[%s3 + $0x1c0] sm:$0x3]
    %v519 = vld [vmem:[%s4] sm:$0x1]
    %v521 = vlaneseq
    %v522 = vshrl.u32 %v521, 7
    %v523 = vsub.s32 0, %v522
    %v524 = vrot.slane %v519, %v523
    %v639 = vunpack.c.l.b16 %v406
    %v640 = vunpack.c.l.b16 %v407
    %v641 = vunpack.c.l.b16 %v408
    %v642 = vunpack.c.l.b16 %v409
    %v643 = vunpack.c.l.b16 %v410
    %v644 = vunpack.c.l.b16 %v411
    %v645 = vunpack.c.l.b16 %v412
    %v646 = vunpack.c.l.b16 %v413
    %v647 = vunpack.c.l.b16 %v414
    %v648 = vunpack.c.l.b16 %v415
    %v649 = vunpack.c.l.b16 %v416
    %v650 = vunpack.c.l.b16 %v417
    %v651 = vunpack.c.l.b16 %v418
    %v652 = vunpack.c.l.b16 %v419
    %v653 = vunpack.c.l.b16 %v420
    %v654 = vunpack.c.l.b16 %v421
    %v655 = vunpack.c.l.b16 %v422
    %v656 = vunpack.c.l.b16 %v423
    %v657 = vunpack.c.l.b16 %v424
    %v658 = vunpack.c.l.b16 %v425
    %v659 = vunpack.c.l.b16 %v426
    %v660 = vunpack.c.l.b16 %v427
    %v661 = vunpack.c.l.b16 %v428
    %v662 = vunpack.c.l.b16 %v429
    %v663 = vunpack.c.l.b16 %v430
    %v664 = vunpack.c.l.b16 %v431
    %v665 = vunpack.c.l.b16 %v432
    %v666 = vunpack.c.l.b16 %v433
    %v667 = vunpack.c.l.b16 %v434
    %v668 = vunpack.c.l.b16 %v435
    %v669 = vunpack.c.l.b16 %v436
    %v670 = vunpack.c.l.b16 %v437
    %v671 = vunpack.c.l.b16 %v438
    %v672 = vunpack.c.l.b16 %v439
    %v673 = vunpack.c.l.b16 %v440
    %v674 = vunpack.c.l.b16 %v441
    %v675 = vunpack.c.l.b16 %v442
    %v676 = vunpack.c.l.b16 %v443
    %v677 = vunpack.c.l.b16 %v444
    %v678 = vunpack.c.l.b16 %v445
    %v679 = vunpack.c.l.b16 %v446
    %v680 = vunpack.c.l.b16 %v447
    %v681 = vunpack.c.l.b16 %v448
    %v682 = vunpack.c.l.b16 %v449
    %v683 = vunpack.c.l.b16 %v450
    %v684 = vunpack.c.l.b16 %v451
    %v685 = vunpack.c.l.b16 %v452
    %v686 = vunpack.c.l.b16 %v453
    %v687 = vunpack.c.l.b16 %v454
    %v688 = vunpack.c.l.b16 %v455
    %v689 = vunpack.c.l.b16 %v456
    %v690 = vunpack.c.l.b16 %v457
    %v691 = vunpack.c.l.b16 %v458
    %v692 = vunpack.c.l.b16 %v459
    %v693 = vunpack.c.l.b16 %v460
    %v694 = vunpack.c.l.b16 %v461
    %v695 = vunpack.c.l.b16 %v462
    %v696 = vunpack.c.l.b16 %v463
    %v697 = vunpack.c.l.b16 %v464
    %v698 = vunpack.c.l.b16 %v465
    %v699 = vunpack.c.l.b16 %v466
    %v700 = vunpack.c.l.b16 %v467
    %v701 = vunpack.c.l.b16 %v468
    %v702 = vunpack.c.l.b16 %v469
    %v703 = vunpack.c.l.b16 %v470
    %v704 = vunpack.c.l.b16 %v471
    %v705 = vunpack.c.l.b16 %v472
    %v706 = vunpack.c.l.b16 %v473
    %v707 = vunpack.c.l.b16 %v474
    %v708 = vunpack.c.l.b16 %v475
    %v709 = vunpack.c.l.b16 %v476
    %v710 = vunpack.c.l.b16 %v477
    %v711 = vunpack.c.l.b16 %v478
    %v712 = vunpack.c.l.b16 %v479
    %v713 = vunpack.c.l.b16 %v480
    %v714 = vunpack.c.l.b16 %v481
    %v715 = vunpack.c.l.b16 %v482
    %v716 = vunpack.c.l.b16 %v483
    %v717 = vunpack.c.l.b16 %v484
    %v718 = vunpack.c.l.b16 %v485
    %v719 = vunpack.c.l.b16 %v486
    %v720 = vunpack.c.l.b16 %v487
    %v721 = vunpack.c.l.b16 %v488
    %v722 = vunpack.c.l.b16 %v489
    %v723 = vunpack.c.l.b16 %v490
    %v724 = vunpack.c.l.b16 %v491
    %v725 = vunpack.c.l.b16 %v492
    %v726 = vunpack.c.l.b16 %v493
    %v727 = vunpack.c.l.b16 %v494
    %v728 = vunpack.c.l.b16 %v495
    %v729 = vunpack.c.l.b16 %v496
    %v730 = vunpack.c.l.b16 %v497
    %v731 = vunpack.c.l.b16 %v498
    %v732 = vunpack.c.l.b16 %v499
    %v733 = vunpack.c.l.b16 %v500
    %v734 = vunpack.c.l.b16 %v501
    %v735 = vunpack.c.l.b16 %v502
    %v736 = vunpack.c.l.b16 %v503
    %v737 = vunpack.c.l.b16 %v504
    %v738 = vunpack.c.l.b16 %v505
    %v739 = vunpack.c.l.b16 %v506
    %v740 = vunpack.c.l.b16 %v507
    %v741 = vunpack.c.l.b16 %v508
    %v742 = vunpack.c.l.b16 %v509
    %v743 = vunpack.c.l.b16 %v510
    %v744 = vunpack.c.l.b16 %v511
    %v745 = vunpack.c.l.b16 %v512
    %v746 = vunpack.c.l.b16 %v513
    %v747 = vunpack.c.l.b16 %v514
    %v748 = vunpack.c.l.b16 %v515
    %v749 = vunpack.c.l.b16 %v516
    %v750 = vunpack.c.l.b16 %v517
    %v751 = vunpack.c.l.b16 %v518
    %v752 = vpack.c.b16 %v640, %v639
    %v753 = vpack.c.b16 %v642, %v641
    %v754 = vpack.c.b16 %v644, %v643
    %v755 = vpack.c.b16 %v646, %v645
    %v756 = vpack.c.b16 %v648, %v647
    %v757 = vpack.c.b16 %v650, %v649
    %v758 = vpack.c.b16 %v652, %v651
    %v759 = vpack.c.b16 %v654, %v653
    %v760 = vpack.c.b16 %v656, %v655
    %v761 = vpack.c.b16 %v658, %v657
    %v762 = vpack.c.b16 %v660, %v659
    %v763 = vpack.c.b16 %v662, %v661
    %v764 = vpack.c.b16 %v664, %v663
    %v765 = vpack.c.b16 %v666, %v665
    %v766 = vpack.c.b16 %v668, %v667
    %v767 = vpack.c.b16 %v670, %v669
    %v768 = vpack.c.b16 %v672, %v671
    %v769 = vpack.c.b16 %v674, %v673
    %v770 = vpack.c.b16 %v676, %v675
    %v771 = vpack.c.b16 %v678, %v677
    %v772 = vpack.c.b16 %v680, %v679
    %v773 = vpack.c.b16 %v682, %v681
    %v774 = vpack.c.b16 %v684, %v683
    %v775 = vpack.c.b16 %v686, %v685
    %v776 = vpack.c.b16 %v688, %v687
    %v777 = vpack.c.b16 %v690, %v689
    %v778 = vpack.c.b16 %v692, %v691
    %v779 = vpack.c.b16 %v694, %v693
    %v780 = vpack.c.b16 %v696, %v695
    %v781 = vpack.c.b16 %v698, %v697
    %v782 = vpack.c.b16 %v700, %v699
    %v783 = vpack.c.b16 %v702, %v701
    %v784 = vpack.c.b16 %v704, %v703
    %v785 = vpack.c.b16 %v706, %v705
    %v786 = vpack.c.b16 %v708, %v707
    %v787 = vpack.c.b16 %v710, %v709
    %v788 = vpack.c.b16 %v712, %v711
    %v789 = vpack.c.b16 %v714, %v713
    %v790 = vpack.c.b16 %v716, %v715
    %v791 = vpack.c.b16 %v718, %v717
    %v792 = vpack.c.b16 %v720, %v719
    %v793 = vpack.c.b16 %v722, %v721
    %v794 = vpack.c.b16 %v724, %v723
    %v795 = vpack.c.b16 %v726, %v725
    %v796 = vpack.c.b16 %v728, %v727
    %v797 = vpack.c.b16 %v730, %v729
    %v798 = vpack.c.b16 %v732, %v731
    %v799 = vpack.c.b16 %v734, %v733
    %v800 = vpack.c.b16 %v736, %v735
    %v801 = vpack.c.b16 %v738, %v737
    %v802 = vpack.c.b16 %v740, %v739
    %v803 = vpack.c.b16 %v742, %v741
    %v804 = vpack.c.b16 %v744, %v743
    %v805 = vpack.c.b16 %v746, %v745
    %v806 = vpack.c.b16 %v748, %v747
    %v807 = vpack.c.b16 %v750, %v749
    %v808 = vpack.c.b16 %v751, %v751
    %vm865 = vcmask 31744
    %v867 = vsel %vm865, %v397, 0
    %v870 = vsel %vm865, %v405, 0
    %vm872 = vcmask 1041408
    %v874 = vsel %vm872, %v808, 0
    %876 = vmatprep.subr.bf16.mxu0 0
    %877 = vmatpush1.bf16.msra.mxu0 %v752
    %878 = vmatprep.subr.bf16.mxu0 0
    %879 = vmatpush1.bf16.msra.mxu0 %v753
    %880 = vmatprep.subr.bf16.mxu0 0
    %881 = vmatpush1.bf16.msra.mxu0 %v754
    %882 = vmatprep.subr.bf16.mxu0 0
    %883 = vmatpush1.bf16.msra.mxu0 %v755
    %884 = vmatprep.subr.bf16.mxu0 0
    %885 = vmatpush1.bf16.msra.mxu0 %v756
    %886 = vmatprep.subr.bf16.mxu0 0
    %887 = vmatpush1.bf16.msra.mxu0 %v757
    %888 = vmatprep.subr.bf16.mxu0 0
    %889 = vmatpush1.bf16.msra.mxu0 %v758
    %890 = vmatprep.subr.bf16.mxu0 0
    %891 = vmatpush1.bf16.msra.mxu0 %v759
    %892 = vmatprep.subr.bf16.mxu0 0
    %893 = vmatpush1.bf16.msra.mxu0 %v760
    %894 = vmatprep.subr.bf16.mxu0 0
    %895 = vmatpush1.bf16.msra.mxu0 %v761
    %896 = vmatprep.subr.bf16.mxu0 0
    %897 = vmatpush1.bf16.msra.mxu0 %v762
    %898 = vmatprep.subr.bf16.mxu0 0
    %899 = vmatpush1.bf16.msra.mxu0 %v763
    %900 = vmatprep.subr.bf16.mxu0 0
    %901 = vmatpush1.bf16.msra.mxu0 %v764
    %902 = vmatprep.subr.bf16.mxu0 0
    %903 = vmatpush1.bf16.msra.mxu0 %v765
    %904 = vmatprep.subr.bf16.mxu0 0
    %905 = vmatpush1.bf16.msra.mxu0 %v766
    %906 = vmatprep.subr.bf16.mxu0 0
    %907 = vmatpush1.bf16.msra.mxu0 %v767
    %908 = vmatprep.mubr.bf16.mxu0 %v391
    %909 = vmatmul.mubr.bf16.gmra.mrb[0].mxu0 %v390
    %v910 = vpop.f32.mrb[0].mxu0
    %v911 = vadd.f32 %v524, %v910
    %v912 = vpop.f32.mrb[0].mxu0
    %v913 = vpop.f32.mrb[0].mxu0
    %v914 = vadd.f32 %v524, %v913
    %v915 = vpop.f32.mrb[0].mxu0
    %916 = vmatprep.mubr.bf16.mxu0 %v399
    %917 = vmatmul.mubr.bf16.gmra.mrb[0].mxu0 %v398
    %v918 = vpop.f32.mrb[0].mxu0
    %v919 = vadd.f32 %v524, %v918
    %v920 = vpop.f32.mrb[0].mxu0
    %v921 = vpop.f32.mrb[0].mxu0
    %v922 = vadd.f32 %v524, %v921
    %v923 = vpop.f32.mrb[0].mxu0
    %924 = vdwg.mxu0
    %925 = vmatprep.subr.bf16.mxu0 0
    %926 = vmatpush1.bf16.msra.mxu0 %v768
    %927 = vmatprep.subr.bf16.mxu0 0
    %928 = vmatpush1.bf16.msra.mxu0 %v769
    %929 = vmatprep.subr.bf16.mxu0 0
    %930 = vmatpush1.bf16.msra.mxu0 %v770
    %931 = vmatprep.subr.bf16.mxu0 0
    %932 = vmatpush1.bf16.msra.mxu0 %v771
    %933 = vmatprep.subr.bf16.mxu0 0
    %934 = vmatpush1.bf16.msra.mxu0 %v772
    %935 = vmatprep.subr.bf16.mxu0 0
    %936 = vmatpush1.bf16.msra.mxu0 %v773
    %937 = vmatprep.subr.bf16.mxu0 0
    %938 = vmatpush1.bf16.msra.mxu0 %v774
    %939 = vmatprep.subr.bf16.mxu0 0
    %940 = vmatpush1.bf16.msra.mxu0 %v775
    %941 = vmatprep.subr.bf16.mxu0 0
    %942 = vmatpush1.bf16.msra.mxu0 %v776
    %943 = vmatprep.subr.bf16.mxu0 0
    %944 = vmatpush1.bf16.msra.mxu0 %v777
    %945 = vmatprep.subr.bf16.mxu0 0
    %946 = vmatpush1.bf16.msra.mxu0 %v778
    %947 = vmatprep.subr.bf16.mxu0 0
    %948 = vmatpush1.bf16.msra.mxu0 %v779
    %949 = vmatprep.subr.bf16.mxu0 0
    %950 = vmatpush1.bf16.msra.mxu0 %v780
    %951 = vmatprep.subr.bf16.mxu0 0
    %952 = vmatpush1.bf16.msra.mxu0 %v781
    %953 = vmatprep.subr.bf16.mxu0 0
    %954 = vmatpush1.bf16.msra.mxu0 %v782
    %955 = vmatprep.subr.bf16.mxu0 0
    %956 = vmatpush1.bf16.msra.mxu0 %v783
    %957 = vmatprep.mubr.bf16.mxu0 %v393
    %958 = vmatmul.mubr.bf16.gmra.mrb[0].mxu0 %v392
    %v959 = vpop.f32.mrb[0].mxu0
    %v960 = vadd.f32 %v911, %v959
    %v961 = vpop.f32.mrb[0].mxu0
    %v962 = vpop.f32.mrb[0].mxu0
    %v963 = vadd.f32 %v914, %v962
    %v964 = vpop.f32.mrb[0].mxu0
    %965 = vmatprep.mubr.bf16.mxu0 %v401
    %966 = vmatmul.mubr.bf16.gmra.mrb[0].mxu0 %v400
    %v967 = vpop.f32.mrb[0].mxu0
    %v968 = vadd.f32 %v919, %v967
    %v969 = vpop.f32.mrb[0].mxu0
    %v970 = vpop.f32.mrb[0].mxu0
    %v971 = vadd.f32 %v922, %v970
    %v972 = vpop.f32.mrb[0].mxu0
    %973 = vdwg.mxu0
    %974 = vmatprep.subr.bf16.mxu0 0
    %975 = vmatpush1.bf16.msra.mxu0 %v784
    %976 = vmatprep.subr.bf16.mxu0 0
    %977 = vmatpush1.bf16.msra.mxu0 %v785
    %978 = vmatprep.subr.bf16.mxu0 0
    %979 = vmatpush1.bf16.msra.mxu0 %v786
    %980 = vmatprep.subr.bf16.mxu0 0
    %981 = vmatpush1.bf16.msra.mxu0 %v787
    %982 = vmatprep.subr.bf16.mxu0 0
    %983 = vmatpush1.bf16.msra.mxu0 %v788
    %984 = vmatprep.subr.bf16.mxu0 0
    %985 = vmatpush1.bf16.msra.mxu0 %v789
    %986 = vmatprep.subr.bf16.mxu0 0
    %987 = vmatpush1.bf16.msra.mxu0 %v790
    %988 = vmatprep.subr.bf16.mxu0 0
    %989 = vmatpush1.bf16.msra.mxu0 %v791
    %990 = vmatprep.subr.bf16.mxu0 0
    %991 = vmatpush1.bf16.msra.mxu0 %v792
    %992 = vmatprep.subr.bf16.mxu0 0
    %993 = vmatpush1.bf16.msra.mxu0 %v793
    %994 = vmatprep.subr.bf16.mxu0 0
    %995 = vmatpush1.bf16.msra.mxu0 %v794
    %996 = vmatprep.subr.bf16.mxu0 0
    %997 = vmatpush1.bf16.msra.mxu0 %v795
    %998 = vmatprep.subr.bf16.mxu0 0
    %999 = vmatpush1.bf16.msra.mxu0 %v796
    %1000 = vmatprep.subr.bf16.mxu0 0
    %1001 = vmatpush1.bf16.msra.mxu0 %v797
    %1002 = vmatprep.subr.bf16.mxu0 0
    %1003 = vmatpush1.bf16.msra.mxu0 %v798
    %1004 = vmatprep.subr.bf16.mxu0 0
    %1005 = vmatpush1.bf16.msra.mxu0 %v799
    %1006 = vmatprep.mubr.bf16.mxu0 %v395
    %1007 = vmatmul.mubr.bf16.gmra.mrb[0].mxu0 %v394
    %v1008 = vpop.f32.mrb[0].mxu0
    %v1009 = vadd.f32 %v960, %v1008
    %v1010 = vpop.f32.mrb[0].mxu0
    %v1011 = vpop.f32.mrb[0].mxu0
    %v1012 = vadd.f32 %v963, %v1011
    %v1013 = vpop.f32.mrb[0].mxu0
    %1014 = vmatprep.mubr.bf16.mxu0 %v403
    %1015 = vmatmul.mubr.bf16.gmra.mrb[0].mxu0 %v402
    %v1016 = vpop.f32.mrb[0].mxu0
    %v1017 = vadd.f32 %v968, %v1016
    %v1018 = vpop.f32.mrb[0].mxu0
    %v1019 = vpop.f32.mrb[0].mxu0
    %v1020 = vadd.f32 %v971, %v1019
    %v1021 = vpop.f32.mrb[0].mxu0
    %1022 = vdwg.mxu0
    %1023 = vmatprep.subr.bf16.mxu0 0
    %1024 = vmatpush1.bf16.msra.mxu0 %v800
    %1025 = vmatprep.subr.bf16.mxu0 0
    %1026 = vmatpush1.bf16.msra.mxu0 %v801
    %1027 = vmatprep.subr.bf16.mxu0 0
    %1028 = vmatpush1.bf16.msra.mxu0 %v802
    %1029 = vmatprep.subr.bf16.mxu0 0
    %1030 = vmatpush1.bf16.msra.mxu0 %v803
    %1031 = vmatprep.subr.bf16.mxu0 0
    %1032 = vmatpush1.bf16.msra.mxu0 %v804
    %1033 = vmatprep.subr.bf16.mxu0 0
    %1034 = vmatpush1.bf16.msra.mxu0 %v805
    %1035 = vmatprep.subr.bf16.mxu0 0
    %1036 = vmatpush1.bf16.msra.mxu0 %v806
    %1037 = vmatprep.subr.bf16.mxu0 0
    %1038 = vmatpush1.bf16.msra.mxu0 %v807
    %1039 = vmatprep.subr.bf16.mxu0 0
    %1040 = vmatpush1.bf16.msra.mxu0 %v874
    %1041 = vmatprep.subr.bf16.mxu0 0
    %1042 = vmatpush1.bf16.msra.mxu0 0
    %1043 = vmatprep.subr.bf16.mxu0 0
    %1044 = vmatpush1.bf16.msra.mxu0 0
    %1045 = vmatprep.subr.bf16.mxu0 0
    %1046 = vmatpush1.bf16.msra.mxu0 0
    %1047 = vmatprep.subr.bf16.mxu0 0
    %1048 = vmatpush1.bf16.msra.mxu0 0
    %1049 = vmatprep.subr.bf16.mxu0 0
    %1050 = vmatpush1.bf16.msra.mxu0 0
    %1051 = vmatprep.subr.bf16.mxu0 0
    %1052 = vmatpush1.bf16.msra.mxu0 0
    %1053 = vmatprep.subr.bf16.mxu0 0
    %1054 = vmatpush1.bf16.msra.mxu0 0
    %1055 = vmatprep.mubr.bf16.mxu0 %v867
    %1056 = vmatmul.mubr.bf16.gmra.mrb[0].mxu0 %v396
    %v1057 = vpop.f32.mrb[0].mxu0
    %v1058 = vadd.f32 %v1009, %v1057
    %v1059 = vpop.f32.mrb[0].mxu0
    %v1060 = vpop.f32.mrb[0].mxu0
    %v1061 = vadd.f32 %v1012, %v1060
    %v1062 = vpop.f32.mrb[0].mxu0
    %1063 = vmatprep.mubr.bf16.mxu0 %v870
    %1064 = vmatmul.mubr.bf16.gmra.mrb[0].mxu0 %v404
    %v1065 = vpop.f32.mrb[0].mxu0
    %v1066 = vadd.f32 %v1017, %v1065
    %v1067 = vpop.f32.mrb[0].mxu0
    %v1068 = vpop.f32.mrb[0].mxu0
    %v1069 = vadd.f32 %v1020, %v1068
    %v1070 = vpop.f32.mrb[0].mxu0
    %1071 = vdwg.mxu0
    %v1072 = vmax.f32 %v1058, 0.0
    %v1073 = vmax.f32 %v1061, 0.0
    %v1074 = vmax.f32 %v1066, 0.0
    %v1075 = vmax.f32 %v1069, 0.0
    %v1076 = vpack.c.bf16 %v1072, %v1072
    %v1077 = vld [vmem:[%s5] sm:$0xff]
    %v1078 = vld [vmem:[%s5 + $0x8] sm:$0xff]
    %v1079 = vld [vmem:[%s5 + $0x10] sm:$0xff]
    %v1080 = vld [vmem:[%s5 + $0x18] sm:$0xff]
    %v1081 = vld [vmem:[%s5 + $0x20] sm:$0xff]
    %v1082 = vld [vmem:[%s5 + $0x28] sm:$0xff]
    %v1083 = vld [vmem:[%s5 + $0x30] sm:$0x11]
    %s1084 = scalar_lea.vmem %s5, 56
    %v1085 = vld [vmem:[%s1084] sm:$0xff]
    %v1086 = vld [vmem:[%s1084 + $0x8] sm:$0xff]
    %v1087 = vld [vmem:[%s1084 + $0x10] sm:$0xff]
    %v1088 = vld [vmem:[%s1084 + $0x18] sm:$0xff]
    %v1089 = vld [vmem:[%s1084 + $0x20] sm:$0xff]
    %v1090 = vld [vmem:[%s1084 + $0x28] sm:$0xff]
    %v1091 = vld [vmem:[%s1084 + $0x30] sm:$0x11]
    %v1093 = vshrl.u32 %v1076, 16
    %v1102 = vunpack.c.l.b16 %v1085
    %v1103 = vunpack.c.h.b16 %v1085
    %v1104 = vunpack.c.l.b16 %v1086
    %v1105 = vunpack.c.h.b16 %v1086
    %v1106 = vunpack.c.l.b16 %v1087
    %v1107 = vunpack.c.h.b16 %v1087
    %v1108 = vunpack.c.l.b16 %v1088
    %v1109 = vunpack.c.h.b16 %v1088
    %v1110 = vunpack.c.l.b16 %v1089
    %v1111 = vunpack.c.h.b16 %v1089
    %v1112 = vunpack.c.l.b16 %v1090
    %v1113 = vunpack.c.h.b16 %v1090
    %v1114 = vunpack.c.l.b16 %v1091
    %v1115 = vunpack.c.h.b16 %v1091
    %v1116 = vpack.c.b16 %v1104, %v1102
    %v1117 = vpack.c.b16 %v1105, %v1103
    %v1118 = vpack.c.b16 %v1108, %v1106
    %v1119 = vpack.c.b16 %v1109, %v1107
    %v1120 = vpack.c.b16 %v1112, %v1110
    %v1121 = vpack.c.b16 %v1113, %v1111
    %v1122 = vpack.c.b16 %v1114, %v1114
    %v1123 = vpack.c.b16 %v1115, %v1115
    %vm1130 = vcmask 408576
    %v1132 = vsel %vm1130, %v1093, 0
    %vm1134 = vcmask 1040384
    %v1136 = vsel %vm1134, %v1122, 0
    %v1139 = vsel %vm1134, %v1123, 0
    %1141 = vmatprep.subr.bf16.mxu0 %v1117
    %1142 = vmatpush1.bf16.msra.mxu0 %v1116
    %1143 = vmatprep.subr.bf16.mxu0 %v1119
    %1144 = vmatpush1.bf16.msra.mxu0 %v1118
    %1145 = vmatprep.subr.bf16.mxu0 %v1121
    %1146 = vmatpush1.bf16.msra.mxu0 %v1120
    %1147 = vmatprep.subr.bf16.mxu0 %v1139
    %1148 = vmatpush1.bf16.msra.mxu0 %v1136
    %1149 = vmatprep.subr.bf16.mxu0 0
    %1150 = vmatpush1.bf16.msra.mxu0 0
    %1151 = vmatprep.subr.bf16.mxu0 0
    %1152 = vmatpush1.bf16.msra.mxu0 0
    %1153 = vmatprep.subr.bf16.mxu0 0
    %1154 = vmatpush1.bf16.msra.mxu0 0
    %1155 = vmatprep.subr.bf16.mxu0 0
    %1156 = vmatpush1.bf16.msra.mxu0 0
    %1157 = vmatprep.subr.bf16.mxu0 0
    %1158 = vmatpush1.bf16.msra.mxu0 0
    %1159 = vmatprep.subr.bf16.mxu0 0
    %1160 = vmatpush1.bf16.msra.mxu0 0
    %1161 = vmatprep.subr.bf16.mxu0 0
    %1162 = vmatpush1.bf16.msra.mxu0 0
    %1163 = vmatprep.subr.bf16.mxu0 0
    %1164 = vmatpush1.bf16.msra.mxu0 0
    %1165 = vmatprep.subr.bf16.mxu0 0
    %1166 = vmatpush1.bf16.msra.mxu0 0
    %1167 = vmatprep.subr.bf16.mxu0 0
    %1168 = vmatpush1.bf16.msra.mxu0 0
    %1169 = vmatprep.subr.bf16.mxu0 0
    %1170 = vmatpush1.bf16.msra.mxu0 0
    %1171 = vmatprep.subr.bf16.mxu0 0
    %1172 = vmatpush1.bf16.msra.mxu0 0
    %1173 = vmatprep.mubr.bf16.mxu0 0
    %1174 = vmatmul.mubr.bf16.gmra.mrb[0].mxu0 %v1132
    %v1175 = vpop.f32.mrb[0].mxu0
    %v1176 = vadd.f32 0.0, %v1175
    %v1177 = vpop.f32.mrb[0].mxu0
    %v1178 = vadd.f32 0.0, %v1177
    %v1179 = vpop.f32.mrb[0].mxu0
    %v1180 = vpop.f32.mrb[0].mxu0
    %1181 = vdwg.mxu0
    %s1182 = scalar_lea.vmem %s5, 112
    %v1183 = vld [vmem:[%s1182] sm:$0xff]
    %v1184 = vld [vmem:[%s1182 + $0x8] sm:$0xff]
    %v1185 = vld [vmem:[%s1182 + $0x10] sm:$0xff]
    %v1186 = vld [vmem:[%s1182 + $0x18] sm:$0xff]
    %v1187 = vld [vmem:[%s1182 + $0x20] sm:$0xff]
    %v1188 = vld [vmem:[%s1182 + $0x28] sm:$0xff]
    %v1189 = vld [vmem:[%s1182 + $0x30] sm:$0x11]
    %s1190 = scalar_lea.vmem %s5, 168
    %v1191 = vld [vmem:[%s1190] sm:$0xff]
    %v1192 = vld [vmem:[%s1190 + $0x8] sm:$0xff]
    %v1193 = vld [vmem:[%s1190 + $0x10] sm:$0xff]
    %v1194 = vld [vmem:[%s1190 + $0x18] sm:$0xff]
    %v1195 = vld [vmem:[%s1190 + $0x20] sm:$0xff]
    %v1196 = vld [vmem:[%s1190 + $0x28] sm:$0xff]
    %v1197 = vld [vmem:[%s1190 + $0x30] sm:$0x11]
    %v1198 = vrot.slane %v1093, 1
    %v1206 = vunpack.c.l.b16 %v1191
    %v1207 = vunpack.c.h.b16 %v1191
    %v1208 = vunpack.c.l.b16 %v1192
    %v1209 = vunpack.c.h.b16 %v1192
    %v1210 = vunpack.c.l.b16 %v1193
    %v1211 = vunpack.c.h.b16 %v1193
    %v1212 = vunpack.c.l.b16 %v1194
    %v1213 = vunpack.c.h.b16 %v1194
    %v1214 = vunpack.c.l.b16 %v1195
    %v1215 = vunpack.c.h.b16 %v1195
    %v1216 = vunpack.c.l.b16 %v1196
    %v1217 = vunpack.c.h.b16 %v1196
    %v1218 = vunpack.c.l.b16 %v1197
    %v1219 = vunpack.c.h.b16 %v1197
    %v1220 = vpack.c.b16 %v1208, %v1206
    %v1221 = vpack.c.b16 %v1209, %v1207
    %v1222 = vpack.c.b16 %v1212, %v1210
    %v1223 = vpack.c.b16 %v1213, %v1211
    %v1224 = vpack.c.b16 %v1216, %v1214
    %v1225 = vpack.c.b16 %v1217, %v1215
    %v1226 = vpack.c.b16 %v1218, %v1218
    %v1227 = vpack.c.b16 %v1219, %v1219
    %v1235 = vsel %vm1130, %v1198, 0
    %v1238 = vsel %vm1134, %v1226, 0
    %v1241 = vsel %vm1134, %v1227, 0
    %1243 = vmatprep.subr.bf16.mxu0 %v1221
    %1244 = vmatpush1.bf16.msra.mxu0 %v1220
    %1245 = vmatprep.subr.bf16.mxu0 %v1223
    %1246 = vmatpush1.bf16.msra.mxu0 %v1222
    %1247 = vmatprep.subr.bf16.mxu0 %v1225
    %1248 = vmatpush1.bf16.msra.mxu0 %v1224
    %1249 = vmatprep.subr.bf16.mxu0 %v1241
    %1250 = vmatpush1.bf16.msra.mxu0 %v1238
    %1251 = vmatprep.subr.bf16.mxu0 0
    %1252 = vmatpush1.bf16.msra.mxu0 0
    %1253 = vmatprep.subr.bf16.mxu0 0
    %1254 = vmatpush1.bf16.msra.mxu0 0
    %1255 = vmatprep.subr.bf16.mxu0 0
    %1256 = vmatpush1.bf16.msra.mxu0 0
    %1257 = vmatprep.subr.bf16.mxu0 0
    %1258 = vmatpush1.bf16.msra.mxu0 0
    %1259 = vmatprep.subr.bf16.mxu0 0
    %1260 = vmatpush1.bf16.msra.mxu0 0
    %1261 = vmatprep.subr.bf16.mxu0 0
    %1262 = vmatpush1.bf16.msra.mxu0 0
    %1263 = vmatprep.subr.bf16.mxu0 0
    %1264 = vmatpush1.bf16.msra.mxu0 0
    %1265 = vmatprep.subr.bf16.mxu0 0
    %1266 = vmatpush1.bf16.msra.mxu0 0
    %1267 = vmatprep.subr.bf16.mxu0 0
    %1268 = vmatpush1.bf16.msra.mxu0 0
    %1269 = vmatprep.subr.bf16.mxu0 0
    %1270 = vmatpush1.bf16.msra.mxu0 0
    %1271 = vmatprep.subr.bf16.mxu0 0
    %1272 = vmatpush1.bf16.msra.mxu0 0
    %1273 = vmatprep.subr.bf16.mxu0 0
    %1274 = vmatpush1.bf16.msra.mxu0 0
    %1275 = vmatprep.mubr.bf16.mxu0 0
    %1276 = vmatmul.mubr.bf16.gmra.mrb[0].mxu0 %v1235
    %v1277 = vpop.f32.mrb[0].mxu0
    %v1278 = vadd.f32 0.0, %v1277
    %v1279 = vpop.f32.mrb[0].mxu0
    %v1280 = vadd.f32 0.0, %v1279
    %v1281 = vpop.f32.mrb[0].mxu0
    %v1282 = vpop.f32.mrb[0].mxu0
    %1283 = vdwg.mxu0
    %s1284 = scalar_lea.vmem %s5, 224
    %v1285 = vld [vmem:[%s1284] sm:$0xff]
    %v1286 = vld [vmem:[%s1284 + $0x8] sm:$0xff]
    %v1287 = vld [vmem:[%s1284 + $0x10] sm:$0xff]
    %v1288 = vld [vmem:[%s1284 + $0x18] sm:$0xff]
    %v1289 = vld [vmem:[%s1284 + $0x20] sm:$0xff]
    %v1290 = vld [vmem:[%s1284 + $0x28] sm:$0xff]
    %v1291 = vld [vmem:[%s1284 + $0x30] sm:$0x11]
    %s1292 = scalar_lea.vmem %s5, 280
    %v1293 = vld [vmem:[%s1292] sm:$0xff]
    %v1294 = vld [vmem:[%s1292 + $0x8] sm:$0xff]
    %v1295 = vld [vmem:[%s1292 + $0x10] sm:$0xff]
    %v1296 = vld [vmem:[%s1292 + $0x18] sm:$0xff]
    %v1297 = vld [vmem:[%s1292 + $0x20] sm:$0xff]
    %v1298 = vld [vmem:[%s1292 + $0x28] sm:$0xff]
    %v1299 = vld [vmem:[%s1292 + $0x30] sm:$0x11]
    %v1300 = vrot.slane %v1093, 2
    %v1308 = vunpack.c.l.b16 %v1293
    %v1309 = vunpack.c.h.b16 %v1293
    %v1310 = vunpack.c.l.b16 %v1294
    %v1311 = vunpack.c.h.b16 %v1294
    %v1312 = vunpack.c.l.b16 %v1295
    %v1313 = vunpack.c.h.b16 %v1295
    %v1314 = vunpack.c.l.b16 %v1296
    %v1315 = vunpack.c.h.b16 %v1296
    %v1316 = vunpack.c.l.b16 %v1297
    %v1317 = vunpack.c.h.b16 %v1297
    %v1318 = vunpack.c.l.b16 %v1298
    %v1319 = vunpack.c.h.b16 %v1298
    %v1320 = vunpack.c.l.b16 %v1299
    %v1321 = vunpack.c.h.b16 %v1299
    %v1322 = vpack.c.b16 %v1310, %v1308
    %v1323 = vpack.c.b16 %v1311, %v1309
    %v1324 = vpack.c.b16 %v1314, %v1312
    %v1325 = vpack.c.b16 %v1315, %v1313
    %v1326 = vpack.c.b16 %v1318, %v1316
    %v1327 = vpack.c.b16 %v1319, %v1317
    %v1328 = vpack.c.b16 %v1320, %v1320
    %v1329 = vpack.c.b16 %v1321, %v1321
    %v1337 = vsel %vm1130, %v1300, 0
    %v1340 = vsel %vm1134, %v1328, 0
    %v1343 = vsel %vm1134, %v1329, 0
    %1345 = vmatprep.subr.bf16.mxu0 %v1323
    %1346 = vmatpush1.bf16.msra.mxu0 %v1322
    %1347 = vmatprep.subr.bf16.mxu0 %v1325
    %1348 = vmatpush1.bf16.msra.mxu0 %v1324
    %1349 = vmatprep.subr.bf16.mxu0 %v1327
    %1350 = vmatpush1.bf16.msra.mxu0 %v1326
    %1351 = vmatprep.subr.bf16.mxu0 %v1343
    %1352 = vmatpush1.bf16.msra.mxu0 %v1340
    %1353 = vmatprep.subr.bf16.mxu0 0
    %1354 = vmatpush1.bf16.msra.mxu0 0
    %1355 = vmatprep.subr.bf16.mxu0 0
    %1356 = vmatpush1.bf16.msra.mxu0 0
    %1357 = vmatprep.subr.bf16.mxu0 0
    %1358 = vmatpush1.bf16.msra.mxu0 0
    %1359 = vmatprep.subr.bf16.mxu0 0
    %1360 = vmatpush1.bf16.msra.mxu0 0
    %1361 = vmatprep.subr.bf16.mxu0 0
    %1362 = vmatpush1.bf16.msra.mxu0 0
    %1363 = vmatprep.subr.bf16.mxu0 0
    %1364 = vmatpush1.bf16.msra.mxu0 0
    %1365 = vmatprep.subr.bf16.mxu0 0
    %1366 = vmatpush1.bf16.msra.mxu0 0
    %1367 = vmatprep.subr.bf16.mxu0 0
    %1368 = vmatpush1.bf16.msra.mxu0 0
    %1369 = vmatprep.subr.bf16.mxu0 0
    %1370 = vmatpush1.bf16.msra.mxu0 0
    %1371 = vmatprep.subr.bf16.mxu0 0
    %1372 = vmatpush1.bf16.msra.mxu0 0
    %1373 = vmatprep.subr.bf16.mxu0 0
    %1374 = vmatpush1.bf16.msra.mxu0 0
    %1375 = vmatprep.subr.bf16.mxu0 0
    %1376 = vmatpush1.bf16.msra.mxu0 0
    %1377 = vmatprep.mubr.bf16.mxu0 0
    %1378 = vmatmul.mubr.bf16.gmra.mrb[0].mxu0 %v1337
    %v1379 = vpop.f32.mrb[0].mxu0
    %v1380 = vadd.f32 0.0, %v1379
    %v1381 = vpop.f32.mrb[0].mxu0
    %v1382 = vadd.f32 0.0, %v1381
    %v1383 = vpop.f32.mrb[0].mxu0
    %v1384 = vpop.f32.mrb[0].mxu0
    %1385 = vdwg.mxu0
    %s1386 = scalar_lea.vmem %s5, 336
    %v1387 = vld [vmem:[%s1386] sm:$0xff]
    %v1388 = vld [vmem:[%s1386 + $0x8] sm:$0xff]
    %v1389 = vld [vmem:[%s1386 + $0x10] sm:$0xff]
    %v1390 = vld [vmem:[%s1386 + $0x18] sm:$0xff]
    %v1391 = vld [vmem:[%s1386 + $0x20] sm:$0xff]
    %v1392 = vld [vmem:[%s1386 + $0x28] sm:$0xff]
    %v1393 = vld [vmem:[%s1386 + $0x30] sm:$0x11]
    %s1394 = scalar_lea.vmem %s5, 392
    %v1395 = vld [vmem:[%s1394] sm:$0xff]
    %v1396 = vld [vmem:[%s1394 + $0x8] sm:$0xff]
    %v1397 = vld [vmem:[%s1394 + $0x10] sm:$0xff]
    %v1398 = vld [vmem:[%s1394 + $0x18] sm:$0xff]
    %v1399 = vld [vmem:[%s1394 + $0x20] sm:$0xff]
    %v1400 = vld [vmem:[%s1394 + $0x28] sm:$0xff]
    %v1401 = vld [vmem:[%s1394 + $0x30] sm:$0x11]
    %v1402 = vrot.slane %v1093, 3
    %v1410 = vunpack.c.l.b16 %v1395
    %v1411 = vunpack.c.h.b16 %v1395
    %v1412 = vunpack.c.l.b16 %v1396
    %v1413 = vunpack.c.h.b16 %v1396
    %v1414 = vunpack.c.l.b16 %v1397
    %v1415 = vunpack.c.h.b16 %v1397
    %v1416 = vunpack.c.l.b16 %v1398
    %v1417 = vunpack.c.h.b16 %v1398
    %v1418 = vunpack.c.l.b16 %v1399
    %v1419 = vunpack.c.h.b16 %v1399
    %v1420 = vunpack.c.l.b16 %v1400
    %v1421 = vunpack.c.h.b16 %v1400
    %v1422 = vunpack.c.l.b16 %v1401
    %v1423 = vunpack.c.h.b16 %v1401
    %v1424 = vpack.c.b16 %v1412, %v1410
    %v1425 = vpack.c.b16 %v1413, %v1411
    %v1426 = vpack.c.b16 %v1416, %v1414
    %v1427 = vpack.c.b16 %v1417, %v1415
    %v1428 = vpack.c.b16 %v1420, %v1418
    %v1429 = vpack.c.b16 %v1421, %v1419
    %v1430 = vpack.c.b16 %v1422, %v1422
    %v1431 = vpack.c.b16 %v1423, %v1423
    %v1439 = vsel %vm1130, %v1402, 0
    %v1442 = vsel %vm1134, %v1430, 0
    %v1445 = vsel %vm1134, %v1431, 0
    %1447 = vmatprep.subr.bf16.mxu0 %v1425
    %1448 = vmatpush1.bf16.msra.mxu0 %v1424
    %1449 = vmatprep.subr.bf16.mxu0 %v1427
    %1450 = vmatpush1.bf16.msra.mxu0 %v1426
    %1451 = vmatprep.subr.bf16.mxu0 %v1429
    %1452 = vmatpush1.bf16.msra.mxu0 %v1428
    %1453 = vmatprep.subr.bf16.mxu0 %v1445
    %1454 = vmatpush1.bf16.msra.mxu0 %v1442
    %1455 = vmatprep.subr.bf16.mxu0 0
    %1456 = vmatpush1.bf16.msra.mxu0 0
    %1457 = vmatprep.subr.bf16.mxu0 0
    %1458 = vmatpush1.bf16.msra.mxu0 0
    %1459 = vmatprep.subr.bf16.mxu0 0
    %1460 = vmatpush1.bf16.msra.mxu0 0
    %1461 = vmatprep.subr.bf16.mxu0 0
    %1462 = vmatpush1.bf16.msra.mxu0 0
    %1463 = vmatprep.subr.bf16.mxu0 0
    %1464 = vmatpush1.bf16.msra.mxu0 0
    %1465 = vmatprep.subr.bf16.mxu0 0
    %1466 = vmatpush1.bf16.msra.mxu0 0
    %1467 = vmatprep.subr.bf16.mxu0 0
    %1468 = vmatpush1.bf16.msra.mxu0 0
    %1469 = vmatprep.subr.bf16.mxu0 0
    %1470 = vmatpush1.bf16.msra.mxu0 0
    %1471 = vmatprep.subr.bf16.mxu0 0
    %1472 = vmatpush1.bf16.msra.mxu0 0
    %1473 = vmatprep.subr.bf16.mxu0 0
    %1474 = vmatpush1.bf16.msra.mxu0 0
    %1475 = vmatprep.subr.bf16.mxu0 0
    %1476 = vmatpush1.bf16.msra.mxu0 0
    %1477 = vmatprep.subr.bf16.mxu0 0
    %1478 = vmatpush1.bf16.msra.mxu0 0
    %1479 = vmatprep.mubr.bf16.mxu0 0
    %1480 = vmatmul.mubr.bf16.gmra.mrb[0].mxu0 %v1439
    %v1481 = vpop.f32.mrb[0].mxu0
    %v1482 = vadd.f32 0.0, %v1481
    %v1483 = vpop.f32.mrb[0].mxu0
    %v1484 = vadd.f32 0.0, %v1483
    %v1485 = vpop.f32.mrb[0].mxu0
    %v1486 = vpop.f32.mrb[0].mxu0
    %1487 = vdwg.mxu0
    %v1488 = vpack.c.bf16 %v1073, %v1073
    %s1489 = scalar_lea.vmem %s5, 448
    %v1490 = vld [vmem:[%s1489] sm:$0xff]
    %v1491 = vld [vmem:[%s1489 + $0x8] sm:$0xff]
    %v1492 = vld [vmem:[%s1489 + $0x10] sm:$0xff]
    %v1493 = vld [vmem:[%s1489 + $0x18] sm:$0xff]
    %v1494 = vld [vmem:[%s1489 + $0x20] sm:$0xff]
    %v1495 = vld [vmem:[%s1489 + $0x28] sm:$0xff]
    %v1496 = vld [vmem:[%s1489 + $0x30] sm:$0x11]
    %s1497 = scalar_lea.vmem %s5, 504
    %v1498 = vld [vmem:[%s1497] sm:$0xff]
    %v1499 = vld [vmem:[%s1497 + $0x8] sm:$0xff]
    %v1500 = vld [vmem:[%s1497 + $0x10] sm:$0xff]
    %v1501 = vld [vmem:[%s1497 + $0x18] sm:$0xff]
    %v1502 = vld [vmem:[%s1497 + $0x20] sm:$0xff]
    %v1503 = vld [vmem:[%s1497 + $0x28] sm:$0xff]
    %v1504 = vld [vmem:[%s1497 + $0x30] sm:$0x11]
    %v1506 = vshrl.u32 %v1488, 16
    %v1515 = vunpack.c.l.b16 %v1498
    %v1516 = vunpack.c.h.b16 %v1498
    %v1517 = vunpack.c.l.b16 %v1499
    %v1518 = vunpack.c.h.b16 %v1499
    %v1519 = vunpack.c.l.b16 %v1500
    %v1520 = vunpack.c.h.b16 %v1500
    %v1521 = vunpack.c.l.b16 %v1501
    %v1522 = vunpack.c.h.b16 %v1501
    %v1523 = vunpack.c.l.b16 %v1502
    %v1524 = vunpack.c.h.b16 %v1502
    %v1525 = vunpack.c.l.b16 %v1503
    %v1526 = vunpack.c.h.b16 %v1503
    %v1527 = vunpack.c.l.b16 %v1504
    %v1528 = vunpack.c.h.b16 %v1504
    %v1529 = vpack.c.b16 %v1517, %v1515
    %v1530 = vpack.c.b16 %v1518, %v1516
    %v1531 = vpack.c.b16 %v1521, %v1519
    %v1532 = vpack.c.b16 %v1522, %v1520
    %v1533 = vpack.c.b16 %v1525, %v1523
    %v1534 = vpack.c.b16 %v1526, %v1524
    %v1535 = vpack.c.b16 %v1527, %v1527
    %v1536 = vpack.c.b16 %v1528, %v1528
    %v1544 = vsel %vm1130, %v1506, 0
    %v1547 = vsel %vm1134, %v1535, 0
    %v1550 = vsel %vm1134, %v1536, 0
    %1552 = vmatprep.subr.bf16.mxu0 %v1530
    %1553 = vmatpush1.bf16.msra.mxu0 %v1529
    %1554 = vmatprep.subr.bf16.mxu0 %v1532
    %1555 = vmatpush1.bf16.msra.mxu0 %v1531
    %1556 = vmatprep.subr.bf16.mxu0 %v1534
    %1557 = vmatpush1.bf16.msra.mxu0 %v1533
    %1558 = vmatprep.subr.bf16.mxu0 %v1550
    %1559 = vmatpush1.bf16.msra.mxu0 %v1547
    %1560 = vmatprep.subr.bf16.mxu0 0
    %1561 = vmatpush1.bf16.msra.mxu0 0
    %1562 = vmatprep.subr.bf16.mxu0 0
    %1563 = vmatpush1.bf16.msra.mxu0 0
    %1564 = vmatprep.subr.bf16.mxu0 0
    %1565 = vmatpush1.bf16.msra.mxu0 0
    %1566 = vmatprep.subr.bf16.mxu0 0
    %1567 = vmatpush1.bf16.msra.mxu0 0
    %1568 = vmatprep.subr.bf16.mxu0 0
    %1569 = vmatpush1.bf16.msra.mxu0 0
    %1570 = vmatprep.subr.bf16.mxu0 0
    %1571 = vmatpush1.bf16.msra.mxu0 0
    %1572 = vmatprep.subr.bf16.mxu0 0
    %1573 = vmatpush1.bf16.msra.mxu0 0
    %1574 = vmatprep.subr.bf16.mxu0 0
    %1575 = vmatpush1.bf16.msra.mxu0 0
    %1576 = vmatprep.subr.bf16.mxu0 0
    %1577 = vmatpush1.bf16.msra.mxu0 0
    %1578 = vmatprep.subr.bf16.mxu0 0
    %1579 = vmatpush1.bf16.msra.mxu0 0
    %1580 = vmatprep.subr.bf16.mxu0 0
    %1581 = vmatpush1.bf16.msra.mxu0 0
    %1582 = vmatprep.subr.bf16.mxu0 0
    %1583 = vmatpush1.bf16.msra.mxu0 0
    %1584 = vmatprep.mubr.bf16.mxu0 0
    %1585 = vmatmul.mubr.bf16.gmra.mrb[0].mxu0 %v1544
    %v1586 = vpop.f32.mrb[0].mxu0
    %v1587 = vadd.f32 0.0, %v1586
    %v1588 = vpop.f32.mrb[0].mxu0
    %v1589 = vadd.f32 0.0, %v1588
    %v1590 = vpop.f32.mrb[0].mxu0
    %v1591 = vpop.f32.mrb[0].mxu0
    %1592 = vdwg.mxu0
    %s1593 = scalar_lea.vmem %s5, 560
    %v1594 = vld [vmem:[%s1593] sm:$0xff]
    %v1595 = vld [vmem:[%s1593 + $0x8] sm:$0xff]
    %v1596 = vld [vmem:[%s1593 + $0x10] sm:$0xff]
    %v1597 = vld [vmem:[%s1593 + $0x18] sm:$0xff]
    %v1598 = vld [vmem:[%s1593 + $0x20] sm:$0xff]
    %v1599 = vld [vmem:[%s1593 + $0x28] sm:$0xff]
    %v1600 = vld [vmem:[%s1593 + $0x30] sm:$0x11]
    %s1601 = scalar_lea.vmem %s5, 616
    %v1602 = vld [vmem:[%s1601] sm:$0xff]
    %v1603 = vld [vmem:[%s1601 + $0x8] sm:$0xff]
    %v1604 = vld [vmem:[%s1601 + $0x10] sm:$0xff]
    %v1605 = vld [vmem:[%s1601 + $0x18] sm:$0xff]
    %v1606 = vld [vmem:[%s1601 + $0x20] sm:$0xff]
    %v1607 = vld [vmem:[%s1601 + $0x28] sm:$0xff]
    %v1608 = vld [vmem:[%s1601 + $0x30] sm:$0x11]
    %v1609 = vrot.slane %v1506, 1
    %v1617 = vunpack.c.l.b16 %v1602
    %v1618 = vunpack.c.h.b16 %v1602
    %v1619 = vunpack.c.l.b16 %v1603
    %v1620 = vunpack.c.h.b16 %v1603
    %v1621 = vunpack.c.l.b16 %v1604
    %v1622 = vunpack.c.h.b16 %v1604
    %v1623 = vunpack.c.l.b16 %v1605
    %v1624 = vunpack.c.h.b16 %v1605
    %v1625 = vunpack.c.l.b16 %v1606
    %v1626 = vunpack.c.h.b16 %v1606
    %v1627 = vunpack.c.l.b16 %v1607
    %v1628 = vunpack.c.h.b16 %v1607
    %v1629 = vunpack.c.l.b16 %v1608
    %v1630 = vunpack.c.h.b16 %v1608
    %v1631 = vpack.c.b16 %v1619, %v1617
    %v1632 = vpack.c.b16 %v1620, %v1618
    %v1633 = vpack.c.b16 %v1623, %v1621
    %v1634 = vpack.c.b16 %v1624, %v1622
    %v1635 = vpack.c.b16 %v1627, %v1625
    %v1636 = vpack.c.b16 %v1628, %v1626
    %v1637 = vpack.c.b16 %v1629, %v1629
    %v1638 = vpack.c.b16 %v1630, %v1630
    %v1646 = vsel %vm1130, %v1609, 0
    %v1649 = vsel %vm1134, %v1637, 0
    %v1652 = vsel %vm1134, %v1638, 0
    %1654 = vmatprep.subr.bf16.mxu0 %v1632
    %1655 = vmatpush1.bf16.msra.mxu0 %v1631
    %1656 = vmatprep.subr.bf16.mxu0 %v1634
    %1657 = vmatpush1.bf16.msra.mxu0 %v1633
    %1658 = vmatprep.subr.bf16.mxu0 %v1636
    %1659 = vmatpush1.bf16.msra.mxu0 %v1635
    %1660 = vmatprep.subr.bf16.mxu0 %v1652
    %1661 = vmatpush1.bf16.msra.mxu0 %v1649
    %1662 = vmatprep.subr.bf16.mxu0 0
    %1663 = vmatpush1.bf16.msra.mxu0 0
    %1664 = vmatprep.subr.bf16.mxu0 0
    %1665 = vmatpush1.bf16.msra.mxu0 0
    %1666 = vmatprep.subr.bf16.mxu0 0
    %1667 = vmatpush1.bf16.msra.mxu0 0
    %1668 = vmatprep.subr.bf16.mxu0 0
    %1669 = vmatpush1.bf16.msra.mxu0 0
    %1670 = vmatprep.subr.bf16.mxu0 0
    %1671 = vmatpush1.bf16.msra.mxu0 0
    %1672 = vmatprep.subr.bf16.mxu0 0
    %1673 = vmatpush1.bf16.msra.mxu0 0
    %1674 = vmatprep.subr.bf16.mxu0 0
    %1675 = vmatpush1.bf16.msra.mxu0 0
    %1676 = vmatprep.subr.bf16.mxu0 0
    %1677 = vmatpush1.bf16.msra.mxu0 0
    %1678 = vmatprep.subr.bf16.mxu0 0
    %1679 = vmatpush1.bf16.msra.mxu0 0
    %1680 = vmatprep.subr.bf16.mxu0 0
    %1681 = vmatpush1.bf16.msra.mxu0 0
    %1682 = vmatprep.subr.bf16.mxu0 0
    %1683 = vmatpush1.bf16.msra.mxu0 0
    %1684 = vmatprep.subr.bf16.mxu0 0
    %1685 = vmatpush1.bf16.msra.mxu0 0
    %1686 = vmatprep.mubr.bf16.mxu0 0
    %1687 = vmatmul.mubr.bf16.gmra.mrb[0].mxu0 %v1646
    %v1688 = vpop.f32.mrb[0].mxu0
    %v1689 = vadd.f32 0.0, %v1688
    %v1690 = vpop.f32.mrb[0].mxu0
    %v1691 = vadd.f32 0.0, %v1690
    %v1692 = vpop.f32.mrb[0].mxu0
    %v1693 = vpop.f32.mrb[0].mxu0
    %1694 = vdwg.mxu0
    %s1695 = scalar_lea.vmem %s5, 672
    %v1696 = vld [vmem:[%s1695] sm:$0xff]
    %v1697 = vld [vmem:[%s1695 + $0x8] sm:$0xff]
    %v1698 = vld [vmem:[%s1695 + $0x10] sm:$0xff]
    %v1699 = vld [vmem:[%s1695 + $0x18] sm:$0xff]
    %v1700 = vld [vmem:[%s1695 + $0x20] sm:$0xff]
    %v1701 = vld [vmem:[%s1695 + $0x28] sm:$0xff]
    %v1702 = vld [vmem:[%s1695 + $0x30] sm:$0x11]
    %s1703 = scalar_lea.vmem %s5, 728
    %v1704 = vld [vmem:[%s1703] sm:$0xff]
    %v1705 = vld [vmem:[%s1703 + $0x8] sm:$0xff]
    %v1706 = vld [vmem:[%s1703 + $0x10] sm:$0xff]
    %v1707 = vld [vmem:[%s1703 + $0x18] sm:$0xff]
    %v1708 = vld [vmem:[%s1703 + $0x20] sm:$0xff]
    %v1709 = vld [vmem:[%s1703 + $0x28] sm:$0xff]
    %v1710 = vld [vmem:[%s1703 + $0x30] sm:$0x11]
    %v1711 = vrot.slane %v1506, 2
    %v1719 = vunpack.c.l.b16 %v1704
    %v1720 = vunpack.c.h.b16 %v1704
    %v1721 = vunpack.c.l.b16 %v1705
    %v1722 = vunpack.c.h.b16 %v1705
    %v1723 = vunpack.c.l.b16 %v1706
    %v1724 = vunpack.c.h.b16 %v1706
    %v1725 = vunpack.c.l.b16 %v1707
    %v1726 = vunpack.c.h.b16 %v1707
    %v1727 = vunpack.c.l.b16 %v1708
    %v1728 = vunpack.c.h.b16 %v1708
    %v1729 = vunpack.c.l.b16 %v1709
    %v1730 = vunpack.c.h.b16 %v1709
    %v1731 = vunpack.c.l.b16 %v1710
    %v1732 = vunpack.c.h.b16 %v1710
    %v1733 = vpack.c.b16 %v1721, %v1719
    %v1734 = vpack.c.b16 %v1722, %v1720
    %v1735 = vpack.c.b16 %v1725, %v1723
    %v1736 = vpack.c.b16 %v1726, %v1724
    %v1737 = vpack.c.b16 %v1729, %v1727
    %v1738 = vpack.c.b16 %v1730, %v1728
    %v1739 = vpack.c.b16 %v1731, %v1731
    %v1740 = vpack.c.b16 %v1732, %v1732
    %v1748 = vsel %vm1130, %v1711, 0
    %v1751 = vsel %vm1134, %v1739, 0
    %v1754 = vsel %vm1134, %v1740, 0
    %1756 = vmatprep.subr.bf16.mxu0 %v1734
    %1757 = vmatpush1.bf16.msra.mxu0 %v1733
    %1758 = vmatprep.subr.bf16.mxu0 %v1736
    %1759 = vmatpush1.bf16.msra.mxu0 %v1735
    %1760 = vmatprep.subr.bf16.mxu0 %v1738
    %1761 = vmatpush1.bf16.msra.mxu0 %v1737
    %1762 = vmatprep.subr.bf16.mxu0 %v1754
    %1763 = vmatpush1.bf16.msra.mxu0 %v1751
    %1764 = vmatprep.subr.bf16.mxu0 0
    %1765 = vmatpush1.bf16.msra.mxu0 0
    %1766 = vmatprep.subr.bf16.mxu0 0
    %1767 = vmatpush1.bf16.msra.mxu0 0
    %1768 = vmatprep.subr.bf16.mxu0 0
    %1769 = vmatpush1.bf16.msra.mxu0 0
    %1770 = vmatprep.subr.bf16.mxu0 0
    %1771 = vmatpush1.bf16.msra.mxu0 0
    %1772 = vmatprep.subr.bf16.mxu0 0
    %1773 = vmatpush1.bf16.msra.mxu0 0
    %1774 = vmatprep.subr.bf16.mxu0 0
    %1775 = vmatpush1.bf16.msra.mxu0 0
    %1776 = vmatprep.subr.bf16.mxu0 0
    %1777 = vmatpush1.bf16.msra.mxu0 0
    %1778 = vmatprep.subr.bf16.mxu0 0
    %1779 = vmatpush1.bf16.msra.mxu0 0
    %1780 = vmatprep.subr.bf16.mxu0 0
    %1781 = vmatpush1.bf16.msra.mxu0 0
    %1782 = vmatprep.subr.bf16.mxu0 0
    %1783 = vmatpush1.bf16.msra.mxu0 0
    %1784 = vmatprep.subr.bf16.mxu0 0
    %1785 = vmatpush1.bf16.msra.mxu0 0
    %1786 = vmatprep.subr.bf16.mxu0 0
    %1787 = vmatpush1.bf16.msra.mxu0 0
    %1788 = vmatprep.mubr.bf16.mxu0 0
    %1789 = vmatmul.mubr.bf16.gmra.mrb[0].mxu0 %v1748
    %v1790 = vpop.f32.mrb[0].mxu0
    %v1791 = vadd.f32 0.0, %v1790
    %v1792 = vpop.f32.mrb[0].mxu0
    %v1793 = vadd.f32 0.0, %v1792
    %v1794 = vpop.f32.mrb[0].mxu0
    %v1795 = vpop.f32.mrb[0].mxu0
    %1796 = vdwg.mxu0
    %s1797 = scalar_lea.vmem %s5, 784
    %v1798 = vld [vmem:[%s1797] sm:$0xff]
    %v1799 = vld [vmem:[%s1797 + $0x8] sm:$0xff]
    %v1800 = vld [vmem:[%s1797 + $0x10] sm:$0xff]
    %v1801 = vld [vmem:[%s1797 + $0x18] sm:$0xff]
    %v1802 = vld [vmem:[%s1797 + $0x20] sm:$0xff]
    %v1803 = vld [vmem:[%s1797 + $0x28] sm:$0xff]
    %v1804 = vld [vmem:[%s1797 + $0x30] sm:$0x11]
    %s1805 = scalar_lea.vmem %s5, 840
    %v1806 = vld [vmem:[%s1805] sm:$0xff]
    %v1807 = vld [vmem:[%s1805 + $0x8] sm:$0xff]
    %v1808 = vld [vmem:[%s1805 + $0x10] sm:$0xff]
    %v1809 = vld [vmem:[%s1805 + $0x18] sm:$0xff]
    %v1810 = vld [vmem:[%s1805 + $0x20] sm:$0xff]
    %v1811 = vld [vmem:[%s1805 + $0x28] sm:$0xff]
    %v1812 = vld [vmem:[%s1805 + $0x30] sm:$0x11]
    %v1813 = vrot.slane %v1506, 3
    %v1821 = vunpack.c.l.b16 %v1806
    %v1822 = vunpack.c.h.b16 %v1806
    %v1823 = vunpack.c.l.b16 %v1807
    %v1824 = vunpack.c.h.b16 %v1807
    %v1825 = vunpack.c.l.b16 %v1808
    %v1826 = vunpack.c.h.b16 %v1808
    %v1827 = vunpack.c.l.b16 %v1809
    %v1828 = vunpack.c.h.b16 %v1809
    %v1829 = vunpack.c.l.b16 %v1810
    %v1830 = vunpack.c.h.b16 %v1810
    %v1831 = vunpack.c.l.b16 %v1811
    %v1832 = vunpack.c.h.b16 %v1811
    %v1833 = vunpack.c.l.b16 %v1812
    %v1834 = vunpack.c.h.b16 %v1812
    %v1835 = vpack.c.b16 %v1823, %v1821
    %v1836 = vpack.c.b16 %v1824, %v1822
    %v1837 = vpack.c.b16 %v1827, %v1825
    %v1838 = vpack.c.b16 %v1828, %v1826
    %v1839 = vpack.c.b16 %v1831, %v1829
    %v1840 = vpack.c.b16 %v1832, %v1830
    %v1841 = vpack.c.b16 %v1833, %v1833
    %v1842 = vpack.c.b16 %v1834, %v1834
    %v1850 = vsel %vm1130, %v1813, 0
    %v1853 = vsel %vm1134, %v1841, 0
    %v1856 = vsel %vm1134, %v1842, 0
    %1858 = vmatprep.subr.bf16.mxu0 %v1836
    %1859 = vmatpush1.bf16.msra.mxu0 %v1835
    %1860 = vmatprep.subr.bf16.mxu0 %v1838
    %1861 = vmatpush1.bf16.msra.mxu0 %v1837
    %1862 = vmatprep.subr.bf16.mxu0 %v1840
    %1863 = vmatpush1.bf16.msra.mxu0 %v1839
    %1864 = vmatprep.subr.bf16.mxu0 %v1856
    %1865 = vmatpush1.bf16.msra.mxu0 %v1853
    %1866 = vmatprep.subr.bf16.mxu0 0
    %1867 = vmatpush1.bf16.msra.mxu0 0
    %1868 = vmatprep.subr.bf16.mxu0 0
    %1869 = vmatpush1.bf16.msra.mxu0 0
    %1870 = vmatprep.subr.bf16.mxu0 0
    %1871 = vmatpush1.bf16.msra.mxu0 0
    %1872 = vmatprep.subr.bf16.mxu0 0
    %1873 = vmatpush1.bf16.msra.mxu0 0
    %1874 = vmatprep.subr.bf16.mxu0 0
    %1875 = vmatpush1.bf16.msra.mxu0 0
    %1876 = vmatprep.subr.bf16.mxu0 0
    %1877 = vmatpush1.bf16.msra.mxu0 0
    %1878 = vmatprep.subr.bf16.mxu0 0
    %1879 = vmatpush1.bf16.msra.mxu0 0
    %1880 = vmatprep.subr.bf16.mxu0 0
    %1881 = vmatpush1.bf16.msra.mxu0 0
    %1882 = vmatprep.subr.bf16.mxu0 0
    %1883 = vmatpush1.bf16.msra.mxu0 0
    %1884 = vmatprep.subr.bf16.mxu0 0
    %1885 = vmatpush1.bf16.msra.mxu0 0
    %1886 = vmatprep.subr.bf16.mxu0 0
    %1887 = vmatpush1.bf16.msra.mxu0 0
    %1888 = vmatprep.subr.bf16.mxu0 0
    %1889 = vmatpush1.bf16.msra.mxu0 0
    %1890 = vmatprep.mubr.bf16.mxu0 0
    %1891 = vmatmul.mubr.bf16.gmra.mrb[0].mxu0 %v1850
    %v1892 = vpop.f32.mrb[0].mxu0
    %v1893 = vadd.f32 0.0, %v1892
    %v1894 = vpop.f32.mrb[0].mxu0
    %v1895 = vadd.f32 0.0, %v1894
    %v1896 = vpop.f32.mrb[0].mxu0
    %v1897 = vpop.f32.mrb[0].mxu0
    %1898 = vdwg.mxu0
    %v1899 = vpack.c.bf16 %v1074, %v1074
    %s1900 = scalar_lea.vmem %s5, 896
    %v1901 = vld [vmem:[%s1900] sm:$0xff]
    %v1902 = vld [vmem:[%s1900 + $0x8] sm:$0xff]
    %v1903 = vld [vmem:[%s1900 + $0x10] sm:$0xff]
    %v1904 = vld [vmem:[%s1900 + $0x18] sm:$0xff]
    %v1905 = vld [vmem:[%s1900 + $0x20] sm:$0xff]
    %v1906 = vld [vmem:[%s1900 + $0x28] sm:$0xff]
    %v1907 = vld [vmem:[%s1900 + $0x30] sm:$0x11]
    %s1908 = scalar_lea.vmem %s5, 952
    %v1909 = vld [vmem:[%s1908] sm:$0xff]
    %v1910 = vld [vmem:[%s1908 + $0x8] sm:$0xff]
    %v1911 = vld [vmem:[%s1908 + $0x10] sm:$0xff]
    %v1912 = vld [vmem:[%s1908 + $0x18] sm:$0xff]
    %v1913 = vld [vmem:[%s1908 + $0x20] sm:$0xff]
    %v1914 = vld [vmem:[%s1908 + $0x28] sm:$0xff]
    %v1915 = vld [vmem:[%s1908 + $0x30] sm:$0x11]
    %v1917 = vshrl.u32 %v1899, 16
    %v1926 = vunpack.c.l.b16 %v1909
    %v1927 = vunpack.c.h.b16 %v1909
    %v1928 = vunpack.c.l.b16 %v1910
    %v1929 = vunpack.c.h.b16 %v1910
    %v1930 = vunpack.c.l.b16 %v1911
    %v1931 = vunpack.c.h.b16 %v1911
    %v1932 = vunpack.c.l.b16 %v1912
    %v1933 = vunpack.c.h.b16 %v1912
    %v1934 = vunpack.c.l.b16 %v1913
    %v1935 = vunpack.c.h.b16 %v1913
    %v1936 = vunpack.c.l.b16 %v1914
    %v1937 = vunpack.c.h.b16 %v1914
    %v1938 = vunpack.c.l.b16 %v1915
    %v1939 = vunpack.c.h.b16 %v1915
    %v1940 = vpack.c.b16 %v1928, %v1926
    %v1941 = vpack.c.b16 %v1929, %v1927
    %v1942 = vpack.c.b16 %v1932, %v1930
    %v1943 = vpack.c.b16 %v1933, %v1931
    %v1944 = vpack.c.b16 %v1936, %v1934
    %v1945 = vpack.c.b16 %v1937, %v1935
    %v1946 = vpack.c.b16 %v1938, %v1938
    %v1947 = vpack.c.b16 %v1939, %v1939
    %v1955 = vsel %vm1130, %v1917, 0
    %v1958 = vsel %vm1134, %v1946, 0
    %v1961 = vsel %vm1134, %v1947, 0
    %1963 = vmatprep.subr.bf16.mxu0 %v1941
    %1964 = vmatpush1.bf16.msra.mxu0 %v1940
    %1965 = vmatprep.subr.bf16.mxu0 %v1943
    %1966 = vmatpush1.bf16.msra.mxu0 %v1942
    %1967 = vmatprep.subr.bf16.mxu0 %v1945
    %1968 = vmatpush1.bf16.msra.mxu0 %v1944
    %1969 = vmatprep.subr.bf16.mxu0 %v1961
    %1970 = vmatpush1.bf16.msra.mxu0 %v1958
    %1971 = vmatprep.subr.bf16.mxu0 0
    %1972 = vmatpush1.bf16.msra.mxu0 0
    %1973 = vmatprep.subr.bf16.mxu0 0
    %1974 = vmatpush1.bf16.msra.mxu0 0
    %1975 = vmatprep.subr.bf16.mxu0 0
    %1976 = vmatpush1.bf16.msra.mxu0 0
    %1977 = vmatprep.subr.bf16.mxu0 0
    %1978 = vmatpush1.bf16.msra.mxu0 0
    %1979 = vmatprep.subr.bf16.mxu0 0
    %1980 = vmatpush1.bf16.msra.mxu0 0
    %1981 = vmatprep.subr.bf16.mxu0 0
    %1982 = vmatpush1.bf16.msra.mxu0 0
    %1983 = vmatprep.subr.bf16.mxu0 0
    %1984 = vmatpush1.bf16.msra.mxu0 0
    %1985 = vmatprep.subr.bf16.mxu0 0
    %1986 = vmatpush1.bf16.msra.mxu0 0
    %1987 = vmatprep.subr.bf16.mxu0 0
    %1988 = vmatpush1.bf16.msra.mxu0 0
    %1989 = vmatprep.subr.bf16.mxu0 0
    %1990 = vmatpush1.bf16.msra.mxu0 0
    %1991 = vmatprep.subr.bf16.mxu0 0
    %1992 = vmatpush1.bf16.msra.mxu0 0
    %1993 = vmatprep.subr.bf16.mxu0 0
    %1994 = vmatpush1.bf16.msra.mxu0 0
    %1995 = vmatprep.mubr.bf16.mxu0 0
    %1996 = vmatmul.mubr.bf16.gmra.mrb[0].mxu0 %v1955
    %v1997 = vpop.f32.mrb[0].mxu0
    %v1998 = vadd.f32 0.0, %v1997
    %v1999 = vpop.f32.mrb[0].mxu0
    %v2000 = vadd.f32 0.0, %v1999
    %v2001 = vpop.f32.mrb[0].mxu0
    %v2002 = vpop.f32.mrb[0].mxu0
    %2003 = vdwg.mxu0
    %s2004 = scalar_lea.vmem %s5, 1008
    %v2005 = vld [vmem:[%s2004] sm:$0xff]
    %v2006 = vld [vmem:[%s2004 + $0x8] sm:$0xff]
    %v2007 = vld [vmem:[%s2004 + $0x10] sm:$0xff]
    %v2008 = vld [vmem:[%s2004 + $0x18] sm:$0xff]
    %v2009 = vld [vmem:[%s2004 + $0x20] sm:$0xff]
    %v2010 = vld [vmem:[%s2004 + $0x28] sm:$0xff]
    %v2011 = vld [vmem:[%s2004 + $0x30] sm:$0x11]
    %s2012 = scalar_lea.vmem %s5, 1064
    %v2013 = vld [vmem:[%s2012] sm:$0xff]
    %v2014 = vld [vmem:[%s2012 + $0x8] sm:$0xff]
    %v2015 = vld [vmem:[%s2012 + $0x10] sm:$0xff]
    %v2016 = vld [vmem:[%s2012 + $0x18] sm:$0xff]
    %v2017 = vld [vmem:[%s2012 + $0x20] sm:$0xff]
    %v2018 = vld [vmem:[%s2012 + $0x28] sm:$0xff]
    %v2019 = vld [vmem:[%s2012 + $0x30] sm:$0x11]
    %v2020 = vrot.slane %v1917, 1
    %v2028 = vunpack.c.l.b16 %v2013
    %v2029 = vunpack.c.h.b16 %v2013
    %v2030 = vunpack.c.l.b16 %v2014
    %v2031 = vunpack.c.h.b16 %v2014
    %v2032 = vunpack.c.l.b16 %v2015
    %v2033 = vunpack.c.h.b16 %v2015
    %v2034 = vunpack.c.l.b16 %v2016
    %v2035 = vunpack.c.h.b16 %v2016
    %v2036 = vunpack.c.l.b16 %v2017
    %v2037 = vunpack.c.h.b16 %v2017
    %v2038 = vunpack.c.l.b16 %v2018
    %v2039 = vunpack.c.h.b16 %v2018
    %v2040 = vunpack.c.l.b16 %v2019
    %v2041 = vunpack.c.h.b16 %v2019
    %v2042 = vpack.c.b16 %v2030, %v2028
    %v2043 = vpack.c.b16 %v2031, %v2029
    %v2044 = vpack.c.b16 %v2034, %v2032
    %v2045 = vpack.c.b16 %v2035, %v2033
    %v2046 = vpack.c.b16 %v2038, %v2036
    %v2047 = vpack.c.b16 %v2039, %v2037
    %v2048 = vpack.c.b16 %v2040, %v2040
    %v2049 = vpack.c.b16 %v2041, %v2041
    %v2057 = vsel %vm1130, %v2020, 0
    %v2060 = vsel %vm1134, %v2048, 0
    %v2063 = vsel %vm1134, %v2049, 0
    %2065 = vmatprep.subr.bf16.mxu0 %v2043
    %2066 = vmatpush1.bf16.msra.mxu0 %v2042
    %2067 = vmatprep.subr.bf16.mxu0 %v2045
    %2068 = vmatpush1.bf16.msra.mxu0 %v2044
    %2069 = vmatprep.subr.bf16.mxu0 %v2047
    %2070 = vmatpush1.bf16.msra.mxu0 %v2046
    %2071 = vmatprep.subr.bf16.mxu0 %v2063
    %2072 = vmatpush1.bf16.msra.mxu0 %v2060
    %2073 = vmatprep.subr.bf16.mxu0 0
    %2074 = vmatpush1.bf16.msra.mxu0 0
    %2075 = vmatprep.subr.bf16.mxu0 0
    %2076 = vmatpush1.bf16.msra.mxu0 0
    %2077 = vmatprep.subr.bf16.mxu0 0
    %2078 = vmatpush1.bf16.msra.mxu0 0
    %2079 = vmatprep.subr.bf16.mxu0 0
    %2080 = vmatpush1.bf16.msra.mxu0 0
    %2081 = vmatprep.subr.bf16.mxu0 0
    %2082 = vmatpush1.bf16.msra.mxu0 0
    %2083 = vmatprep.subr.bf16.mxu0 0
    %2084 = vmatpush1.bf16.msra.mxu0 0
    %2085 = vmatprep.subr.bf16.mxu0 0
    %2086 = vmatpush1.bf16.msra.mxu0 0
    %2087 = vmatprep.subr.bf16.mxu0 0
    %2088 = vmatpush1.bf16.msra.mxu0 0
    %2089 = vmatprep.subr.bf16.mxu0 0
    %2090 = vmatpush1.bf16.msra.mxu0 0
    %2091 = vmatprep.subr.bf16.mxu0 0
    %2092 = vmatpush1.bf16.msra.mxu0 0
    %2093 = vmatprep.subr.bf16.mxu0 0
    %2094 = vmatpush1.bf16.msra.mxu0 0
    %2095 = vmatprep.subr.bf16.mxu0 0
    %2096 = vmatpush1.bf16.msra.mxu0 0
    %2097 = vmatprep.mubr.bf16.mxu0 0
    %2098 = vmatmul.mubr.bf16.gmra.mrb[0].mxu0 %v2057
    %v2099 = vpop.f32.mrb[0].mxu0
    %v2100 = vadd.f32 0.0, %v2099
    %v2101 = vpop.f32.mrb[0].mxu0
    %v2102 = vadd.f32 0.0, %v2101
    %v2103 = vpop.f32.mrb[0].mxu0
    %v2104 = vpop.f32.mrb[0].mxu0
    %2105 = vdwg.mxu0
    %s2106 = scalar_lea.vmem %s5, 1120
    %v2107 = vld [vmem:[%s2106] sm:$0xff]
    %v2108 = vld [vmem:[%s2106 + $0x8] sm:$0xff]
    %v2109 = vld [vmem:[%s2106 + $0x10] sm:$0xff]
    %v2110 = vld [vmem:[%s2106 + $0x18] sm:$0xff]
    %v2111 = vld [vmem:[%s2106 + $0x20] sm:$0xff]
    %v2112 = vld [vmem:[%s2106 + $0x28] sm:$0xff]
    %v2113 = vld [vmem:[%s2106 + $0x30] sm:$0x11]
    %s2114 = scalar_lea.vmem %s5, 1176
    %v2115 = vld [vmem:[%s2114] sm:$0xff]
    %v2116 = vld [vmem:[%s2114 + $0x8] sm:$0xff]
    %v2117 = vld [vmem:[%s2114 + $0x10] sm:$0xff]
    %v2118 = vld [vmem:[%s2114 + $0x18] sm:$0xff]
    %v2119 = vld [vmem:[%s2114 + $0x20] sm:$0xff]
    %v2120 = vld [vmem:[%s2114 + $0x28] sm:$0xff]
    %v2121 = vld [vmem:[%s2114 + $0x30] sm:$0x11]
    %v2122 = vrot.slane %v1917, 2
    %v2130 = vunpack.c.l.b16 %v2115
    %v2131 = vunpack.c.h.b16 %v2115
    %v2132 = vunpack.c.l.b16 %v2116
    %v2133 = vunpack.c.h.b16 %v2116
    %v2134 = vunpack.c.l.b16 %v2117
    %v2135 = vunpack.c.h.b16 %v2117
    %v2136 = vunpack.c.l.b16 %v2118
    %v2137 = vunpack.c.h.b16 %v2118
    %v2138 = vunpack.c.l.b16 %v2119
    %v2139 = vunpack.c.h.b16 %v2119
    %v2140 = vunpack.c.l.b16 %v2120
    %v2141 = vunpack.c.h.b16 %v2120
    %v2142 = vunpack.c.l.b16 %v2121
    %v2143 = vunpack.c.h.b16 %v2121
    %v2144 = vpack.c.b16 %v2132, %v2130
    %v2145 = vpack.c.b16 %v2133, %v2131
    %v2146 = vpack.c.b16 %v2136, %v2134
    %v2147 = vpack.c.b16 %v2137, %v2135
    %v2148 = vpack.c.b16 %v2140, %v2138
    %v2149 = vpack.c.b16 %v2141, %v2139
    %v2150 = vpack.c.b16 %v2142, %v2142
    %v2151 = vpack.c.b16 %v2143, %v2143
    %v2159 = vsel %vm1130, %v2122, 0
    %v2162 = vsel %vm1134, %v2150, 0
    %v2165 = vsel %vm1134, %v2151, 0
    %2167 = vmatprep.subr.bf16.mxu0 %v2145
    %2168 = vmatpush1.bf16.msra.mxu0 %v2144
    %2169 = vmatprep.subr.bf16.mxu0 %v2147
    %2170 = vmatpush1.bf16.msra.mxu0 %v2146
    %2171 = vmatprep.subr.bf16.mxu0 %v2149
    %2172 = vmatpush1.bf16.msra.mxu0 %v2148
    %2173 = vmatprep.subr.bf16.mxu0 %v2165
    %2174 = vmatpush1.bf16.msra.mxu0 %v2162
    %2175 = vmatprep.subr.bf16.mxu0 0
    %2176 = vmatpush1.bf16.msra.mxu0 0
    %2177 = vmatprep.subr.bf16.mxu0 0
    %2178 = vmatpush1.bf16.msra.mxu0 0
    %2179 = vmatprep.subr.bf16.mxu0 0
    %2180 = vmatpush1.bf16.msra.mxu0 0
    %2181 = vmatprep.subr.bf16.mxu0 0
    %2182 = vmatpush1.bf16.msra.mxu0 0
    %2183 = vmatprep.subr.bf16.mxu0 0
    %2184 = vmatpush1.bf16.msra.mxu0 0
    %2185 = vmatprep.subr.bf16.mxu0 0
    %2186 = vmatpush1.bf16.msra.mxu0 0
    %2187 = vmatprep.subr.bf16.mxu0 0
    %2188 = vmatpush1.bf16.msra.mxu0 0
    %2189 = vmatprep.subr.bf16.mxu0 0
    %2190 = vmatpush1.bf16.msra.mxu0 0
    %2191 = vmatprep.subr.bf16.mxu0 0
    %2192 = vmatpush1.bf16.msra.mxu0 0
    %2193 = vmatprep.subr.bf16.mxu0 0
    %2194 = vmatpush1.bf16.msra.mxu0 0
    %2195 = vmatprep.subr.bf16.mxu0 0
    %2196 = vmatpush1.bf16.msra.mxu0 0
    %2197 = vmatprep.subr.bf16.mxu0 0
    %2198 = vmatpush1.bf16.msra.mxu0 0
    %2199 = vmatprep.mubr.bf16.mxu0 0
    %2200 = vmatmul.mubr.bf16.gmra.mrb[0].mxu0 %v2159
    %v2201 = vpop.f32.mrb[0].mxu0
    %v2202 = vadd.f32 0.0, %v2201
    %v2203 = vpop.f32.mrb[0].mxu0
    %v2204 = vadd.f32 0.0, %v2203
    %v2205 = vpop.f32.mrb[0].mxu0
    %v2206 = vpop.f32.mrb[0].mxu0
    %2207 = vdwg.mxu0
    %s2208 = scalar_lea.vmem %s5, 1232
    %v2209 = vld [vmem:[%s2208] sm:$0xff]
    %v2210 = vld [vmem:[%s2208 + $0x8] sm:$0xff]
    %v2211 = vld [vmem:[%s2208 + $0x10] sm:$0xff]
    %v2212 = vld [vmem:[%s2208 + $0x18] sm:$0xff]
    %v2213 = vld [vmem:[%s2208 + $0x20] sm:$0xff]
    %v2214 = vld [vmem:[%s2208 + $0x28] sm:$0xff]
    %v2215 = vld [vmem:[%s2208 + $0x30] sm:$0x11]
    %s2216 = scalar_lea.vmem %s5, 1288
    %v2217 = vld [vmem:[%s2216] sm:$0xff]
    %v2218 = vld [vmem:[%s2216 + $0x8] sm:$0xff]
    %v2219 = vld [vmem:[%s2216 + $0x10] sm:$0xff]
    %v2220 = vld [vmem:[%s2216 + $0x18] sm:$0xff]
    %v2221 = vld [vmem:[%s2216 + $0x20] sm:$0xff]
    %v2222 = vld [vmem:[%s2216 + $0x28] sm:$0xff]
    %v2223 = vld [vmem:[%s2216 + $0x30] sm:$0x11]
    %v2224 = vrot.slane %v1917, 3
    %v2232 = vunpack.c.l.b16 %v2217
    %v2233 = vunpack.c.h.b16 %v2217
    %v2234 = vunpack.c.l.b16 %v2218
    %v2235 = vunpack.c.h.b16 %v2218
    %v2236 = vunpack.c.l.b16 %v2219
    %v2237 = vunpack.c.h.b16 %v2219
    %v2238 = vunpack.c.l.b16 %v2220
    %v2239 = vunpack.c.h.b16 %v2220
    %v2240 = vunpack.c.l.b16 %v2221
    %v2241 = vunpack.c.h.b16 %v2221
    %v2242 = vunpack.c.l.b16 %v2222
    %v2243 = vunpack.c.h.b16 %v2222
    %v2244 = vunpack.c.l.b16 %v2223
    %v2245 = vunpack.c.h.b16 %v2223
    %v2246 = vpack.c.b16 %v2234, %v2232
    %v2247 = vpack.c.b16 %v2235, %v2233
    %v2248 = vpack.c.b16 %v2238, %v2236
    %v2249 = vpack.c.b16 %v2239, %v2237
    %v2250 = vpack.c.b16 %v2242, %v2240
    %v2251 = vpack.c.b16 %v2243, %v2241
    %v2252 = vpack.c.b16 %v2244, %v2244
    %v2253 = vpack.c.b16 %v2245, %v2245
    %v2261 = vsel %vm1130, %v2224, 0
    %v2264 = vsel %vm1134, %v2252, 0
    %v2267 = vsel %vm1134, %v2253, 0
    %2269 = vmatprep.subr.bf16.mxu0 %v2247
    %2270 = vmatpush1.bf16.msra.mxu0 %v2246
    %2271 = vmatprep.subr.bf16.mxu0 %v2249
    %2272 = vmatpush1.bf16.msra.mxu0 %v2248
    %2273 = vmatprep.subr.bf16.mxu0 %v2251
    %2274 = vmatpush1.bf16.msra.mxu0 %v2250
    %2275 = vmatprep.subr.bf16.mxu0 %v2267
    %2276 = vmatpush1.bf16.msra.mxu0 %v2264
    %2277 = vmatprep.subr.bf16.mxu0 0
    %2278 = vmatpush1.bf16.msra.mxu0 0
    %2279 = vmatprep.subr.bf16.mxu0 0
    %2280 = vmatpush1.bf16.msra.mxu0 0
    %2281 = vmatprep.subr.bf16.mxu0 0
    %2282 = vmatpush1.bf16.msra.mxu0 0
    %2283 = vmatprep.subr.bf16.mxu0 0
    %2284 = vmatpush1.bf16.msra.mxu0 0
    %2285 = vmatprep.subr.bf16.mxu0 0
    %2286 = vmatpush1.bf16.msra.mxu0 0
    %2287 = vmatprep.subr.bf16.mxu0 0
    %2288 = vmatpush1.bf16.msra.mxu0 0
    %2289 = vmatprep.subr.bf16.mxu0 0
    %2290 = vmatpush1.bf16.msra.mxu0 0
    %2291 = vmatprep.subr.bf16.mxu0 0
    %2292 = vmatpush1.bf16.msra.mxu0 0
    %2293 = vmatprep.subr.bf16.mxu0 0
    %2294 = vmatpush1.bf16.msra.mxu0 0
    %2295 = vmatprep.subr.bf16.mxu0 0
    %2296 = vmatpush1.bf16.msra.mxu0 0
    %2297 = vmatprep.subr.bf16.mxu0 0
    %2298 = vmatpush1.bf16.msra.mxu0 0
    %2299 = vmatprep.subr.bf16.mxu0 0
    %2300 = vmatpush1.bf16.msra.mxu0 0
    %2301 = vmatprep.mubr.bf16.mxu0 0
    %2302 = vmatmul.mubr.bf16.gmra.mrb[0].mxu0 %v2261
    %v2303 = vpop.f32.mrb[0].mxu0
    %v2304 = vadd.f32 0.0, %v2303
    %v2305 = vpop.f32.mrb[0].mxu0
    %v2306 = vadd.f32 0.0, %v2305
    %v2307 = vpop.f32.mrb[0].mxu0
    %v2308 = vpop.f32.mrb[0].mxu0
    %2309 = vdwg.mxu0
    %v2310 = vpack.c.bf16 %v1075, %v1075
    %s2311 = scalar_lea.vmem %s5, 1344
    %v2312 = vld [vmem:[%s2311] sm:$0xff]
    %v2313 = vld [vmem:[%s2311 + $0x8] sm:$0xff]
    %v2314 = vld [vmem:[%s2311 + $0x10] sm:$0xff]
    %v2315 = vld [vmem:[%s2311 + $0x18] sm:$0xff]
    %v2316 = vld [vmem:[%s2311 + $0x20] sm:$0xff]
    %v2317 = vld [vmem:[%s2311 + $0x28] sm:$0xff]
    %v2318 = vld [vmem:[%s2311 + $0x30] sm:$0x11]
    %s2319 = scalar_lea.vmem %s5, 1400
    %v2320 = vld [vmem:[%s2319] sm:$0xff]
    %v2321 = vld [vmem:[%s2319 + $0x8] sm:$0xff]
    %v2322 = vld [vmem:[%s2319 + $0x10] sm:$0xff]
    %v2323 = vld [vmem:[%s2319 + $0x18] sm:$0xff]
    %v2324 = vld [vmem:[%s2319 + $0x20] sm:$0xff]
    %v2325 = vld [vmem:[%s2319 + $0x28] sm:$0xff]
    %v2326 = vld [vmem:[%s2319 + $0x30] sm:$0x11]
    %v2328 = vshrl.u32 %v2310, 16
    %v2337 = vunpack.c.l.b16 %v2320
    %v2338 = vunpack.c.h.b16 %v2320
    %v2339 = vunpack.c.l.b16 %v2321
    %v2340 = vunpack.c.h.b16 %v2321
    %v2341 = vunpack.c.l.b16 %v2322
    %v2342 = vunpack.c.h.b16 %v2322
    %v2343 = vunpack.c.l.b16 %v2323
    %v2344 = vunpack.c.h.b16 %v2323
    %v2345 = vunpack.c.l.b16 %v2324
    %v2346 = vunpack.c.h.b16 %v2324
    %v2347 = vunpack.c.l.b16 %v2325
    %v2348 = vunpack.c.h.b16 %v2325
    %v2349 = vunpack.c.l.b16 %v2326
    %v2350 = vunpack.c.h.b16 %v2326
    %v2351 = vpack.c.b16 %v2339, %v2337
    %v2352 = vpack.c.b16 %v2340, %v2338
    %v2353 = vpack.c.b16 %v2343, %v2341
    %v2354 = vpack.c.b16 %v2344, %v2342
    %v2355 = vpack.c.b16 %v2347, %v2345
    %v2356 = vpack.c.b16 %v2348, %v2346
    %v2357 = vpack.c.b16 %v2349, %v2349
    %v2358 = vpack.c.b16 %v2350, %v2350
    %v2366 = vsel %vm1130, %v2328, 0
    %v2369 = vsel %vm1134, %v2357, 0
    %v2372 = vsel %vm1134, %v2358, 0
    %2374 = vmatprep.subr.bf16.mxu0 %v2352
    %2375 = vmatpush1.bf16.msra.mxu0 %v2351
    %2376 = vmatprep.subr.bf16.mxu0 %v2354
    %2377 = vmatpush1.bf16.msra.mxu0 %v2353
    %2378 = vmatprep.subr.bf16.mxu0 %v2356
    %2379 = vmatpush1.bf16.msra.mxu0 %v2355
    %2380 = vmatprep.subr.bf16.mxu0 %v2372
    %2381 = vmatpush1.bf16.msra.mxu0 %v2369
    %2382 = vmatprep.subr.bf16.mxu0 0
    %2383 = vmatpush1.bf16.msra.mxu0 0
    %2384 = vmatprep.subr.bf16.mxu0 0
    %2385 = vmatpush1.bf16.msra.mxu0 0
    %2386 = vmatprep.subr.bf16.mxu0 0
    %2387 = vmatpush1.bf16.msra.mxu0 0
    %2388 = vmatprep.subr.bf16.mxu0 0
    %2389 = vmatpush1.bf16.msra.mxu0 0
    %2390 = vmatprep.subr.bf16.mxu0 0
    %2391 = vmatpush1.bf16.msra.mxu0 0
    %2392 = vmatprep.subr.bf16.mxu0 0
    %2393 = vmatpush1.bf16.msra.mxu0 0
    %2394 = vmatprep.subr.bf16.mxu0 0
    %2395 = vmatpush1.bf16.msra.mxu0 0
    %2396 = vmatprep.subr.bf16.mxu0 0
    %2397 = vmatpush1.bf16.msra.mxu0 0
    %2398 = vmatprep.subr.bf16.mxu0 0
    %2399 = vmatpush1.bf16.msra.mxu0 0
    %2400 = vmatprep.subr.bf16.mxu0 0
    %2401 = vmatpush1.bf16.msra.mxu0 0
    %2402 = vmatprep.subr.bf16.mxu0 0
    %2403 = vmatpush1.bf16.msra.mxu0 0
    %2404 = vmatprep.subr.bf16.mxu0 0
    %2405 = vmatpush1.bf16.msra.mxu0 0
    %2406 = vmatprep.mubr.bf16.mxu0 0
    %2407 = vmatmul.mubr.bf16.gmra.mrb[0].mxu0 %v2366
    %v2408 = vpop.f32.mrb[0].mxu0
    %v2409 = vadd.f32 0.0, %v2408
    %v2410 = vpop.f32.mrb[0].mxu0
    %v2411 = vadd.f32 0.0, %v2410
    %v2412 = vpop.f32.mrb[0].mxu0
    %v2413 = vpop.f32.mrb[0].mxu0
    %2414 = vdwg.mxu0
    %s2415 = scalar_lea.vmem %s5, 1456
    %v2416 = vld [vmem:[%s2415] sm:$0xff]
    %v2417 = vld [vmem:[%s2415 + $0x8] sm:$0xff]
    %v2418 = vld [vmem:[%s2415 + $0x10] sm:$0xff]
    %v2419 = vld [vmem:[%s2415 + $0x18] sm:$0xff]
    %v2420 = vld [vmem:[%s2415 + $0x20] sm:$0xff]
    %v2421 = vld [vmem:[%s2415 + $0x28] sm:$0xff]
    %v2422 = vld [vmem:[%s2415 + $0x30] sm:$0x11]
    %s2423 = scalar_lea.vmem %s5, 1512
    %v2424 = vld [vmem:[%s2423] sm:$0xff]
    %v2425 = vld [vmem:[%s2423 + $0x8] sm:$0xff]
    %v2426 = vld [vmem:[%s2423 + $0x10] sm:$0xff]
    %v2427 = vld [vmem:[%s2423 + $0x18] sm:$0xff]
    %v2428 = vld [vmem:[%s2423 + $0x20] sm:$0xff]
    %v2429 = vld [vmem:[%s2423 + $0x28] sm:$0xff]
    %v2430 = vld [vmem:[%s2423 + $0x30] sm:$0x11]
    %v2431 = vrot.slane %v2328, 1
    %v2439 = vunpack.c.l.b16 %v2424
    %v2440 = vunpack.c.h.b16 %v2424
    %v2441 = vunpack.c.l.b16 %v2425
    %v2442 = vunpack.c.h.b16 %v2425
    %v2443 = vunpack.c.l.b16 %v2426
    %v2444 = vunpack.c.h.b16 %v2426
    %v2445 = vunpack.c.l.b16 %v2427
    %v2446 = vunpack.c.h.b16 %v2427
    %v2447 = vunpack.c.l.b16 %v2428
    %v2448 = vunpack.c.h.b16 %v2428
    %v2449 = vunpack.c.l.b16 %v2429
    %v2450 = vunpack.c.h.b16 %v2429
    %v2451 = vunpack.c.l.b16 %v2430
    %v2452 = vunpack.c.h.b16 %v2430
    %v2453 = vpack.c.b16 %v2441, %v2439
    %v2454 = vpack.c.b16 %v2442, %v2440
    %v2455 = vpack.c.b16 %v2445, %v2443
    %v2456 = vpack.c.b16 %v2446, %v2444
    %v2457 = vpack.c.b16 %v2449, %v2447
    %v2458 = vpack.c.b16 %v2450, %v2448
    %v2459 = vpack.c.b16 %v2451, %v2451
    %v2460 = vpack.c.b16 %v2452, %v2452
    %v2468 = vsel %vm1130, %v2431, 0
    %v2471 = vsel %vm1134, %v2459, 0
    %v2474 = vsel %vm1134, %v2460, 0
    %2476 = vmatprep.subr.bf16.mxu0 %v2454
    %2477 = vmatpush1.bf16.msra.mxu0 %v2453
    %2478 = vmatprep.subr.bf16.mxu0 %v2456
    %2479 = vmatpush1.bf16.msra.mxu0 %v2455
    %2480 = vmatprep.subr.bf16.mxu0 %v2458
    %2481 = vmatpush1.bf16.msra.mxu0 %v2457
    %2482 = vmatprep.subr.bf16.mxu0 %v2474
    %2483 = vmatpush1.bf16.msra.mxu0 %v2471
    %2484 = vmatprep.subr.bf16.mxu0 0
    %2485 = vmatpush1.bf16.msra.mxu0 0
    %2486 = vmatprep.subr.bf16.mxu0 0
    %2487 = vmatpush1.bf16.msra.mxu0 0
    %2488 = vmatprep.subr.bf16.mxu0 0
    %2489 = vmatpush1.bf16.msra.mxu0 0
    %2490 = vmatprep.subr.bf16.mxu0 0
    %2491 = vmatpush1.bf16.msra.mxu0 0
    %2492 = vmatprep.subr.bf16.mxu0 0
    %2493 = vmatpush1.bf16.msra.mxu0 0
    %2494 = vmatprep.subr.bf16.mxu0 0
    %2495 = vmatpush1.bf16.msra.mxu0 0
    %2496 = vmatprep.subr.bf16.mxu0 0
    %2497 = vmatpush1.bf16.msra.mxu0 0
    %2498 = vmatprep.subr.bf16.mxu0 0
    %2499 = vmatpush1.bf16.msra.mxu0 0
    %2500 = vmatprep.subr.bf16.mxu0 0
    %2501 = vmatpush1.bf16.msra.mxu0 0
    %2502 = vmatprep.subr.bf16.mxu0 0
    %2503 = vmatpush1.bf16.msra.mxu0 0
    %2504 = vmatprep.subr.bf16.mxu0 0
    %2505 = vmatpush1.bf16.msra.mxu0 0
    %2506 = vmatprep.subr.bf16.mxu0 0
    %2507 = vmatpush1.bf16.msra.mxu0 0
    %2508 = vmatprep.mubr.bf16.mxu0 0
    %2509 = vmatmul.mubr.bf16.gmra.mrb[0].mxu0 %v2468
    %v2510 = vpop.f32.mrb[0].mxu0
    %v2511 = vadd.f32 0.0, %v2510
    %v2512 = vpop.f32.mrb[0].mxu0
    %v2513 = vadd.f32 0.0, %v2512
    %v2514 = vpop.f32.mrb[0].mxu0
    %v2515 = vpop.f32.mrb[0].mxu0
    %2516 = vdwg.mxu0
    %s2517 = scalar_lea.vmem %s5, 1568
    %v2518 = vld [vmem:[%s2517] sm:$0xff]
    %v2519 = vld [vmem:[%s2517 + $0x8] sm:$0xff]
    %v2520 = vld [vmem:[%s2517 + $0x10] sm:$0xff]
    %v2521 = vld [vmem:[%s2517 + $0x18] sm:$0xff]
    %v2522 = vld [vmem:[%s2517 + $0x20] sm:$0xff]
    %v2523 = vld [vmem:[%s2517 + $0x28] sm:$0xff]
    %v2524 = vld [vmem:[%s2517 + $0x30] sm:$0x11]
    %s2525 = scalar_lea.vmem %s5, 1624
    %v2526 = vld [vmem:[%s2525] sm:$0xff]
    %v2527 = vld [vmem:[%s2525 + $0x8] sm:$0xff]
    %v2528 = vld [vmem:[%s2525 + $0x10] sm:$0xff]
    %v2529 = vld [vmem:[%s2525 + $0x18] sm:$0xff]
    %v2530 = vld [vmem:[%s2525 + $0x20] sm:$0xff]
    %v2531 = vld [vmem:[%s2525 + $0x28] sm:$0xff]
    %v2532 = vld [vmem:[%s2525 + $0x30] sm:$0x11]
    %v2533 = vrot.slane %v2328, 2
    %v2541 = vunpack.c.l.b16 %v2526
    %v2542 = vunpack.c.h.b16 %v2526
    %v2543 = vunpack.c.l.b16 %v2527
    %v2544 = vunpack.c.h.b16 %v2527
    %v2545 = vunpack.c.l.b16 %v2528
    %v2546 = vunpack.c.h.b16 %v2528
    %v2547 = vunpack.c.l.b16 %v2529
    %v2548 = vunpack.c.h.b16 %v2529
    %v2549 = vunpack.c.l.b16 %v2530
    %v2550 = vunpack.c.h.b16 %v2530
    %v2551 = vunpack.c.l.b16 %v2531
    %v2552 = vunpack.c.h.b16 %v2531
    %v2553 = vunpack.c.l.b16 %v2532
    %v2554 = vunpack.c.h.b16 %v2532
    %v2555 = vpack.c.b16 %v2543, %v2541
    %v2556 = vpack.c.b16 %v2544, %v2542
    %v2557 = vpack.c.b16 %v2547, %v2545
    %v2558 = vpack.c.b16 %v2548, %v2546
    %v2559 = vpack.c.b16 %v2551, %v2549
    %v2560 = vpack.c.b16 %v2552, %v2550
    %v2561 = vpack.c.b16 %v2553, %v2553
    %v2562 = vpack.c.b16 %v2554, %v2554
    %v2570 = vsel %vm1130, %v2533, 0
    %v2573 = vsel %vm1134, %v2561, 0
    %v2576 = vsel %vm1134, %v2562, 0
    %2578 = vmatprep.subr.bf16.mxu0 %v2556
    %2579 = vmatpush1.bf16.msra.mxu0 %v2555
    %2580 = vmatprep.subr.bf16.mxu0 %v2558
    %2581 = vmatpush1.bf16.msra.mxu0 %v2557
    %2582 = vmatprep.subr.bf16.mxu0 %v2560
    %2583 = vmatpush1.bf16.msra.mxu0 %v2559
    %2584 = vmatprep.subr.bf16.mxu0 %v2576
    %2585 = vmatpush1.bf16.msra.mxu0 %v2573
    %2586 = vmatprep.subr.bf16.mxu0 0
    %2587 = vmatpush1.bf16.msra.mxu0 0
    %2588 = vmatprep.subr.bf16.mxu0 0
    %2589 = vmatpush1.bf16.msra.mxu0 0
    %2590 = vmatprep.subr.bf16.mxu0 0
    %2591 = vmatpush1.bf16.msra.mxu0 0
    %2592 = vmatprep.subr.bf16.mxu0 0
    %2593 = vmatpush1.bf16.msra.mxu0 0
    %2594 = vmatprep.subr.bf16.mxu0 0
    %2595 = vmatpush1.bf16.msra.mxu0 0
    %2596 = vmatprep.subr.bf16.mxu0 0
    %2597 = vmatpush1.bf16.msra.mxu0 0
    %2598 = vmatprep.subr.bf16.mxu0 0
    %2599 = vmatpush1.bf16.msra.mxu0 0
    %2600 = vmatprep.subr.bf16.mxu0 0
    %2601 = vmatpush1.bf16.msra.mxu0 0
    %2602 = vmatprep.subr.bf16.mxu0 0
    %2603 = vmatpush1.bf16.msra.mxu0 0
    %2604 = vmatprep.subr.bf16.mxu0 0
    %2605 = vmatpush1.bf16.msra.mxu0 0
    %2606 = vmatprep.subr.bf16.mxu0 0
    %2607 = vmatpush1.bf16.msra.mxu0 0
    %2608 = vmatprep.subr.bf16.mxu0 0
    %2609 = vmatpush1.bf16.msra.mxu0 0
    %2610 = vmatprep.mubr.bf16.mxu0 0
    %2611 = vmatmul.mubr.bf16.gmra.mrb[0].mxu0 %v2570
    %v2612 = vpop.f32.mrb[0].mxu0
    %v2613 = vadd.f32 0.0, %v2612
    %v2614 = vpop.f32.mrb[0].mxu0
    %v2615 = vadd.f32 0.0, %v2614
    %v2616 = vpop.f32.mrb[0].mxu0
    %v2617 = vpop.f32.mrb[0].mxu0
    %2618 = vdwg.mxu0
    %s2619 = scalar_lea.vmem %s5, 1680
    %v2620 = vld [vmem:[%s2619] sm:$0xff]
    %v2621 = vld [vmem:[%s2619 + $0x8] sm:$0xff]
    %v2622 = vld [vmem:[%s2619 + $0x10] sm:$0xff]
    %v2623 = vld [vmem:[%s2619 + $0x18] sm:$0xff]
    %v2624 = vld [vmem:[%s2619 + $0x20] sm:$0xff]
    %v2625 = vld [vmem:[%s2619 + $0x28] sm:$0xff]
    %v2626 = vld [vmem:[%s2619 + $0x30] sm:$0x11]
    %s2627 = scalar_lea.vmem %s5, 1736
    %v2628 = vld [vmem:[%s2627] sm:$0xff]
    %v2629 = vld [vmem:[%s2627 + $0x8] sm:$0xff]
    %v2630 = vld [vmem:[%s2627 + $0x10] sm:$0xff]
    %v2631 = vld [vmem:[%s2627 + $0x18] sm:$0xff]
    %v2632 = vld [vmem:[%s2627 + $0x20] sm:$0xff]
    %v2633 = vld [vmem:[%s2627 + $0x28] sm:$0xff]
    %v2634 = vld [vmem:[%s2627 + $0x30] sm:$0x11]
    %v2635 = vrot.slane %v2328, 3
    %v2643 = vunpack.c.l.b16 %v2628
    %v2644 = vunpack.c.h.b16 %v2628
    %v2645 = vunpack.c.l.b16 %v2629
    %v2646 = vunpack.c.h.b16 %v2629
    %v2647 = vunpack.c.l.b16 %v2630
    %v2648 = vunpack.c.h.b16 %v2630
    %v2649 = vunpack.c.l.b16 %v2631
    %v2650 = vunpack.c.h.b16 %v2631
    %v2651 = vunpack.c.l.b16 %v2632
    %v2652 = vunpack.c.h.b16 %v2632
    %v2653 = vunpack.c.l.b16 %v2633
    %v2654 = vunpack.c.h.b16 %v2633
    %v2655 = vunpack.c.l.b16 %v2634
    %v2656 = vunpack.c.h.b16 %v2634
    %v2657 = vpack.c.b16 %v2645, %v2643
    %v2658 = vpack.c.b16 %v2646, %v2644
    %v2659 = vpack.c.b16 %v2649, %v2647
    %v2660 = vpack.c.b16 %v2650, %v2648
    %v2661 = vpack.c.b16 %v2653, %v2651
    %v2662 = vpack.c.b16 %v2654, %v2652
    %v2663 = vpack.c.b16 %v2655, %v2655
    %v2664 = vpack.c.b16 %v2656, %v2656
    %v2672 = vsel %vm1130, %v2635, 0
    %v2675 = vsel %vm1134, %v2663, 0
    %v2678 = vsel %vm1134, %v2664, 0
    %2680 = vmatprep.subr.bf16.mxu0 %v2658
    %2681 = vmatpush1.bf16.msra.mxu0 %v2657
    %2682 = vmatprep.subr.bf16.mxu0 %v2660
    %2683 = vmatpush1.bf16.msra.mxu0 %v2659
    %2684 = vmatprep.subr.bf16.mxu0 %v2662
    %2685 = vmatpush1.bf16.msra.mxu0 %v2661
    %2686 = vmatprep.subr.bf16.mxu0 %v2678
    %2687 = vmatpush1.bf16.msra.mxu0 %v2675
    %2688 = vmatprep.subr.bf16.mxu0 0
    %2689 = vmatpush1.bf16.msra.mxu0 0
    %2690 = vmatprep.subr.bf16.mxu0 0
    %2691 = vmatpush1.bf16.msra.mxu0 0
    %2692 = vmatprep.subr.bf16.mxu0 0
    %2693 = vmatpush1.bf16.msra.mxu0 0
    %2694 = vmatprep.subr.bf16.mxu0 0
    %2695 = vmatpush1.bf16.msra.mxu0 0
    %2696 = vmatprep.subr.bf16.mxu0 0
    %2697 = vmatpush1.bf16.msra.mxu0 0
    %2698 = vmatprep.subr.bf16.mxu0 0
    %2699 = vmatpush1.bf16.msra.mxu0 0
    %2700 = vmatprep.subr.bf16.mxu0 0
    %2701 = vmatpush1.bf16.msra.mxu0 0
    %2702 = vmatprep.subr.bf16.mxu0 0
    %2703 = vmatpush1.bf16.msra.mxu0 0
    %2704 = vmatprep.subr.bf16.mxu0 0
    %2705 = vmatpush1.bf16.msra.mxu0 0
    %2706 = vmatprep.subr.bf16.mxu0 0
    %2707 = vmatpush1.bf16.msra.mxu0 0
    %2708 = vmatprep.subr.bf16.mxu0 0
    %2709 = vmatpush1.bf16.msra.mxu0 0
    %2710 = vmatprep.subr.bf16.mxu0 0
    %2711 = vmatpush1.bf16.msra.mxu0 0
    %2712 = vmatprep.mubr.bf16.mxu0 0
    %2713 = vmatmul.mubr.bf16.gmra.mrb[0].mxu0 %v2672
    %v2714 = vpop.f32.mrb[0].mxu0
    %v2715 = vadd.f32 0.0, %v2714
    %v2716 = vpop.f32.mrb[0].mxu0
    %v2717 = vadd.f32 0.0, %v2716
    %v2718 = vpop.f32.mrb[0].mxu0
    %v2719 = vpop.f32.mrb[0].mxu0
    %2720 = vdwg.mxu0
    %v2728 = vunpack.c.l.b16 %v1077
    %v2729 = vunpack.c.h.b16 %v1077
    %v2730 = vunpack.c.l.b16 %v1078
    %v2731 = vunpack.c.h.b16 %v1078
    %v2732 = vunpack.c.l.b16 %v1079
    %v2733 = vunpack.c.h.b16 %v1079
    %v2734 = vunpack.c.l.b16 %v1080
    %v2735 = vunpack.c.h.b16 %v1080
    %v2736 = vunpack.c.l.b16 %v1081
    %v2737 = vunpack.c.h.b16 %v1081
    %v2738 = vunpack.c.l.b16 %v1082
    %v2739 = vunpack.c.h.b16 %v1082
    %v2740 = vunpack.c.l.b16 %v1083
    %v2741 = vunpack.c.h.b16 %v1083
    %v2742 = vpack.c.b16 %v2730, %v2728
    %v2743 = vpack.c.b16 %v2731, %v2729
    %v2744 = vpack.c.b16 %v2734, %v2732
    %v2745 = vpack.c.b16 %v2735, %v2733
    %v2746 = vpack.c.b16 %v2738, %v2736
    %v2747 = vpack.c.b16 %v2739, %v2737
    %v2748 = vpack.c.b16 %v2740, %v2740
    %v2749 = vpack.c.b16 %v2741, %v2741
    %v2756 = vsel %vm1130, %v1076, 0
    %v2759 = vsel %vm1134, %v2748, 0
    %v2762 = vsel %vm1134, %v2749, 0
    %2764 = vmatprep.subr.bf16.mxu0 %v2743
    %2765 = vmatpush1.bf16.msra.mxu0 %v2742
    %2766 = vmatprep.subr.bf16.mxu0 %v2745
    %2767 = vmatpush1.bf16.msra.mxu0 %v2744
    %2768 = vmatprep.subr.bf16.mxu0 %v2747
    %2769 = vmatpush1.bf16.msra.mxu0 %v2746
    %2770 = vmatprep.subr.bf16.mxu0 %v2762
    %2771 = vmatpush1.bf16.msra.mxu0 %v2759
    %2772 = vmatprep.subr.bf16.mxu0 0
    %2773 = vmatpush1.bf16.msra.mxu0 0
    %2774 = vmatprep.subr.bf16.mxu0 0
    %2775 = vmatpush1.bf16.msra.mxu0 0
    %2776 = vmatprep.subr.bf16.mxu0 0
    %2777 = vmatpush1.bf16.msra.mxu0 0
    %2778 = vmatprep.subr.bf16.mxu0 0
    %2779 = vmatpush1.bf16.msra.mxu0 0
    %2780 = vmatprep.subr.bf16.mxu0 0
    %2781 = vmatpush1.bf16.msra.mxu0 0
    %2782 = vmatprep.subr.bf16.mxu0 0
    %2783 = vmatpush1.bf16.msra.mxu0 0
    %2784 = vmatprep.subr.bf16.mxu0 0
    %2785 = vmatpush1.bf16.msra.mxu0 0
    %2786 = vmatprep.subr.bf16.mxu0 0
    %2787 = vmatpush1.bf16.msra.mxu0 0
    %2788 = vmatprep.subr.bf16.mxu0 0
    %2789 = vmatpush1.bf16.msra.mxu0 0
    %2790 = vmatprep.subr.bf16.mxu0 0
    %2791 = vmatpush1.bf16.msra.mxu0 0
    %2792 = vmatprep.subr.bf16.mxu0 0
    %2793 = vmatpush1.bf16.msra.mxu0 0
    %2794 = vmatprep.subr.bf16.mxu0 0
    %2795 = vmatpush1.bf16.msra.mxu0 0
    %2796 = vmatprep.mubr.bf16.mxu0 0
    %2797 = vmatmul.mubr.bf16.gmra.mrb[0].mxu0 %v2756
    %v2798 = vpop.f32.mrb[0].mxu0
    %v2799 = vadd.f32 %v1176, %v2798
    %v2800 = vpop.f32.mrb[0].mxu0
    %v2801 = vadd.f32 %v1178, %v2800
    %v2802 = vpop.f32.mrb[0].mxu0
    %v2803 = vpop.f32.mrb[0].mxu0
    %2804 = vdwg.mxu0
    %v2806 = vrot.slane %v1076, 1
    %v2814 = vunpack.c.l.b16 %v1183
    %v2815 = vunpack.c.h.b16 %v1183
    %v2816 = vunpack.c.l.b16 %v1184
    %v2817 = vunpack.c.h.b16 %v1184
    %v2818 = vunpack.c.l.b16 %v1185
    %v2819 = vunpack.c.h.b16 %v1185
    %v2820 = vunpack.c.l.b16 %v1186
    %v2821 = vunpack.c.h.b16 %v1186
    %v2822 = vunpack.c.l.b16 %v1187
    %v2823 = vunpack.c.h.b16 %v1187
    %v2824 = vunpack.c.l.b16 %v1188
    %v2825 = vunpack.c.h.b16 %v1188
    %v2826 = vunpack.c.l.b16 %v1189
    %v2827 = vunpack.c.h.b16 %v1189
    %v2828 = vpack.c.b16 %v2816, %v2814
    %v2829 = vpack.c.b16 %v2817, %v2815
    %v2830 = vpack.c.b16 %v2820, %v2818
    %v2831 = vpack.c.b16 %v2821, %v2819
    %v2832 = vpack.c.b16 %v2824, %v2822
    %v2833 = vpack.c.b16 %v2825, %v2823
    %v2834 = vpack.c.b16 %v2826, %v2826
    %v2835 = vpack.c.b16 %v2827, %v2827
    %v2843 = vsel %vm1130, %v2806, 0
    %v2846 = vsel %vm1134, %v2834, 0
    %v2849 = vsel %vm1134, %v2835, 0
    %2851 = vmatprep.subr.bf16.mxu0 %v2829
    %2852 = vmatpush1.bf16.msra.mxu0 %v2828
    %2853 = vmatprep.subr.bf16.mxu0 %v2831
    %2854 = vmatpush1.bf16.msra.mxu0 %v2830
    %2855 = vmatprep.subr.bf16.mxu0 %v2833
    %2856 = vmatpush1.bf16.msra.mxu0 %v2832
    %2857 = vmatprep.subr.bf16.mxu0 %v2849
    %2858 = vmatpush1.bf16.msra.mxu0 %v2846
    %2859 = vmatprep.subr.bf16.mxu0 0
    %2860 = vmatpush1.bf16.msra.mxu0 0
    %2861 = vmatprep.subr.bf16.mxu0 0
    %2862 = vmatpush1.bf16.msra.mxu0 0
    %2863 = vmatprep.subr.bf16.mxu0 0
    %2864 = vmatpush1.bf16.msra.mxu0 0
    %2865 = vmatprep.subr.bf16.mxu0 0
    %2866 = vmatpush1.bf16.msra.mxu0 0
    %2867 = vmatprep.subr.bf16.mxu0 0
    %2868 = vmatpush1.bf16.msra.mxu0 0
    %2869 = vmatprep.subr.bf16.mxu0 0
    %2870 = vmatpush1.bf16.msra.mxu0 0
    %2871 = vmatprep.subr.bf16.mxu0 0
    %2872 = vmatpush1.bf16.msra.mxu0 0
    %2873 = vmatprep.subr.bf16.mxu0 0
    %2874 = vmatpush1.bf16.msra.mxu0 0
    %2875 = vmatprep.subr.bf16.mxu0 0
    %2876 = vmatpush1.bf16.msra.mxu0 0
    %2877 = vmatprep.subr.bf16.mxu0 0
    %2878 = vmatpush1.bf16.msra.mxu0 0
    %2879 = vmatprep.subr.bf16.mxu0 0
    %2880 = vmatpush1.bf16.msra.mxu0 0
    %2881 = vmatprep.subr.bf16.mxu0 0
    %2882 = vmatpush1.bf16.msra.mxu0 0
    %2883 = vmatprep.mubr.bf16.mxu0 0
    %2884 = vmatmul.mubr.bf16.gmra.mrb[0].mxu0 %v2843
    %v2885 = vpop.f32.mrb[0].mxu0
    %v2886 = vadd.f32 %v1278, %v2885
    %v2887 = vpop.f32.mrb[0].mxu0
    %v2888 = vadd.f32 %v1280, %v2887
    %v2889 = vpop.f32.mrb[0].mxu0
    %v2890 = vpop.f32.mrb[0].mxu0
    %2891 = vdwg.mxu0
    %v2892 = vrot.slane %v1076, 2
    %v2900 = vunpack.c.l.b16 %v1285
    %v2901 = vunpack.c.h.b16 %v1285
    %v2902 = vunpack.c.l.b16 %v1286
    %v2903 = vunpack.c.h.b16 %v1286
    %v2904 = vunpack.c.l.b16 %v1287
    %v2905 = vunpack.c.h.b16 %v1287
    %v2906 = vunpack.c.l.b16 %v1288
    %v2907 = vunpack.c.h.b16 %v1288
    %v2908 = vunpack.c.l.b16 %v1289
    %v2909 = vunpack.c.h.b16 %v1289
    %v2910 = vunpack.c.l.b16 %v1290
    %v2911 = vunpack.c.h.b16 %v1290
    %v2912 = vunpack.c.l.b16 %v1291
    %v2913 = vunpack.c.h.b16 %v1291
    %v2914 = vpack.c.b16 %v2902, %v2900
    %v2915 = vpack.c.b16 %v2903, %v2901
    %v2916 = vpack.c.b16 %v2906, %v2904
    %v2917 = vpack.c.b16 %v2907, %v2905
    %v2918 = vpack.c.b16 %v2910, %v2908
    %v2919 = vpack.c.b16 %v2911, %v2909
    %v2920 = vpack.c.b16 %v2912, %v2912
    %v2921 = vpack.c.b16 %v2913, %v2913
    %v2929 = vsel %vm1130, %v2892, 0
    %v2932 = vsel %vm1134, %v2920, 0
    %v2935 = vsel %vm1134, %v2921, 0
    %2937 = vmatprep.subr.bf16.mxu0 %v2915
    %2938 = vmatpush1.bf16.msra.mxu0 %v2914
    %2939 = vmatprep.subr.bf16.mxu0 %v2917
    %2940 = vmatpush1.bf16.msra.mxu0 %v2916
    %2941 = vmatprep.subr.bf16.mxu0 %v2919
    %2942 = vmatpush1.bf16.msra.mxu0 %v2918
    %2943 = vmatprep.subr.bf16.mxu0 %v2935
    %2944 = vmatpush1.bf16.msra.mxu0 %v2932
    %2945 = vmatprep.subr.bf16.mxu0 0
    %2946 = vmatpush1.bf16.msra.mxu0 0
    %2947 = vmatprep.subr.bf16.mxu0 0
    %2948 = vmatpush1.bf16.msra.mxu0 0
    %2949 = vmatprep.subr.bf16.mxu0 0
    %2950 = vmatpush1.bf16.msra.mxu0 0
    %2951 = vmatprep.subr.bf16.mxu0 0
    %2952 = vmatpush1.bf16.msra.mxu0 0
    %2953 = vmatprep.subr.bf16.mxu0 0
    %2954 = vmatpush1.bf16.msra.mxu0 0
    %2955 = vmatprep.subr.bf16.mxu0 0
    %2956 = vmatpush1.bf16.msra.mxu0 0
    %2957 = vmatprep.subr.bf16.mxu0 0
    %2958 = vmatpush1.bf16.msra.mxu0 0
    %2959 = vmatprep.subr.bf16.mxu0 0
    %2960 = vmatpush1.bf16.msra.mxu0 0
    %2961 = vmatprep.subr.bf16.mxu0 0
    %2962 = vmatpush1.bf16.msra.mxu0 0
    %2963 = vmatprep.subr.bf16.mxu0 0
    %2964 = vmatpush1.bf16.msra.mxu0 0
    %2965 = vmatprep.subr.bf16.mxu0 0
    %2966 = vmatpush1.bf16.msra.mxu0 0
    %2967 = vmatprep.subr.bf16.mxu0 0
    %2968 = vmatpush1.bf16.msra.mxu0 0
    %2969 = vmatprep.mubr.bf16.mxu0 0
    %2970 = vmatmul.mubr.bf16.gmra.mrb[0].mxu0 %v2929
    %v2971 = vpop.f32.mrb[0].mxu0
    %v2972 = vadd.f32 %v1380, %v2971
    %v2973 = vpop.f32.mrb[0].mxu0
    %v2974 = vadd.f32 %v1382, %v2973
    %v2975 = vpop.f32.mrb[0].mxu0
    %v2976 = vpop.f32.mrb[0].mxu0
    %2977 = vdwg.mxu0
    %v2978 = vrot.slane %v1076, 3
    %v2986 = vunpack.c.l.b16 %v1387
    %v2987 = vunpack.c.h.b16 %v1387
    %v2988 = vunpack.c.l.b16 %v1388
    %v2989 = vunpack.c.h.b16 %v1388
    %v2990 = vunpack.c.l.b16 %v1389
    %v2991 = vunpack.c.h.b16 %v1389
    %v2992 = vunpack.c.l.b16 %v1390
    %v2993 = vunpack.c.h.b16 %v1390
    %v2994 = vunpack.c.l.b16 %v1391
    %v2995 = vunpack.c.h.b16 %v1391
    %v2996 = vunpack.c.l.b16 %v1392
    %v2997 = vunpack.c.h.b16 %v1392
    %v2998 = vunpack.c.l.b16 %v1393
    %v2999 = vunpack.c.h.b16 %v1393
    %v3000 = vpack.c.b16 %v2988, %v2986
    %v3001 = vpack.c.b16 %v2989, %v2987
    %v3002 = vpack.c.b16 %v2992, %v2990
    %v3003 = vpack.c.b16 %v2993, %v2991
    %v3004 = vpack.c.b16 %v2996, %v2994
    %v3005 = vpack.c.b16 %v2997, %v2995
    %v3006 = vpack.c.b16 %v2998, %v2998
    %v3007 = vpack.c.b16 %v2999, %v2999
    %v3015 = vsel %vm1130, %v2978, 0
    %v3018 = vsel %vm1134, %v3006, 0
    %v3021 = vsel %vm1134, %v3007, 0
    %3023 = vmatprep.subr.bf16.mxu0 %v3001
    %3024 = vmatpush1.bf16.msra.mxu0 %v3000
    %3025 = vmatprep.subr.bf16.mxu0 %v3003
    %3026 = vmatpush1.bf16.msra.mxu0 %v3002
    %3027 = vmatprep.subr.bf16.mxu0 %v3005
    %3028 = vmatpush1.bf16.msra.mxu0 %v3004
    %3029 = vmatprep.subr.bf16.mxu0 %v3021
    %3030 = vmatpush1.bf16.msra.mxu0 %v3018
    %3031 = vmatprep.subr.bf16.mxu0 0
    %3032 = vmatpush1.bf16.msra.mxu0 0
    %3033 = vmatprep.subr.bf16.mxu0 0
    %3034 = vmatpush1.bf16.msra.mxu0 0
    %3035 = vmatprep.subr.bf16.mxu0 0
    %3036 = vmatpush1.bf16.msra.mxu0 0
    %3037 = vmatprep.subr.bf16.mxu0 0
    %3038 = vmatpush1.bf16.msra.mxu0 0
    %3039 = vmatprep.subr.bf16.mxu0 0
    %3040 = vmatpush1.bf16.msra.mxu0 0
    %3041 = vmatprep.subr.bf16.mxu0 0
    %3042 = vmatpush1.bf16.msra.mxu0 0
    %3043 = vmatprep.subr.bf16.mxu0 0
    %3044 = vmatpush1.bf16.msra.mxu0 0
    %3045 = vmatprep.subr.bf16.mxu0 0
    %3046 = vmatpush1.bf16.msra.mxu0 0
    %3047 = vmatprep.subr.bf16.mxu0 0
    %3048 = vmatpush1.bf16.msra.mxu0 0
    %3049 = vmatprep.subr.bf16.mxu0 0
    %3050 = vmatpush1.bf16.msra.mxu0 0
    %3051 = vmatprep.subr.bf16.mxu0 0
    %3052 = vmatpush1.bf16.msra.mxu0 0
    %3053 = vmatprep.subr.bf16.mxu0 0
    %3054 = vmatpush1.bf16.msra.mxu0 0
    %3055 = vmatprep.mubr.bf16.mxu0 0
    %3056 = vmatmul.mubr.bf16.gmra.mrb[0].mxu0 %v3015
    %v3057 = vpop.f32.mrb[0].mxu0
    %v3058 = vadd.f32 %v1482, %v3057
    %v3059 = vpop.f32.mrb[0].mxu0
    %v3060 = vadd.f32 %v1484, %v3059
    %v3061 = vpop.f32.mrb[0].mxu0
    %v3062 = vpop.f32.mrb[0].mxu0
    %3063 = vdwg.mxu0
    %v3071 = vunpack.c.l.b16 %v1490
    %v3072 = vunpack.c.h.b16 %v1490
    %v3073 = vunpack.c.l.b16 %v1491
    %v3074 = vunpack.c.h.b16 %v1491
    %v3075 = vunpack.c.l.b16 %v1492
    %v3076 = vunpack.c.h.b16 %v1492
    %v3077 = vunpack.c.l.b16 %v1493
    %v3078 = vunpack.c.h.b16 %v1493
    %v3079 = vunpack.c.l.b16 %v1494
    %v3080 = vunpack.c.h.b16 %v1494
    %v3081 = vunpack.c.l.b16 %v1495
    %v3082 = vunpack.c.h.b16 %v1495
    %v3083 = vunpack.c.l.b16 %v1496
    %v3084 = vunpack.c.h.b16 %v1496
    %v3085 = vpack.c.b16 %v3073, %v3071
    %v3086 = vpack.c.b16 %v3074, %v3072
    %v3087 = vpack.c.b16 %v3077, %v3075
    %v3088 = vpack.c.b16 %v3078, %v3076
    %v3089 = vpack.c.b16 %v3081, %v3079
    %v3090 = vpack.c.b16 %v3082, %v3080
    %v3091 = vpack.c.b16 %v3083, %v3083
    %v3092 = vpack.c.b16 %v3084, %v3084
    %v3099 = vsel %vm1130, %v1488, 0
    %v3102 = vsel %vm1134, %v3091, 0
    %v3105 = vsel %vm1134, %v3092, 0
    %3107 = vmatprep.subr.bf16.mxu0 %v3086
    %3108 = vmatpush1.bf16.msra.mxu0 %v3085
    %3109 = vmatprep.subr.bf16.mxu0 %v3088
    %3110 = vmatpush1.bf16.msra.mxu0 %v3087
    %3111 = vmatprep.subr.bf16.mxu0 %v3090
    %3112 = vmatpush1.bf16.msra.mxu0 %v3089
    %3113 = vmatprep.subr.bf16.mxu0 %v3105
    %3114 = vmatpush1.bf16.msra.mxu0 %v3102
    %3115 = vmatprep.subr.bf16.mxu0 0
    %3116 = vmatpush1.bf16.msra.mxu0 0
    %3117 = vmatprep.subr.bf16.mxu0 0
    %3118 = vmatpush1.bf16.msra.mxu0 0
    %3119 = vmatprep.subr.bf16.mxu0 0
    %3120 = vmatpush1.bf16.msra.mxu0 0
    %3121 = vmatprep.subr.bf16.mxu0 0
    %3122 = vmatpush1.bf16.msra.mxu0 0
    %3123 = vmatprep.subr.bf16.mxu0 0
    %3124 = vmatpush1.bf16.msra.mxu0 0
    %3125 = vmatprep.subr.bf16.mxu0 0
    %3126 = vmatpush1.bf16.msra.mxu0 0
    %3127 = vmatprep.subr.bf16.mxu0 0
    %3128 = vmatpush1.bf16.msra.mxu0 0
    %3129 = vmatprep.subr.bf16.mxu0 0
    %3130 = vmatpush1.bf16.msra.mxu0 0
    %3131 = vmatprep.subr.bf16.mxu0 0
    %3132 = vmatpush1.bf16.msra.mxu0 0
    %3133 = vmatprep.subr.bf16.mxu0 0
    %3134 = vmatpush1.bf16.msra.mxu0 0
    %3135 = vmatprep.subr.bf16.mxu0 0
    %3136 = vmatpush1.bf16.msra.mxu0 0
    %3137 = vmatprep.subr.bf16.mxu0 0
    %3138 = vmatpush1.bf16.msra.mxu0 0
    %3139 = vmatprep.mubr.bf16.mxu0 0
    %3140 = vmatmul.mubr.bf16.gmra.mrb[0].mxu0 %v3099
    %v3141 = vpop.f32.mrb[0].mxu0
    %v3142 = vadd.f32 %v1587, %v3141
    %v3143 = vpop.f32.mrb[0].mxu0
    %v3144 = vadd.f32 %v1589, %v3143
    %v3145 = vpop.f32.mrb[0].mxu0
    %v3146 = vpop.f32.mrb[0].mxu0
    %3147 = vdwg.mxu0
    %v3149 = vrot.slane %v1488, 1
    %v3157 = vunpack.c.l.b16 %v1594
    %v3158 = vunpack.c.h.b16 %v1594
    %v3159 = vunpack.c.l.b16 %v1595
    %v3160 = vunpack.c.h.b16 %v1595
    %v3161 = vunpack.c.l.b16 %v1596
    %v3162 = vunpack.c.h.b16 %v1596
    %v3163 = vunpack.c.l.b16 %v1597
    %v3164 = vunpack.c.h.b16 %v1597
    %v3165 = vunpack.c.l.b16 %v1598
    %v3166 = vunpack.c.h.b16 %v1598
    %v3167 = vunpack.c.l.b16 %v1599
    %v3168 = vunpack.c.h.b16 %v1599
    %v3169 = vunpack.c.l.b16 %v1600
    %v3170 = vunpack.c.h.b16 %v1600
    %v3171 = vpack.c.b16 %v3159, %v3157
    %v3172 = vpack.c.b16 %v3160, %v3158
    %v3173 = vpack.c.b16 %v3163, %v3161
    %v3174 = vpack.c.b16 %v3164, %v3162
    %v3175 = vpack.c.b16 %v3167, %v3165
    %v3176 = vpack.c.b16 %v3168, %v3166
    %v3177 = vpack.c.b16 %v3169, %v3169
    %v3178 = vpack.c.b16 %v3170, %v3170
    %v3186 = vsel %vm1130, %v3149, 0
    %v3189 = vsel %vm1134, %v3177, 0
    %v3192 = vsel %vm1134, %v3178, 0
    %3194 = vmatprep.subr.bf16.mxu0 %v3172
    %3195 = vmatpush1.bf16.msra.mxu0 %v3171
    %3196 = vmatprep.subr.bf16.mxu0 %v3174
    %3197 = vmatpush1.bf16.msra.mxu0 %v3173
    %3198 = vmatprep.subr.bf16.mxu0 %v3176
    %3199 = vmatpush1.bf16.msra.mxu0 %v3175
    %3200 = vmatprep.subr.bf16.mxu0 %v3192
    %3201 = vmatpush1.bf16.msra.mxu0 %v3189
    %3202 = vmatprep.subr.bf16.mxu0 0
    %3203 = vmatpush1.bf16.msra.mxu0 0
    %3204 = vmatprep.subr.bf16.mxu0 0
    %3205 = vmatpush1.bf16.msra.mxu0 0
    %3206 = vmatprep.subr.bf16.mxu0 0
    %3207 = vmatpush1.bf16.msra.mxu0 0
    %3208 = vmatprep.subr.bf16.mxu0 0
    %3209 = vmatpush1.bf16.msra.mxu0 0
    %3210 = vmatprep.subr.bf16.mxu0 0
    %3211 = vmatpush1.bf16.msra.mxu0 0
    %3212 = vmatprep.subr.bf16.mxu0 0
    %3213 = vmatpush1.bf16.msra.mxu0 0
    %3214 = vmatprep.subr.bf16.mxu0 0
    %3215 = vmatpush1.bf16.msra.mxu0 0
    %3216 = vmatprep.subr.bf16.mxu0 0
    %3217 = vmatpush1.bf16.msra.mxu0 0
    %3218 = vmatprep.subr.bf16.mxu0 0
    %3219 = vmatpush1.bf16.msra.mxu0 0
    %3220 = vmatprep.subr.bf16.mxu0 0
    %3221 = vmatpush1.bf16.msra.mxu0 0
    %3222 = vmatprep.subr.bf16.mxu0 0
    %3223 = vmatpush1.bf16.msra.mxu0 0
    %3224 = vmatprep.subr.bf16.mxu0 0
    %3225 = vmatpush1.bf16.msra.mxu0 0
    %3226 = vmatprep.mubr.bf16.mxu0 0
    %3227 = vmatmul.mubr.bf16.gmra.mrb[0].mxu0 %v3186
    %v3228 = vpop.f32.mrb[0].mxu0
    %v3229 = vadd.f32 %v1689, %v3228
    %v3230 = vpop.f32.mrb[0].mxu0
    %v3231 = vadd.f32 %v1691, %v3230
    %v3232 = vpop.f32.mrb[0].mxu0
    %v3233 = vpop.f32.mrb[0].mxu0
    %3234 = vdwg.mxu0
    %v3235 = vrot.slane %v1488, 2
    %v3243 = vunpack.c.l.b16 %v1696
    %v3244 = vunpack.c.h.b16 %v1696
    %v3245 = vunpack.c.l.b16 %v1697
    %v3246 = vunpack.c.h.b16 %v1697
    %v3247 = vunpack.c.l.b16 %v1698
    %v3248 = vunpack.c.h.b16 %v1698
    %v3249 = vunpack.c.l.b16 %v1699
    %v3250 = vunpack.c.h.b16 %v1699
    %v3251 = vunpack.c.l.b16 %v1700
    %v3252 = vunpack.c.h.b16 %v1700
    %v3253 = vunpack.c.l.b16 %v1701
    %v3254 = vunpack.c.h.b16 %v1701
    %v3255 = vunpack.c.l.b16 %v1702
    %v3256 = vunpack.c.h.b16 %v1702
    %v3257 = vpack.c.b16 %v3245, %v3243
    %v3258 = vpack.c.b16 %v3246, %v3244
    %v3259 = vpack.c.b16 %v3249, %v3247
    %v3260 = vpack.c.b16 %v3250, %v3248
    %v3261 = vpack.c.b16 %v3253, %v3251
    %v3262 = vpack.c.b16 %v3254, %v3252
    %v3263 = vpack.c.b16 %v3255, %v3255
    %v3264 = vpack.c.b16 %v3256, %v3256
    %v3272 = vsel %vm1130, %v3235, 0
    %v3275 = vsel %vm1134, %v3263, 0
    %v3278 = vsel %vm1134, %v3264, 0
    %3280 = vmatprep.subr.bf16.mxu0 %v3258
    %3281 = vmatpush1.bf16.msra.mxu0 %v3257
    %3282 = vmatprep.subr.bf16.mxu0 %v3260
    %3283 = vmatpush1.bf16.msra.mxu0 %v3259
    %3284 = vmatprep.subr.bf16.mxu0 %v3262
    %3285 = vmatpush1.bf16.msra.mxu0 %v3261
    %3286 = vmatprep.subr.bf16.mxu0 %v3278
    %3287 = vmatpush1.bf16.msra.mxu0 %v3275
    %3288 = vmatprep.subr.bf16.mxu0 0
    %3289 = vmatpush1.bf16.msra.mxu0 0
    %3290 = vmatprep.subr.bf16.mxu0 0
    %3291 = vmatpush1.bf16.msra.mxu0 0
    %3292 = vmatprep.subr.bf16.mxu0 0
    %3293 = vmatpush1.bf16.msra.mxu0 0
    %3294 = vmatprep.subr.bf16.mxu0 0
    %3295 = vmatpush1.bf16.msra.mxu0 0
    %3296 = vmatprep.subr.bf16.mxu0 0
    %3297 = vmatpush1.bf16.msra.mxu0 0
    %3298 = vmatprep.subr.bf16.mxu0 0
    %3299 = vmatpush1.bf16.msra.mxu0 0
    %3300 = vmatprep.subr.bf16.mxu0 0
    %3301 = vmatpush1.bf16.msra.mxu0 0
    %3302 = vmatprep.subr.bf16.mxu0 0
    %3303 = vmatpush1.bf16.msra.mxu0 0
    %3304 = vmatprep.subr.bf16.mxu0 0
    %3305 = vmatpush1.bf16.msra.mxu0 0
    %3306 = vmatprep.subr.bf16.mxu0 0
    %3307 = vmatpush1.bf16.msra.mxu0 0
    %3308 = vmatprep.subr.bf16.mxu0 0
    %3309 = vmatpush1.bf16.msra.mxu0 0
    %3310 = vmatprep.subr.bf16.mxu0 0
    %3311 = vmatpush1.bf16.msra.mxu0 0
    %3312 = vmatprep.mubr.bf16.mxu0 0
    %3313 = vmatmul.mubr.bf16.gmra.mrb[0].mxu0 %v3272
    %v3314 = vpop.f32.mrb[0].mxu0
    %v3315 = vadd.f32 %v1791, %v3314
    %v3316 = vpop.f32.mrb[0].mxu0
    %v3317 = vadd.f32 %v1793, %v3316
    %v3318 = vpop.f32.mrb[0].mxu0
    %v3319 = vpop.f32.mrb[0].mxu0
    %3320 = vdwg.mxu0
    %v3321 = vrot.slane %v1488, 3
    %v3329 = vunpack.c.l.b16 %v1798
    %v3330 = vunpack.c.h.b16 %v1798
    %v3331 = vunpack.c.l.b16 %v1799
    %v3332 = vunpack.c.h.b16 %v1799
    %v3333 = vunpack.c.l.b16 %v1800
    %v3334 = vunpack.c.h.b16 %v1800
    %v3335 = vunpack.c.l.b16 %v1801
    %v3336 = vunpack.c.h.b16 %v1801
    %v3337 = vunpack.c.l.b16 %v1802
    %v3338 = vunpack.c.h.b16 %v1802
    %v3339 = vunpack.c.l.b16 %v1803
    %v3340 = vunpack.c.h.b16 %v1803
    %v3341 = vunpack.c.l.b16 %v1804
    %v3342 = vunpack.c.h.b16 %v1804
    %v3343 = vpack.c.b16 %v3331, %v3329
    %v3344 = vpack.c.b16 %v3332, %v3330
    %v3345 = vpack.c.b16 %v3335, %v3333
    %v3346 = vpack.c.b16 %v3336, %v3334
    %v3347 = vpack.c.b16 %v3339, %v3337
    %v3348 = vpack.c.b16 %v3340, %v3338
    %v3349 = vpack.c.b16 %v3341, %v3341
    %v3350 = vpack.c.b16 %v3342, %v3342
    %v3358 = vsel %vm1130, %v3321, 0
    %v3361 = vsel %vm1134, %v3349, 0
    %v3364 = vsel %vm1134, %v3350, 0
    %3366 = vmatprep.subr.bf16.mxu0 %v3344
    %3367 = vmatpush1.bf16.msra.mxu0 %v3343
    %3368 = vmatprep.subr.bf16.mxu0 %v3346
    %3369 = vmatpush1.bf16.msra.mxu0 %v3345
    %3370 = vmatprep.subr.bf16.mxu0 %v3348
    %3371 = vmatpush1.bf16.msra.mxu0 %v3347
    %3372 = vmatprep.subr.bf16.mxu0 %v3364
    %3373 = vmatpush1.bf16.msra.mxu0 %v3361
    %3374 = vmatprep.subr.bf16.mxu0 0
    %3375 = vmatpush1.bf16.msra.mxu0 0
    %3376 = vmatprep.subr.bf16.mxu0 0
    %3377 = vmatpush1.bf16.msra.mxu0 0
    %3378 = vmatprep.subr.bf16.mxu0 0
    %3379 = vmatpush1.bf16.msra.mxu0 0
    %3380 = vmatprep.subr.bf16.mxu0 0
    %3381 = vmatpush1.bf16.msra.mxu0 0
    %3382 = vmatprep.subr.bf16.mxu0 0
    %3383 = vmatpush1.bf16.msra.mxu0 0
    %3384 = vmatprep.subr.bf16.mxu0 0
    %3385 = vmatpush1.bf16.msra.mxu0 0
    %3386 = vmatprep.subr.bf16.mxu0 0
    %3387 = vmatpush1.bf16.msra.mxu0 0
    %3388 = vmatprep.subr.bf16.mxu0 0
    %3389 = vmatpush1.bf16.msra.mxu0 0
    %3390 = vmatprep.subr.bf16.mxu0 0
    %3391 = vmatpush1.bf16.msra.mxu0 0
    %3392 = vmatprep.subr.bf16.mxu0 0
    %3393 = vmatpush1.bf16.msra.mxu0 0
    %3394 = vmatprep.subr.bf16.mxu0 0
    %3395 = vmatpush1.bf16.msra.mxu0 0
    %3396 = vmatprep.subr.bf16.mxu0 0
    %3397 = vmatpush1.bf16.msra.mxu0 0
    %3398 = vmatprep.mubr.bf16.mxu0 0
    %3399 = vmatmul.mubr.bf16.gmra.mrb[0].mxu0 %v3358
    %v3400 = vpop.f32.mrb[0].mxu0
    %v3401 = vadd.f32 %v1893, %v3400
    %v3402 = vpop.f32.mrb[0].mxu0
    %v3403 = vadd.f32 %v1895, %v3402
    %v3404 = vpop.f32.mrb[0].mxu0
    %v3405 = vpop.f32.mrb[0].mxu0
    %3406 = vdwg.mxu0
    %v3414 = vunpack.c.l.b16 %v1901
    %v3415 = vunpack.c.h.b16 %v1901
    %v3416 = vunpack.c.l.b16 %v1902
    %v3417 = vunpack.c.h.b16 %v1902
    %v3418 = vunpack.c.l.b16 %v1903
    %v3419 = vunpack.c.h.b16 %v1903
    %v3420 = vunpack.c.l.b16 %v1904
    %v3421 = vunpack.c.h.b16 %v1904
    %v3422 = vunpack.c.l.b16 %v1905
    %v3423 = vunpack.c.h.b16 %v1905
    %v3424 = vunpack.c.l.b16 %v1906
    %v3425 = vunpack.c.h.b16 %v1906
    %v3426 = vunpack.c.l.b16 %v1907
    %v3427 = vunpack.c.h.b16 %v1907
    %v3428 = vpack.c.b16 %v3416, %v3414
    %v3429 = vpack.c.b16 %v3417, %v3415
    %v3430 = vpack.c.b16 %v3420, %v3418
    %v3431 = vpack.c.b16 %v3421, %v3419
    %v3432 = vpack.c.b16 %v3424, %v3422
    %v3433 = vpack.c.b16 %v3425, %v3423
    %v3434 = vpack.c.b16 %v3426, %v3426
    %v3435 = vpack.c.b16 %v3427, %v3427
    %v3442 = vsel %vm1130, %v1899, 0
    %v3445 = vsel %vm1134, %v3434, 0
    %v3448 = vsel %vm1134, %v3435, 0
    %3450 = vmatprep.subr.bf16.mxu0 %v3429
    %3451 = vmatpush1.bf16.msra.mxu0 %v3428
    %3452 = vmatprep.subr.bf16.mxu0 %v3431
    %3453 = vmatpush1.bf16.msra.mxu0 %v3430
    %3454 = vmatprep.subr.bf16.mxu0 %v3433
    %3455 = vmatpush1.bf16.msra.mxu0 %v3432
    %3456 = vmatprep.subr.bf16.mxu0 %v3448
    %3457 = vmatpush1.bf16.msra.mxu0 %v3445
    %3458 = vmatprep.subr.bf16.mxu0 0
    %3459 = vmatpush1.bf16.msra.mxu0 0
    %3460 = vmatprep.subr.bf16.mxu0 0
    %3461 = vmatpush1.bf16.msra.mxu0 0
    %3462 = vmatprep.subr.bf16.mxu0 0
    %3463 = vmatpush1.bf16.msra.mxu0 0
    %3464 = vmatprep.subr.bf16.mxu0 0
    %3465 = vmatpush1.bf16.msra.mxu0 0
    %3466 = vmatprep.subr.bf16.mxu0 0
    %3467 = vmatpush1.bf16.msra.mxu0 0
    %3468 = vmatprep.subr.bf16.mxu0 0
    %3469 = vmatpush1.bf16.msra.mxu0 0
    %3470 = vmatprep.subr.bf16.mxu0 0
    %3471 = vmatpush1.bf16.msra.mxu0 0
    %3472 = vmatprep.subr.bf16.mxu0 0
    %3473 = vmatpush1.bf16.msra.mxu0 0
    %3474 = vmatprep.subr.bf16.mxu0 0
    %3475 = vmatpush1.bf16.msra.mxu0 0
    %3476 = vmatprep.subr.bf16.mxu0 0
    %3477 = vmatpush1.bf16.msra.mxu0 0
    %3478 = vmatprep.subr.bf16.mxu0 0
    %3479 = vmatpush1.bf16.msra.mxu0 0
    %3480 = vmatprep.subr.bf16.mxu0 0
    %3481 = vmatpush1.bf16.msra.mxu0 0
    %3482 = vmatprep.mubr.bf16.mxu0 0
    %3483 = vmatmul.mubr.bf16.gmra.mrb[0].mxu0 %v3442
    %v3484 = vpop.f32.mrb[0].mxu0
    %v3485 = vadd.f32 %v1998, %v3484
    %v3486 = vpop.f32.mrb[0].mxu0
    %v3487 = vadd.f32 %v2000, %v3486
    %v3488 = vpop.f32.mrb[0].mxu0
    %v3489 = vpop.f32.mrb[0].mxu0
    %3490 = vdwg.mxu0
    %v3492 = vrot.slane %v1899, 1
    %v3500 = vunpack.c.l.b16 %v2005
    %v3501 = vunpack.c.h.b16 %v2005
    %v3502 = vunpack.c.l.b16 %v2006
    %v3503 = vunpack.c.h.b16 %v2006
    %v3504 = vunpack.c.l.b16 %v2007
    %v3505 = vunpack.c.h.b16 %v2007
    %v3506 = vunpack.c.l.b16 %v2008
    %v3507 = vunpack.c.h.b16 %v2008
    %v3508 = vunpack.c.l.b16 %v2009
    %v3509 = vunpack.c.h.b16 %v2009
    %v3510 = vunpack.c.l.b16 %v2010
    %v3511 = vunpack.c.h.b16 %v2010
    %v3512 = vunpack.c.l.b16 %v2011
    %v3513 = vunpack.c.h.b16 %v2011
    %v3514 = vpack.c.b16 %v3502, %v3500
    %v3515 = vpack.c.b16 %v3503, %v3501
    %v3516 = vpack.c.b16 %v3506, %v3504
    %v3517 = vpack.c.b16 %v3507, %v3505
    %v3518 = vpack.c.b16 %v3510, %v3508
    %v3519 = vpack.c.b16 %v3511, %v3509
    %v3520 = vpack.c.b16 %v3512, %v3512
    %v3521 = vpack.c.b16 %v3513, %v3513
    %v3529 = vsel %vm1130, %v3492, 0
    %v3532 = vsel %vm1134, %v3520, 0
    %v3535 = vsel %vm1134, %v3521, 0
    %3537 = vmatprep.subr.bf16.mxu0 %v3515
    %3538 = vmatpush1.bf16.msra.mxu0 %v3514
    %3539 = vmatprep.subr.bf16.mxu0 %v3517
    %3540 = vmatpush1.bf16.msra.mxu0 %v3516
    %3541 = vmatprep.subr.bf16.mxu0 %v3519
    %3542 = vmatpush1.bf16.msra.mxu0 %v3518
    %3543 = vmatprep.subr.bf16.mxu0 %v3535
    %3544 = vmatpush1.bf16.msra.mxu0 %v3532
    %3545 = vmatprep.subr.bf16.mxu0 0
    %3546 = vmatpush1.bf16.msra.mxu0 0
    %3547 = vmatprep.subr.bf16.mxu0 0
    %3548 = vmatpush1.bf16.msra.mxu0 0
    %3549 = vmatprep.subr.bf16.mxu0 0
    %3550 = vmatpush1.bf16.msra.mxu0 0
    %3551 = vmatprep.subr.bf16.mxu0 0
    %3552 = vmatpush1.bf16.msra.mxu0 0
    %3553 = vmatprep.subr.bf16.mxu0 0
    %3554 = vmatpush1.bf16.msra.mxu0 0
    %3555 = vmatprep.subr.bf16.mxu0 0
    %3556 = vmatpush1.bf16.msra.mxu0 0
    %3557 = vmatprep.subr.bf16.mxu0 0
    %3558 = vmatpush1.bf16.msra.mxu0 0
    %3559 = vmatprep.subr.bf16.mxu0 0
    %3560 = vmatpush1.bf16.msra.mxu0 0
    %3561 = vmatprep.subr.bf16.mxu0 0
    %3562 = vmatpush1.bf16.msra.mxu0 0
    %3563 = vmatprep.subr.bf16.mxu0 0
    %3564 = vmatpush1.bf16.msra.mxu0 0
    %3565 = vmatprep.subr.bf16.mxu0 0
    %3566 = vmatpush1.bf16.msra.mxu0 0
    %3567 = vmatprep.subr.bf16.mxu0 0
    %3568 = vmatpush1.bf16.msra.mxu0 0
    %3569 = vmatprep.mubr.bf16.mxu0 0
    %3570 = vmatmul.mubr.bf16.gmra.mrb[0].mxu0 %v3529
    %v3571 = vpop.f32.mrb[0].mxu0
    %v3572 = vadd.f32 %v2100, %v3571
    %v3573 = vpop.f32.mrb[0].mxu0
    %v3574 = vadd.f32 %v2102, %v3573
    %v3575 = vpop.f32.mrb[0].mxu0
    %v3576 = vpop.f32.mrb[0].mxu0
    %3577 = vdwg.mxu0
    %v3578 = vrot.slane %v1899, 2
    %v3586 = vunpack.c.l.b16 %v2107
    %v3587 = vunpack.c.h.b16 %v2107
    %v3588 = vunpack.c.l.b16 %v2108
    %v3589 = vunpack.c.h.b16 %v2108
    %v3590 = vunpack.c.l.b16 %v2109
    %v3591 = vunpack.c.h.b16 %v2109
    %v3592 = vunpack.c.l.b16 %v2110
    %v3593 = vunpack.c.h.b16 %v2110
    %v3594 = vunpack.c.l.b16 %v2111
    %v3595 = vunpack.c.h.b16 %v2111
    %v3596 = vunpack.c.l.b16 %v2112
    %v3597 = vunpack.c.h.b16 %v2112
    %v3598 = vunpack.c.l.b16 %v2113
    %v3599 = vunpack.c.h.b16 %v2113
    %v3600 = vpack.c.b16 %v3588, %v3586
    %v3601 = vpack.c.b16 %v3589, %v3587
    %v3602 = vpack.c.b16 %v3592, %v3590
    %v3603 = vpack.c.b16 %v3593, %v3591
    %v3604 = vpack.c.b16 %v3596, %v3594
    %v3605 = vpack.c.b16 %v3597, %v3595
    %v3606 = vpack.c.b16 %v3598, %v3598
    %v3607 = vpack.c.b16 %v3599, %v3599
    %v3615 = vsel %vm1130, %v3578, 0
    %v3618 = vsel %vm1134, %v3606, 0
    %v3621 = vsel %vm1134, %v3607, 0
    %3623 = vmatprep.subr.bf16.mxu0 %v3601
    %3624 = vmatpush1.bf16.msra.mxu0 %v3600
    %3625 = vmatprep.subr.bf16.mxu0 %v3603
    %3626 = vmatpush1.bf16.msra.mxu0 %v3602
    %3627 = vmatprep.subr.bf16.mxu0 %v3605
    %3628 = vmatpush1.bf16.msra.mxu0 %v3604
    %3629 = vmatprep.subr.bf16.mxu0 %v3621
    %3630 = vmatpush1.bf16.msra.mxu0 %v3618
    %3631 = vmatprep.subr.bf16.mxu0 0
    %3632 = vmatpush1.bf16.msra.mxu0 0
    %3633 = vmatprep.subr.bf16.mxu0 0
    %3634 = vmatpush1.bf16.msra.mxu0 0
    %3635 = vmatprep.subr.bf16.mxu0 0
    %3636 = vmatpush1.bf16.msra.mxu0 0
    %3637 = vmatprep.subr.bf16.mxu0 0
    %3638 = vmatpush1.bf16.msra.mxu0 0
    %3639 = vmatprep.subr.bf16.mxu0 0
    %3640 = vmatpush1.bf16.msra.mxu0 0
    %3641 = vmatprep.subr.bf16.mxu0 0
    %3642 = vmatpush1.bf16.msra.mxu0 0
    %3643 = vmatprep.subr.bf16.mxu0 0
    %3644 = vmatpush1.bf16.msra.mxu0 0
    %3645 = vmatprep.subr.bf16.mxu0 0
    %3646 = vmatpush1.bf16.msra.mxu0 0
    %3647 = vmatprep.subr.bf16.mxu0 0
    %3648 = vmatpush1.bf16.msra.mxu0 0
    %3649 = vmatprep.subr.bf16.mxu0 0
    %3650 = vmatpush1.bf16.msra.mxu0 0
    %3651 = vmatprep.subr.bf16.mxu0 0
    %3652 = vmatpush1.bf16.msra.mxu0 0
    %3653 = vmatprep.subr.bf16.mxu0 0
    %3654 = vmatpush1.bf16.msra.mxu0 0
    %3655 = vmatprep.mubr.bf16.mxu0 0
    %3656 = vmatmul.mubr.bf16.gmra.mrb[0].mxu0 %v3615
    %v3657 = vpop.f32.mrb[0].mxu0
    %v3658 = vadd.f32 %v2202, %v3657
    %v3659 = vpop.f32.mrb[0].mxu0
    %v3660 = vadd.f32 %v2204, %v3659
    %v3661 = vpop.f32.mrb[0].mxu0
    %v3662 = vpop.f32.mrb[0].mxu0
    %3663 = vdwg.mxu0
    %v3664 = vrot.slane %v1899, 3
    %v3672 = vunpack.c.l.b16 %v2209
    %v3673 = vunpack.c.h.b16 %v2209
    %v3674 = vunpack.c.l.b16 %v2210
    %v3675 = vunpack.c.h.b16 %v2210
    %v3676 = vunpack.c.l.b16 %v2211
    %v3677 = vunpack.c.h.b16 %v2211
    %v3678 = vunpack.c.l.b16 %v2212
    %v3679 = vunpack.c.h.b16 %v2212
    %v3680 = vunpack.c.l.b16 %v2213
    %v3681 = vunpack.c.h.b16 %v2213
    %v3682 = vunpack.c.l.b16 %v2214
    %v3683 = vunpack.c.h.b16 %v2214
    %v3684 = vunpack.c.l.b16 %v2215
    %v3685 = vunpack.c.h.b16 %v2215
    %v3686 = vpack.c.b16 %v3674, %v3672
    %v3687 = vpack.c.b16 %v3675, %v3673
    %v3688 = vpack.c.b16 %v3678, %v3676
    %v3689 = vpack.c.b16 %v3679, %v3677
    %v3690 = vpack.c.b16 %v3682, %v3680
    %v3691 = vpack.c.b16 %v3683, %v3681
    %v3692 = vpack.c.b16 %v3684, %v3684
    %v3693 = vpack.c.b16 %v3685, %v3685
    %v3701 = vsel %vm1130, %v3664, 0
    %v3704 = vsel %vm1134, %v3692, 0
    %v3707 = vsel %vm1134, %v3693, 0
    %3709 = vmatprep.subr.bf16.mxu0 %v3687
    %3710 = vmatpush1.bf16.msra.mxu0 %v3686
    %3711 = vmatprep.subr.bf16.mxu0 %v3689
    %3712 = vmatpush1.bf16.msra.mxu0 %v3688
    %3713 = vmatprep.subr.bf16.mxu0 %v3691
    %3714 = vmatpush1.bf16.msra.mxu0 %v3690
    %3715 = vmatprep.subr.bf16.mxu0 %v3707
    %3716 = vmatpush1.bf16.msra.mxu0 %v3704
    %3717 = vmatprep.subr.bf16.mxu0 0
    %3718 = vmatpush1.bf16.msra.mxu0 0
    %3719 = vmatprep.subr.bf16.mxu0 0
    %3720 = vmatpush1.bf16.msra.mxu0 0
    %3721 = vmatprep.subr.bf16.mxu0 0
    %3722 = vmatpush1.bf16.msra.mxu0 0
    %3723 = vmatprep.subr.bf16.mxu0 0
    %3724 = vmatpush1.bf16.msra.mxu0 0
    %3725 = vmatprep.subr.bf16.mxu0 0
    %3726 = vmatpush1.bf16.msra.mxu0 0
    %3727 = vmatprep.subr.bf16.mxu0 0
    %3728 = vmatpush1.bf16.msra.mxu0 0
    %3729 = vmatprep.subr.bf16.mxu0 0
    %3730 = vmatpush1.bf16.msra.mxu0 0
    %3731 = vmatprep.subr.bf16.mxu0 0
    %3732 = vmatpush1.bf16.msra.mxu0 0
    %3733 = vmatprep.subr.bf16.mxu0 0
    %3734 = vmatpush1.bf16.msra.mxu0 0
    %3735 = vmatprep.subr.bf16.mxu0 0
    %3736 = vmatpush1.bf16.msra.mxu0 0
    %3737 = vmatprep.subr.bf16.mxu0 0
    %3738 = vmatpush1.bf16.msra.mxu0 0
    %3739 = vmatprep.subr.bf16.mxu0 0
    %3740 = vmatpush1.bf16.msra.mxu0 0
    %3741 = vmatprep.mubr.bf16.mxu0 0
    %3742 = vmatmul.mubr.bf16.gmra.mrb[0].mxu0 %v3701
    %v3743 = vpop.f32.mrb[0].mxu0
    %v3744 = vadd.f32 %v2304, %v3743
    %v3745 = vpop.f32.mrb[0].mxu0
    %v3746 = vadd.f32 %v2306, %v3745
    %v3747 = vpop.f32.mrb[0].mxu0
    %v3748 = vpop.f32.mrb[0].mxu0
    %3749 = vdwg.mxu0
    %v3757 = vunpack.c.l.b16 %v2312
    %v3758 = vunpack.c.h.b16 %v2312
    %v3759 = vunpack.c.l.b16 %v2313
    %v3760 = vunpack.c.h.b16 %v2313
    %v3761 = vunpack.c.l.b16 %v2314
    %v3762 = vunpack.c.h.b16 %v2314
    %v3763 = vunpack.c.l.b16 %v2315
    %v3764 = vunpack.c.h.b16 %v2315
    %v3765 = vunpack.c.l.b16 %v2316
    %v3766 = vunpack.c.h.b16 %v2316
    %v3767 = vunpack.c.l.b16 %v2317
    %v3768 = vunpack.c.h.b16 %v2317
    %v3769 = vunpack.c.l.b16 %v2318
    %v3770 = vunpack.c.h.b16 %v2318
    %v3771 = vpack.c.b16 %v3759, %v3757
    %v3772 = vpack.c.b16 %v3760, %v3758
    %v3773 = vpack.c.b16 %v3763, %v3761
    %v3774 = vpack.c.b16 %v3764, %v3762
    %v3775 = vpack.c.b16 %v3767, %v3765
    %v3776 = vpack.c.b16 %v3768, %v3766
    %v3777 = vpack.c.b16 %v3769, %v3769
    %v3778 = vpack.c.b16 %v3770, %v3770
    %v3785 = vsel %vm1130, %v2310, 0
    %v3788 = vsel %vm1134, %v3777, 0
    %v3791 = vsel %vm1134, %v3778, 0
    %3793 = vmatprep.subr.bf16.mxu0 %v3772
    %3794 = vmatpush1.bf16.msra.mxu0 %v3771
    %3795 = vmatprep.subr.bf16.mxu0 %v3774
    %3796 = vmatpush1.bf16.msra.mxu0 %v3773
    %3797 = vmatprep.subr.bf16.mxu0 %v3776
    %3798 = vmatpush1.bf16.msra.mxu0 %v3775
    %3799 = vmatprep.subr.bf16.mxu0 %v3791
    %3800 = vmatpush1.bf16.msra.mxu0 %v3788
    %3801 = vmatprep.subr.bf16.mxu0 0
    %3802 = vmatpush1.bf16.msra.mxu0 0
    %3803 = vmatprep.subr.bf16.mxu0 0
    %3804 = vmatpush1.bf16.msra.mxu0 0
    %3805 = vmatprep.subr.bf16.mxu0 0
    %3806 = vmatpush1.bf16.msra.mxu0 0
    %3807 = vmatprep.subr.bf16.mxu0 0
    %3808 = vmatpush1.bf16.msra.mxu0 0
    %3809 = vmatprep.subr.bf16.mxu0 0
    %3810 = vmatpush1.bf16.msra.mxu0 0
    %3811 = vmatprep.subr.bf16.mxu0 0
    %3812 = vmatpush1.bf16.msra.mxu0 0
    %3813 = vmatprep.subr.bf16.mxu0 0
    %3814 = vmatpush1.bf16.msra.mxu0 0
    %3815 = vmatprep.subr.bf16.mxu0 0
    %3816 = vmatpush1.bf16.msra.mxu0 0
    %3817 = vmatprep.subr.bf16.mxu0 0
    %3818 = vmatpush1.bf16.msra.mxu0 0
    %3819 = vmatprep.subr.bf16.mxu0 0
    %3820 = vmatpush1.bf16.msra.mxu0 0
    %3821 = vmatprep.subr.bf16.mxu0 0
    %3822 = vmatpush1.bf16.msra.mxu0 0
    %3823 = vmatprep.subr.bf16.mxu0 0
    %3824 = vmatpush1.bf16.msra.mxu0 0
    %3825 = vmatprep.mubr.bf16.mxu0 0
    %3826 = vmatmul.mubr.bf16.gmra.mrb[0].mxu0 %v3785
    %v3827 = vpop.f32.mrb[0].mxu0
    %v3828 = vadd.f32 %v2409, %v3827
    %v3829 = vpop.f32.mrb[0].mxu0
    %v3830 = vadd.f32 %v2411, %v3829
    %v3831 = vpop.f32.mrb[0].mxu0
    %v3832 = vpop.f32.mrb[0].mxu0
    %3833 = vdwg.mxu0
    %v3835 = vrot.slane %v2310, 1
    %v3843 = vunpack.c.l.b16 %v2416
    %v3844 = vunpack.c.h.b16 %v2416
    %v3845 = vunpack.c.l.b16 %v2417
    %v3846 = vunpack.c.h.b16 %v2417
    %v3847 = vunpack.c.l.b16 %v2418
    %v3848 = vunpack.c.h.b16 %v2418
    %v3849 = vunpack.c.l.b16 %v2419
    %v3850 = vunpack.c.h.b16 %v2419
    %v3851 = vunpack.c.l.b16 %v2420
    %v3852 = vunpack.c.h.b16 %v2420
    %v3853 = vunpack.c.l.b16 %v2421
    %v3854 = vunpack.c.h.b16 %v2421
    %v3855 = vunpack.c.l.b16 %v2422
    %v3856 = vunpack.c.h.b16 %v2422
    %v3857 = vpack.c.b16 %v3845, %v3843
    %v3858 = vpack.c.b16 %v3846, %v3844
    %v3859 = vpack.c.b16 %v3849, %v3847
    %v3860 = vpack.c.b16 %v3850, %v3848
    %v3861 = vpack.c.b16 %v3853, %v3851
    %v3862 = vpack.c.b16 %v3854, %v3852
    %v3863 = vpack.c.b16 %v3855, %v3855
    %v3864 = vpack.c.b16 %v3856, %v3856
    %v3872 = vsel %vm1130, %v3835, 0
    %v3875 = vsel %vm1134, %v3863, 0
    %v3878 = vsel %vm1134, %v3864, 0
    %3880 = vmatprep.subr.bf16.mxu0 %v3858
    %3881 = vmatpush1.bf16.msra.mxu0 %v3857
    %3882 = vmatprep.subr.bf16.mxu0 %v3860
    %3883 = vmatpush1.bf16.msra.mxu0 %v3859
    %3884 = vmatprep.subr.bf16.mxu0 %v3862
    %3885 = vmatpush1.bf16.msra.mxu0 %v3861
    %3886 = vmatprep.subr.bf16.mxu0 %v3878
    %3887 = vmatpush1.bf16.msra.mxu0 %v3875
    %3888 = vmatprep.subr.bf16.mxu0 0
    %3889 = vmatpush1.bf16.msra.mxu0 0
    %3890 = vmatprep.subr.bf16.mxu0 0
    %3891 = vmatpush1.bf16.msra.mxu0 0
    %3892 = vmatprep.subr.bf16.mxu0 0
    %3893 = vmatpush1.bf16.msra.mxu0 0
    %3894 = vmatprep.subr.bf16.mxu0 0
    %3895 = vmatpush1.bf16.msra.mxu0 0
    %3896 = vmatprep.subr.bf16.mxu0 0
    %3897 = vmatpush1.bf16.msra.mxu0 0
    %3898 = vmatprep.subr.bf16.mxu0 0
    %3899 = vmatpush1.bf16.msra.mxu0 0
    %3900 = vmatprep.subr.bf16.mxu0 0
    %3901 = vmatpush1.bf16.msra.mxu0 0
    %3902 = vmatprep.subr.bf16.mxu0 0
    %3903 = vmatpush1.bf16.msra.mxu0 0
    %3904 = vmatprep.subr.bf16.mxu0 0
    %3905 = vmatpush1.bf16.msra.mxu0 0
    %3906 = vmatprep.subr.bf16.mxu0 0
    %3907 = vmatpush1.bf16.msra.mxu0 0
    %3908 = vmatprep.subr.bf16.mxu0 0
    %3909 = vmatpush1.bf16.msra.mxu0 0
    %3910 = vmatprep.subr.bf16.mxu0 0
    %3911 = vmatpush1.bf16.msra.mxu0 0
    %3912 = vmatprep.mubr.bf16.mxu0 0
    %3913 = vmatmul.mubr.bf16.gmra.mrb[0].mxu0 %v3872
    %v3914 = vpop.f32.mrb[0].mxu0
    %v3915 = vadd.f32 %v2511, %v3914
    %v3916 = vpop.f32.mrb[0].mxu0
    %v3917 = vadd.f32 %v2513, %v3916
    %v3918 = vpop.f32.mrb[0].mxu0
    %v3919 = vpop.f32.mrb[0].mxu0
    %3920 = vdwg.mxu0
    %v3921 = vrot.slane %v2310, 2
    %v3929 = vunpack.c.l.b16 %v2518
    %v3930 = vunpack.c.h.b16 %v2518
    %v3931 = vunpack.c.l.b16 %v2519
    %v3932 = vunpack.c.h.b16 %v2519
    %v3933 = vunpack.c.l.b16 %v2520
    %v3934 = vunpack.c.h.b16 %v2520
    %v3935 = vunpack.c.l.b16 %v2521
    %v3936 = vunpack.c.h.b16 %v2521
    %v3937 = vunpack.c.l.b16 %v2522
    %v3938 = vunpack.c.h.b16 %v2522
    %v3939 = vunpack.c.l.b16 %v2523
    %v3940 = vunpack.c.h.b16 %v2523
    %v3941 = vunpack.c.l.b16 %v2524
    %v3942 = vunpack.c.h.b16 %v2524
    %v3943 = vpack.c.b16 %v3931, %v3929
    %v3944 = vpack.c.b16 %v3932, %v3930
    %v3945 = vpack.c.b16 %v3935, %v3933
    %v3946 = vpack.c.b16 %v3936, %v3934
    %v3947 = vpack.c.b16 %v3939, %v3937
    %v3948 = vpack.c.b16 %v3940, %v3938
    %v3949 = vpack.c.b16 %v3941, %v3941
    %v3950 = vpack.c.b16 %v3942, %v3942
    %v3958 = vsel %vm1130, %v3921, 0
    %v3961 = vsel %vm1134, %v3949, 0
    %v3964 = vsel %vm1134, %v3950, 0
    %3966 = vmatprep.subr.bf16.mxu0 %v3944
    %3967 = vmatpush1.bf16.msra.mxu0 %v3943
    %3968 = vmatprep.subr.bf16.mxu0 %v3946
    %3969 = vmatpush1.bf16.msra.mxu0 %v3945
    %3970 = vmatprep.subr.bf16.mxu0 %v3948
    %3971 = vmatpush1.bf16.msra.mxu0 %v3947
    %3972 = vmatprep.subr.bf16.mxu0 %v3964
    %3973 = vmatpush1.bf16.msra.mxu0 %v3961
    %3974 = vmatprep.subr.bf16.mxu0 0
    %3975 = vmatpush1.bf16.msra.mxu0 0
    %3976 = vmatprep.subr.bf16.mxu0 0
    %3977 = vmatpush1.bf16.msra.mxu0 0
    %3978 = vmatprep.subr.bf16.mxu0 0
    %3979 = vmatpush1.bf16.msra.mxu0 0
    %3980 = vmatprep.subr.bf16.mxu0 0
    %3981 = vmatpush1.bf16.msra.mxu0 0
    %3982 = vmatprep.subr.bf16.mxu0 0
    %3983 = vmatpush1.bf16.msra.mxu0 0
    %3984 = vmatprep.subr.bf16.mxu0 0
    %3985 = vmatpush1.bf16.msra.mxu0 0
    %3986 = vmatprep.subr.bf16.mxu0 0
    %3987 = vmatpush1.bf16.msra.mxu0 0
    %3988 = vmatprep.subr.bf16.mxu0 0
    %3989 = vmatpush1.bf16.msra.mxu0 0
    %3990 = vmatprep.subr.bf16.mxu0 0
    %3991 = vmatpush1.bf16.msra.mxu0 0
    %3992 = vmatprep.subr.bf16.mxu0 0
    %3993 = vmatpush1.bf16.msra.mxu0 0
    %3994 = vmatprep.subr.bf16.mxu0 0
    %3995 = vmatpush1.bf16.msra.mxu0 0
    %3996 = vmatprep.subr.bf16.mxu0 0
    %3997 = vmatpush1.bf16.msra.mxu0 0
    %3998 = vmatprep.mubr.bf16.mxu0 0
    %3999 = vmatmul.mubr.bf16.gmra.mrb[0].mxu0 %v3958
    %v4000 = vpop.f32.mrb[0].mxu0
    %v4001 = vadd.f32 %v2613, %v4000
    %v4002 = vpop.f32.mrb[0].mxu0
    %v4003 = vadd.f32 %v2615, %v4002
    %v4004 = vpop.f32.mrb[0].mxu0
    %v4005 = vpop.f32.mrb[0].mxu0
    %4006 = vdwg.mxu0
    %v4007 = vrot.slane %v2310, 3
    %v4015 = vunpack.c.l.b16 %v2620
    %v4016 = vunpack.c.h.b16 %v2620
    %v4017 = vunpack.c.l.b16 %v2621
    %v4018 = vunpack.c.h.b16 %v2621
    %v4019 = vunpack.c.l.b16 %v2622
    %v4020 = vunpack.c.h.b16 %v2622
    %v4021 = vunpack.c.l.b16 %v2623
    %v4022 = vunpack.c.h.b16 %v2623
    %v4023 = vunpack.c.l.b16 %v2624
    %v4024 = vunpack.c.h.b16 %v2624
    %v4025 = vunpack.c.l.b16 %v2625
    %v4026 = vunpack.c.h.b16 %v2625
    %v4027 = vunpack.c.l.b16 %v2626
    %v4028 = vunpack.c.h.b16 %v2626
    %v4029 = vpack.c.b16 %v4017, %v4015
    %v4030 = vpack.c.b16 %v4018, %v4016
    %v4031 = vpack.c.b16 %v4021, %v4019
    %v4032 = vpack.c.b16 %v4022, %v4020
    %v4033 = vpack.c.b16 %v4025, %v4023
    %v4034 = vpack.c.b16 %v4026, %v4024
    %v4035 = vpack.c.b16 %v4027, %v4027
    %v4036 = vpack.c.b16 %v4028, %v4028
    %v4044 = vsel %vm1130, %v4007, 0
    %v4047 = vsel %vm1134, %v4035, 0
    %v4050 = vsel %vm1134, %v4036, 0
    %4052 = vmatprep.subr.bf16.mxu0 %v4030
    %4053 = vmatpush1.bf16.msra.mxu0 %v4029
    %4054 = vmatprep.subr.bf16.mxu0 %v4032
    %4055 = vmatpush1.bf16.msra.mxu0 %v4031
    %4056 = vmatprep.subr.bf16.mxu0 %v4034
    %4057 = vmatpush1.bf16.msra.mxu0 %v4033
    %4058 = vmatprep.subr.bf16.mxu0 %v4050
    %4059 = vmatpush1.bf16.msra.mxu0 %v4047
    %4060 = vmatprep.subr.bf16.mxu0 0
    %4061 = vmatpush1.bf16.msra.mxu0 0
    %4062 = vmatprep.subr.bf16.mxu0 0
    %4063 = vmatpush1.bf16.msra.mxu0 0
    %4064 = vmatprep.subr.bf16.mxu0 0
    %4065 = vmatpush1.bf16.msra.mxu0 0
    %4066 = vmatprep.subr.bf16.mxu0 0
    %4067 = vmatpush1.bf16.msra.mxu0 0
    %4068 = vmatprep.subr.bf16.mxu0 0
    %4069 = vmatpush1.bf16.msra.mxu0 0
    %4070 = vmatprep.subr.bf16.mxu0 0
    %4071 = vmatpush1.bf16.msra.mxu0 0
    %4072 = vmatprep.subr.bf16.mxu0 0
    %4073 = vmatpush1.bf16.msra.mxu0 0
    %4074 = vmatprep.subr.bf16.mxu0 0
    %4075 = vmatpush1.bf16.msra.mxu0 0
    %4076 = vmatprep.subr.bf16.mxu0 0
    %4077 = vmatpush1.bf16.msra.mxu0 0
    %4078 = vmatprep.subr.bf16.mxu0 0
    %4079 = vmatpush1.bf16.msra.mxu0 0
    %4080 = vmatprep.subr.bf16.mxu0 0
    %4081 = vmatpush1.bf16.msra.mxu0 0
    %4082 = vmatprep.subr.bf16.mxu0 0
    %4083 = vmatpush1.bf16.msra.mxu0 0
    %4084 = vmatprep.mubr.bf16.mxu0 0
    %4085 = vmatmul.mubr.bf16.gmra.mrb[0].mxu0 %v4044
    %v4086 = vpop.f32.mrb[0].mxu0
    %v4087 = vadd.f32 %v2715, %v4086
    %v4088 = vpop.f32.mrb[0].mxu0
    %v4089 = vadd.f32 %v2717, %v4088
    %v4090 = vpop.f32.mrb[0].mxu0
    %v4091 = vpop.f32.mrb[0].mxu0
    %4092 = vdwg.mxu0
    %v4093 = vadd.f32 %v2799, %v2886
    %v4094 = vadd.f32 %v2801, %v2888
    %v4095 = vadd.f32 %v2972, %v3058
    %v4096 = vadd.f32 %v2974, %v3060
    %v4097 = vadd.f32 %v3142, %v3229
    %v4098 = vadd.f32 %v3144, %v3231
    %v4099 = vadd.f32 %v3315, %v3401
    %v4100 = vadd.f32 %v3317, %v3403
    %v4101 = vadd.f32 %v3485, %v3572
    %v4102 = vadd.f32 %v3487, %v3574
    %v4103 = vadd.f32 %v3658, %v3744
    %v4104 = vadd.f32 %v3660, %v3746
    %v4105 = vadd.f32 %v3828, %v3915
    %v4106 = vadd.f32 %v3830, %v3917
    %v4107 = vadd.f32 %v4001, %v4087
    %v4108 = vadd.f32 %v4003, %v4089
    %v4109 = vadd.f32 %v4093, %v4095
    %v4110 = vadd.f32 %v4094, %v4096
    %v4111 = vadd.f32 %v4097, %v4099
    %v4112 = vadd.f32 %v4098, %v4100
    %v4113 = vadd.f32 %v4101, %v4103
    %v4114 = vadd.f32 %v4102, %v4104
    %v4115 = vadd.f32 %v4105, %v4107
    %v4116 = vadd.f32 %v4106, %v4108
    %v4117 = vadd.f32 %v4109, %v4111
    %v4118 = vadd.f32 %v4110, %v4112
    %v4119 = vadd.f32 %v4113, %v4115
    %v4120 = vadd.f32 %v4114, %v4116
    %v4121 = vadd.f32 %v4117, %v4119
    %v4122 = vadd.f32 %v4118, %v4120
    %v4123 = vld [vmem:[%s6] sm:$0x3]
    %v4125 = vlaneseq
    %v4126 = vshrl.u32 %v4125, 7
    %v4127 = vsub.s32 0, %v4126
    %v4128 = vrot.slane %v4123, %v4127
    %v4129 = vlaneseq
    %v4130 = vshrl.u32 %v4129, 7
    %v4131 = vsub.s32 1, %v4130
    %v4132 = vrot.slane %v4123, %v4131
    %v4135 = vadd.f32 %v4121, %v4128
    %v4136 = vadd.f32 %v4122, %v4132
    %v4137 = vmax.f32 %v4135, 0.0
    %v4138 = vmax.f32 %v4136, 0.0
    %v4139 = vpack.c.bf16 %v4137, %v4137
    %v4140 = vpack.c.bf16 %v4138, %v4138
    %v4141 = vld [vmem:[%s7] sm:$0xf]
    %v4142 = vld [vmem:[%s7 + $0x4] sm:$0xf]
    %v4143 = vld [vmem:[%s7 + $0x8] sm:$0xf]
    %v4144 = vld [vmem:[%s7 + $0xc] sm:$0xf]
    %v4145 = vld [vmem:[%s7 + $0x10] sm:$0xf]
    %v4146 = vld [vmem:[%s7 + $0x14] sm:$0xf]
    %v4147 = vld [vmem:[%s7 + $0x18] sm:$0xf]
    %v4148 = vld [vmem:[%s7 + $0x1c] sm:$0xf]
    %v4149 = vld [vmem:[%s7 + $0x20] sm:$0xf]
    %v4150 = vld [vmem:[%s7 + $0x24] sm:$0xf]
    %v4151 = vld [vmem:[%s7 + $0x28] sm:$0xf]
    %v4152 = vld [vmem:[%s7 + $0x2c] sm:$0xf]
    %v4153 = vld [vmem:[%s7 + $0x30] sm:$0xf]
    %v4154 = vld [vmem:[%s7 + $0x34] sm:$0xf]
    %v4155 = vld [vmem:[%s7 + $0x38] sm:$0xf]
    %v4156 = vld [vmem:[%s7 + $0x3c] sm:$0xf]
    %v4157 = vld [vmem:[%s7 + $0x40] sm:$0xf]
    %v4158 = vld [vmem:[%s7 + $0x44] sm:$0xf]
    %v4159 = vld [vmem:[%s7 + $0x48] sm:$0xf]
    %v4160 = vld [vmem:[%s7 + $0x4c] sm:$0xf]
    %v4161 = vld [vmem:[%s7 + $0x50] sm:$0xf]
    %v4162 = vld [vmem:[%s7 + $0x54] sm:$0xf]
    %v4163 = vld [vmem:[%s7 + $0x58] sm:$0xf]
    %v4164 = vld [vmem:[%s7 + $0x5c] sm:$0xf]
    %v4165 = vld [vmem:[%s7 + $0x60] sm:$0xf]
    %v4166 = vld [vmem:[%s7 + $0x64] sm:$0xf]
    %v4167 = vld [vmem:[%s7 + $0x68] sm:$0xf]
    %v4168 = vld [vmem:[%s7 + $0x6c] sm:$0xf]
    %v4169 = vld [vmem:[%s7 + $0x70] sm:$0xf]
    %v4170 = vld [vmem:[%s7 + $0x74] sm:$0xf]
    %v4171 = vld [vmem:[%s7 + $0x78] sm:$0xf]
    %v4172 = vld [vmem:[%s7 + $0x7c] sm:$0xf]
    %v4173 = vld [vmem:[%s8] sm:$0x1]
    %v4206 = vunpack.c.l.b16 %v4141
    %v4207 = vunpack.c.l.b16 %v4142
    %v4208 = vunpack.c.l.b16 %v4143
    %v4209 = vunpack.c.l.b16 %v4144
    %v4210 = vunpack.c.l.b16 %v4145
    %v4211 = vunpack.c.l.b16 %v4146
    %v4212 = vunpack.c.l.b16 %v4147
    %v4213 = vunpack.c.l.b16 %v4148
    %v4214 = vunpack.c.l.b16 %v4149
    %v4215 = vunpack.c.l.b16 %v4150
    %v4216 = vunpack.c.l.b16 %v4151
    %v4217 = vunpack.c.l.b16 %v4152
    %v4218 = vunpack.c.l.b16 %v4153
    %v4219 = vunpack.c.l.b16 %v4154
    %v4220 = vunpack.c.l.b16 %v4155
    %v4221 = vunpack.c.l.b16 %v4156
    %v4222 = vunpack.c.l.b16 %v4157
    %v4223 = vunpack.c.l.b16 %v4158
    %v4224 = vunpack.c.l.b16 %v4159
    %v4225 = vunpack.c.l.b16 %v4160
    %v4226 = vunpack.c.l.b16 %v4161
    %v4227 = vunpack.c.l.b16 %v4162
    %v4228 = vunpack.c.l.b16 %v4163
    %v4229 = vunpack.c.l.b16 %v4164
    %v4230 = vunpack.c.l.b16 %v4165
    %v4231 = vunpack.c.l.b16 %v4166
    %v4232 = vunpack.c.l.b16 %v4167
    %v4233 = vunpack.c.l.b16 %v4168
    %v4234 = vunpack.c.l.b16 %v4169
    %v4235 = vunpack.c.l.b16 %v4170
    %v4236 = vunpack.c.l.b16 %v4171
    %v4237 = vunpack.c.l.b16 %v4172
    %v4238 = vpack.c.b16 %v4207, %v4206
    %v4239 = vpack.c.b16 %v4209, %v4208
    %v4240 = vpack.c.b16 %v4211, %v4210
    %v4241 = vpack.c.b16 %v4213, %v4212
    %v4242 = vpack.c.b16 %v4215, %v4214
    %v4243 = vpack.c.b16 %v4217, %v4216
    %v4244 = vpack.c.b16 %v4219, %v4218
    %v4245 = vpack.c.b16 %v4221, %v4220
    %v4246 = vpack.c.b16 %v4223, %v4222
    %v4247 = vpack.c.b16 %v4225, %v4224
    %v4248 = vpack.c.b16 %v4227, %v4226
    %v4249 = vpack.c.b16 %v4229, %v4228
    %v4250 = vpack.c.b16 %v4231, %v4230
    %v4251 = vpack.c.b16 %v4233, %v4232
    %v4252 = vpack.c.b16 %v4235, %v4234
    %v4253 = vpack.c.b16 %v4237, %v4236
    %4270 = vmatprep.subr.bf16.mxu0 0
    %4271 = vmatpush1.bf16.msra.mxu0 %v4238
    %4272 = vmatprep.subr.bf16.mxu0 0
    %4273 = vmatpush1.bf16.msra.mxu0 %v4239
    %4274 = vmatprep.subr.bf16.mxu0 0
    %4275 = vmatpush1.bf16.msra.mxu0 %v4240
    %4276 = vmatprep.subr.bf16.mxu0 0
    %4277 = vmatpush1.bf16.msra.mxu0 %v4241
    %4278 = vmatprep.subr.bf16.mxu0 0
    %4279 = vmatpush1.bf16.msra.mxu0 %v4242
    %4280 = vmatprep.subr.bf16.mxu0 0
    %4281 = vmatpush1.bf16.msra.mxu0 %v4243
    %4282 = vmatprep.subr.bf16.mxu0 0
    %4283 = vmatpush1.bf16.msra.mxu0 %v4244
    %4284 = vmatprep.subr.bf16.mxu0 0
    %4285 = vmatpush1.bf16.msra.mxu0 %v4245
    %4286 = vmatprep.subr.bf16.mxu0 0
    %4287 = vmatpush1.bf16.msra.mxu0 %v4246
    %4288 = vmatprep.subr.bf16.mxu0 0
    %4289 = vmatpush1.bf16.msra.mxu0 %v4247
    %4290 = vmatprep.subr.bf16.mxu0 0
    %4291 = vmatpush1.bf16.msra.mxu0 %v4248
    %4292 = vmatprep.subr.bf16.mxu0 0
    %4293 = vmatpush1.bf16.msra.mxu0 %v4249
    %4294 = vmatprep.subr.bf16.mxu0 0
    %4295 = vmatpush1.bf16.msra.mxu0 %v4250
    %4296 = vmatprep.subr.bf16.mxu0 0
    %4297 = vmatpush1.bf16.msra.mxu0 %v4251
    %4298 = vmatprep.subr.bf16.mxu0 0
    %4299 = vmatpush1.bf16.msra.mxu0 %v4252
    %4300 = vmatprep.subr.bf16.mxu0 0
    %4301 = vmatpush1.bf16.msra.mxu0 %v4253
    %4302 = vmatprep.mubr.bf16.mxu0 %v4140
    %4303 = vmatmul.mubr.bf16.gmra.mrb[0].mxu0 %v4139
    %v4304 = vpop.f32.mrb[0].mxu0
    %v4305 = vadd.f32 %v4173, %v4304
    %v4306 = vpop.f32.mrb[0].mxu0
    %v4307 = vpop.f32.mrb[0].mxu0
    %v4308 = vpop.f32.mrb[0].mxu0
    %4309 = vdwg.mxu0
    %v4310 = vtanh.pop %v4305
    %vm4311 = vcmask 57344
    %4312 = vst.msk [vmem:[#allocation2] sm:$0x1] %vm4311, %v4310
    // Predicated region
    $region38: #{tpu_custom_call.1} parent=1 // pred_check
      _
    $region39: #{tpu_custom_call.1} parent=1 // pred_check_branch
      %4314 = sbr.rel (0) target = $region41
    $region40: #{tpu_custom_call.1} parent=1 // pred_region
      %s4316 = ssub.s32 16, 16
      %4317 = vsyncadd [#allocation3], %s4316
      %s4319 = sshll.u32 [#allocation2], 4
      %s4320 = int_to_ptr.vmem [resolvable:$true] %s4319
      %4322 = dma.vmem_to_hbm [thread:$0]  %s4320, 16, %s9, [#allocation3]
    $region41: #{tpu_custom_call.1} parent=1 // pred_fallthru
      _
    // Predicated region
    $region42: #{tpu_custom_call.1} parent=1 // pred_check
      _
    $region43: #{tpu_custom_call.1} parent=1 // pred_check_branch
      %4324 = sbr.rel (0) target = $region45
    $region44: #{tpu_custom_call.1} parent=1 // pred_region
      %4325 = dma.done [#allocation3], 16
    $region45: #{tpu_custom_call.1} parent=1 // pred_fallthru
      _
    %4326 = vsyncpa [#allocation3], 1

</llo_original>
